<compile_context>
chip_gen: v6e
topology: v6e:2x2x1
jax: 0.10.0
libtpu: 0.0.40
codegen_flags: <defaults>
</compile_context>

<pallas_src>
import jax
import jax.numpy as jnp
from jax import lax
from jax.experimental import pallas as pl
from jax.experimental.pallas import tpu as pltpu

NEG_SLOPE = 0.01
BN_EPS = 1e-5


def _leaky_relu(x):
    return jnp.where(x >= 0, x, NEG_SLOPE * x)


def _zero_pad_hw(y):
    """SAME-padding halo: (H, W, C) -> (H+2, W+2, C) with a zero border."""
    H, W, C = y.shape
    zc = jnp.zeros((H, 1, C), y.dtype)
    y = jnp.concatenate([zc, y, zc], axis=1)            # (H, W+2, C)
    zr = jnp.zeros((1, W + 2, C), y.dtype)
    return jnp.concatenate([zr, y, zr], axis=0)         # (H+2, W+2, C)


def encoding_kernel(x_ref, s0_ref, t0_ref, w0_ref, s1_ref, t1_ref, w1_ref,
                    o_ref):
    """One batch element per grid step.

    Refs:
      x_ref : (1, H, W, C)   input tile, true channel count (f32)
      s0/t0 : (1, C)         folded BatchNorm0 scale / shift (f32)
      w0/w1 : (Kp, Cp)       conv weights, im2col-packed (tap-major,
                             channel-minor) with the bias in row 9*C; bf16
      s1/t1 : (1, Cp)        folded BatchNorm1 scale / shift, zero-padded
      o_ref : (1, H, W, C)   output tile, true channel count
    """
    H, W, C = x_ref.shape[1], x_ref.shape[2], x_ref.shape[3]
    Kp, Cp = w0_ref.shape
    HW = H * W

    def conv3x3(y, w_ref):
        # y: (H, W, C) f32 conv input.  Build the (HW, Kp) im2col matrix as a
        # value (one cast to the MXU dtype), then a single fused GEMM with
        # f32 accumulation.  Column 9*C is all ones, so the bias row of the
        # packed weight adds the conv bias for free; the remaining padded
        # columns are zero (their weight rows are zero too).
        yp = _zero_pad_hw(y)                                  # (H+2, W+2, C)
        parts = []
        for dy in range(3):
            for dx in range(3):
                parts.append(yp[dy:dy + H, dx:dx + W, :].reshape(HW, C))
        parts.append(jnp.ones((HW, 1), jnp.float32))          # bias column
        pad_w = Kp - 9 * C - 1
        if pad_w > 0:
            parts.append(jnp.zeros((HW, pad_w), jnp.float32))
        col = jnp.concatenate(parts, axis=1).astype(w_ref.dtype)   # (HW, Kp)
        return jnp.dot(col, w_ref[...], preferred_element_type=jnp.float32)

    x = x_ref[0].astype(jnp.float32)                          # (H, W, C)

    # in_0 (BatchNorm2d, folded running stats) + LeakyReLU  (f32 VPU math).
    s0 = s0_ref[0].reshape(1, 1, C)
    t0 = t0_ref[0].reshape(1, 1, C)
    y = _leaky_relu(x * s0 + t0)

    # conv0 (3x3, stride 1, padding 1); bias via the GEMM ones column.
    z = conv3x3(y, w0_ref)                                    # (HW, Cp) f32

    # Dropout2d(p=0.5): identity in eval mode.
    # TODO(synk): training-mode stochastic channel dropout and batch-statistic
    # BatchNorm are not implemented (eval semantics only).

    # in_1 (BatchNorm2d, folded) + LeakyReLU, lane-dense on (HW, Cp).
    z = _leaky_relu(z * s1_ref[...] + t1_ref[...])

    # conv1 (3x3, stride 1, padding 1); bias via the GEMM ones column.
    out = conv3x3(z[:, :C].reshape(H, W, C), w1_ref)          # (HW, Cp) f32

    o_ref[0] = out[:, :C].reshape(H, W, C).astype(o_ref.dtype)


def _round_up(v, m):
    return (v + m - 1) // m * m


def fold_bn(gamma, beta, mean, var):
    scale = gamma / jnp.sqrt(var + BN_EPS)
    shift = beta - mean * scale
    return scale, shift


def encoding_forward(x_nhwc, bn0, w0_hwio, b0, bn1, w1_hwio, b1,
                     mxu_dtype=jnp.bfloat16):
    """bn* = (gamma, beta, running_mean, running_var); conv weights in HWIO."""
    N, H, W, C = x_nhwc.shape
    Cp = _round_up(C, 128)           # GEMM out-channel dim (lane-dense)
    Kp = _round_up(9 * C + 1, 128)   # im2col contraction dim (+1 bias column)

    s0, t0 = fold_bn(*bn0)
    s1, t1 = fold_bn(*bn1)

    def pack_w(w_hwio, bias):
        # (3,3,C,C) HWIO -> (9C, C) tap-major / in-channel-minor rows, append
        # the bias as row 9C (paired with the im2col ones column), zero-pad
        # to (Kp, Cp), cast to the MXU dtype.
        w2d = jnp.reshape(w_hwio, (9 * C, C))
        wb = jnp.concatenate([w2d, bias.reshape(1, C)], axis=0)
        wp = jnp.pad(wb, ((0, Kp - 9 * C - 1), (0, Cp - C)))
        return wp.astype(mxu_dtype)

    w0p = pack_w(w0_hwio, b0)
    w1p = pack_w(w1_hwio, b1)

    s0r = s0.reshape(1, C).astype(jnp.float32)
    t0r = t0.reshape(1, C).astype(jnp.float32)
    s1p = jnp.pad(s1.reshape(1, C), ((0, 0), (0, Cp - C))).astype(jnp.float32)
    t1p = jnp.pad(t1.reshape(1, C), ((0, 0), (0, Cp - C))).astype(jnp.float32)

    def const_spec(shape):
        nd = len(shape)
        return pl.BlockSpec(shape, lambda n, _nd=nd: (0,) * _nd)

    return pl.pallas_call(
        encoding_kernel,
        out_shape=jax.ShapeDtypeStruct((N, H, W, C), x_nhwc.dtype),
        grid=(N,),
        in_specs=[
            pl.BlockSpec((1, H, W, C), lambda n: (n, 0, 0, 0)),   # x
            const_spec((1, C)), const_spec((1, C)),               # BN0 s/t
            const_spec((Kp, Cp)),                                 # conv0 w+b
            const_spec((1, Cp)), const_spec((1, Cp)),             # BN1 s/t
            const_spec((Kp, Cp)),                                 # conv1 w+b
        ],
        out_specs=pl.BlockSpec((1, H, W, C), lambda n: (n, 0, 0, 0)),
        compiler_params=pltpu.CompilerParams(
            dimension_semantics=("parallel",),
            # 48 MiB is safe on every generation (v7x: 64 MiB physical);
            # raise toward ~100 MiB on v5e/v6e when running large H tiles.
            vmem_limit_bytes=48 * 1024 * 1024),
    )(x_nhwc, s0r, t0r, w0p, s1p, t1p, w1p)


def reference_nhwc(x, bn0, w0_hwio, b0, bn1, w1_hwio, b1):
    """Pure-JAX reference (eval-mode BN, identity dropout, f32 throughout)."""
    def bn(x, p):
        g, b, m, v = p
        return (x - m) / jnp.sqrt(v + BN_EPS) * g + b

    def conv(x, w, b):
        return lax.conv_general_dilated(
            x, w, window_strides=(1, 1), padding="SAME",
            dimension_numbers=("NHWC", "HWIO", "NHWC")) + b

    y = _leaky_relu(bn(x, bn0))
    y = conv(y, w0_hwio, b0)
    y = _leaky_relu(bn(y, bn1))
    y = conv(y, w1_hwio, b1)
    return y


if __name__ == "__main__":
    N, C, H, W = 2, 4, 16, 16   # output_channels = 4

    key = jax.random.PRNGKey(0)
    ks = jax.random.split(key, 13)

    # Input in PyTorch NCHW convention, transposed to NHWC for the kernel.
    x_nchw = jax.random.normal(ks[0], (N, C, H, W), jnp.float32)
    x_nhwc = jnp.transpose(x_nchw, (0, 2, 3, 1))

    # Conv params in PyTorch OIHW layout, transposed to HWIO.
    w0_oihw = jax.random.normal(ks[1], (C, C, 3, 3), jnp.float32) * 0.1
    b0 = jax.random.normal(ks[2], (C,), jnp.float32) * 0.1
    w1_oihw = jax.random.normal(ks[3], (C, C, 3, 3), jnp.float32) * 0.1
    b1 = jax.random.normal(ks[4], (C,), jnp.float32) * 0.1
    w0_hwio = jnp.transpose(w0_oihw, (2, 3, 1, 0))
    w1_hwio = jnp.transpose(w1_oihw, (2, 3, 1, 0))

    # BatchNorm2d params + running stats (deterministic, eval semantics).
    gamma0 = 1.0 + 0.1 * jax.random.normal(ks[5], (C,), jnp.float32)
    beta0 = 0.1 * jax.random.normal(ks[6], (C,), jnp.float32)
    mean0 = 0.1 * jax.random.normal(ks[7], (C,), jnp.float32)
    var0 = jax.random.uniform(ks[8], (C,), jnp.float32, 0.5, 1.5)
    gamma1 = 1.0 + 0.1 * jax.random.normal(ks[9], (C,), jnp.float32)
    beta1 = 0.1 * jax.random.normal(ks[10], (C,), jnp.float32)
    mean1 = 0.1 * jax.random.normal(ks[11], (C,), jnp.float32)
    var1 = jax.random.uniform(ks[12], (C,), jnp.float32, 0.5, 1.5)

    bn0 = (gamma0, beta0, mean0, var0)
    bn1 = (gamma1, beta1, mean1, var1)

    out = encoding_forward(x_nhwc, bn0, w0_hwio, b0, bn1, w1_hwio, b1)
    out = jax.block_until_ready(out)

    ref = reference_nhwc(x_nhwc, bn0, w0_hwio, b0, bn1, w1_hwio, b1)
    ref = jax.block_until_ready(ref)

    assert out.shape == (N, H, W, C)
    # bf16 MXU operands with f32 accumulation: allow small numerical drift
    # relative to the all-f32 reference.
    max_err = jnp.max(jnp.abs(out - ref))
    assert max_err < 5e-2, f"max abs err = {max_err}"

    print("KERNEL_OK")
</pallas_src>

<mosaic_0001>
module attributes {stable_mosaic.version = 11 : i64} {
  func.func @encoding_kernel(%arg0: i32, %arg1: memref<1x16x16x4xf32, #tpu.memory_space<vmem>>, %arg2: memref<1x4xf32, #tpu.memory_space<vmem>>, %arg3: memref<1x4xf32, #tpu.memory_space<vmem>>, %arg4: memref<128x128xbf16, #tpu.memory_space<vmem>>, %arg5: memref<1x128xf32, #tpu.memory_space<vmem>>, %arg6: memref<1x128xf32, #tpu.memory_space<vmem>>, %arg7: memref<128x128xbf16, #tpu.memory_space<vmem>>, %arg8: memref<1x16x16x4xf32, #tpu.memory_space<vmem>>) attributes {dimension_semantics = [#tpu.dimension_semantics<parallel>], iteration_bounds = array<i64: 2>, scalar_prefetch = 0 : i64, scratch_operands = 0 : i64, tpu.core_type = #tpu.core_type<tc>, window_params = [{transform_indices = @transform_0, window_bounds = array<i64: 1, 16, 16, 4>}, {pipeline_mode = #tpu.pipeline_mode<synchronous>, transform_indices = @transform_1, window_bounds = array<i64: 1, 4>}, {pipeline_mode = #tpu.pipeline_mode<synchronous>, transform_indices = @transform_2, window_bounds = array<i64: 1, 4>}, {pipeline_mode = #tpu.pipeline_mode<synchronous>, transform_indices = @transform_3, window_bounds = array<i64: 128, 128>}, {pipeline_mode = #tpu.pipeline_mode<synchronous>, transform_indices = @transform_4, window_bounds = array<i64: 1, 128>}, {pipeline_mode = #tpu.pipeline_mode<synchronous>, transform_indices = @transform_5, window_bounds = array<i64: 1, 128>}, {pipeline_mode = #tpu.pipeline_mode<synchronous>, transform_indices = @transform_6, window_bounds = array<i64: 128, 128>}, {transform_indices = @transform_7, window_bounds = array<i64: 1, 16, 16, 4>}]} {
    %c0 = arith.constant 0 : index
    %c0_0 = arith.constant 0 : index
    %c0_1 = arith.constant 0 : index
    %c0_2 = arith.constant 0 : index
    %0 = vector.load %arg1[%c0, %c0_0, %c0_1, %c0_2] : memref<1x16x16x4xf32, #tpu.memory_space<vmem>>, vector<1x16x16x4xf32>
    %1 = vector.shape_cast %0 : vector<1x16x16x4xf32> to vector<16x16x4xf32>
    %c0_3 = arith.constant 0 : index
    %c0_4 = arith.constant 0 : index
    %2 = vector.load %arg2[%c0_3, %c0_4] : memref<1x4xf32, #tpu.memory_space<vmem>>, vector<1x4xf32>
    %3 = vector.shape_cast %2 : vector<1x4xf32> to vector<4xf32>
    %4 = vector.shape_cast %3 : vector<4xf32> to vector<1x1x4xf32>
    %c0_5 = arith.constant 0 : index
    %c0_6 = arith.constant 0 : index
    %5 = vector.load %arg3[%c0_5, %c0_6] : memref<1x4xf32, #tpu.memory_space<vmem>>, vector<1x4xf32>
    %6 = vector.shape_cast %5 : vector<1x4xf32> to vector<4xf32>
    %7 = vector.shape_cast %6 : vector<4xf32> to vector<1x1x4xf32>
    %8 = vector.broadcast %4 : vector<1x1x4xf32> to vector<16x16x4xf32>
    %9 = arith.mulf %1, %8 : vector<16x16x4xf32>
    %10 = vector.broadcast %7 : vector<1x1x4xf32> to vector<16x16x4xf32>
    %11 = arith.addf %9, %10 : vector<16x16x4xf32>
    %cst = arith.constant 0.000000e+00 : f32
    %12 = vector.broadcast %cst : f32 to vector<16x16x4xf32>
    %13 = arith.cmpf oge, %11, %12 : vector<16x16x4xf32>
    %cst_7 = arith.constant 0.00999999977 : f32
    %14 = vector.broadcast %cst_7 : f32 to vector<16x16x4xf32>
    %15 = arith.mulf %14, %11 : vector<16x16x4xf32>
    %16 = arith.select %13, %11, %15 : vector<16x16x4xi1>, vector<16x16x4xf32>
    %cst_8 = arith.constant 0.000000e+00 : f32
    %17 = vector.broadcast %cst_8 : f32 to vector<16x1x4xf32>
    %18 = tpu.concatenate %17, %16, %17 in 1 : vector<16x1x4xf32>, vector<16x16x4xf32>, vector<16x1x4xf32> -> vector<16x18x4xf32>
    %cst_9 = arith.constant 0.000000e+00 : f32
    %19 = vector.broadcast %cst_9 : f32 to vector<1x18x4xf32>
    %20 = tpu.concatenate %19, %18, %19 in 0 : vector<1x18x4xf32>, vector<16x18x4xf32>, vector<1x18x4xf32> -> vector<18x18x4xf32>
    %21 = vector.extract_strided_slice %20 {offsets = [0, 0, 0], sizes = [16, 16, 4], strides = [1, 1, 1]} : vector<18x18x4xf32> to vector<16x16x4xf32>
    %22 = vector.shape_cast %21 : vector<16x16x4xf32> to vector<256x4xf32>
    %23 = vector.extract_strided_slice %20 {offsets = [0, 1, 0], sizes = [16, 16, 4], strides = [1, 1, 1]} : vector<18x18x4xf32> to vector<16x16x4xf32>
    %24 = vector.shape_cast %23 : vector<16x16x4xf32> to vector<256x4xf32>
    %25 = vector.extract_strided_slice %20 {offsets = [0, 2, 0], sizes = [16, 16, 4], strides = [1, 1, 1]} : vector<18x18x4xf32> to vector<16x16x4xf32>
    %26 = vector.shape_cast %25 : vector<16x16x4xf32> to vector<256x4xf32>
    %27 = vector.extract_strided_slice %20 {offsets = [1, 0, 0], sizes = [16, 16, 4], strides = [1, 1, 1]} : vector<18x18x4xf32> to vector<16x16x4xf32>
    %28 = vector.shape_cast %27 : vector<16x16x4xf32> to vector<256x4xf32>
    %29 = vector.extract_strided_slice %20 {offsets = [1, 1, 0], sizes = [16, 16, 4], strides = [1, 1, 1]} : vector<18x18x4xf32> to vector<16x16x4xf32>
    %30 = vector.shape_cast %29 : vector<16x16x4xf32> to vector<256x4xf32>
    %31 = vector.extract_strided_slice %20 {offsets = [1, 2, 0], sizes = [16, 16, 4], strides = [1, 1, 1]} : vector<18x18x4xf32> to vector<16x16x4xf32>
    %32 = vector.shape_cast %31 : vector<16x16x4xf32> to vector<256x4xf32>
    %33 = vector.extract_strided_slice %20 {offsets = [2, 0, 0], sizes = [16, 16, 4], strides = [1, 1, 1]} : vector<18x18x4xf32> to vector<16x16x4xf32>
    %34 = vector.shape_cast %33 : vector<16x16x4xf32> to vector<256x4xf32>
    %35 = vector.extract_strided_slice %20 {offsets = [2, 1, 0], sizes = [16, 16, 4], strides = [1, 1, 1]} : vector<18x18x4xf32> to vector<16x16x4xf32>
    %36 = vector.shape_cast %35 : vector<16x16x4xf32> to vector<256x4xf32>
    %37 = vector.extract_strided_slice %20 {offsets = [2, 2, 0], sizes = [16, 16, 4], strides = [1, 1, 1]} : vector<18x18x4xf32> to vector<16x16x4xf32>
    %38 = vector.shape_cast %37 : vector<16x16x4xf32> to vector<256x4xf32>
    %cst_10 = arith.constant 1.000000e+00 : f32
    %39 = vector.broadcast %cst_10 : f32 to vector<256x1xf32>
    %cst_11 = arith.constant 0.000000e+00 : f32
    %40 = vector.broadcast %cst_11 : f32 to vector<256x91xf32>
    %41 = tpu.concatenate %22, %24, %26, %28, %30, %32, %34, %36, %38, %39, %40 in 1 : vector<256x4xf32>, vector<256x4xf32>, vector<256x4xf32>, vector<256x4xf32>, vector<256x4xf32>, vector<256x4xf32>, vector<256x4xf32>, vector<256x4xf32>, vector<256x4xf32>, vector<256x1xf32>, vector<256x91xf32> -> vector<256x128xf32>
    %42 = arith.truncf %41 : vector<256x128xf32> to vector<256x128xbf16>
    %c0_12 = arith.constant 0 : index
    %c0_13 = arith.constant 0 : index
    %43 = vector.load %arg4[%c0_12, %c0_13] : memref<128x128xbf16, #tpu.memory_space<vmem>>, vector<128x128xbf16>
    %cst_14 = arith.constant dense<0.000000e+00> : vector<256x128xf32>
    %44 = tpu.matmul %42, %43, %cst_14 {dimension_numbers = #tpu.dot_dimension_numbers<[1], [0], [0], [1], [0, 0, 1, 1], [], []>} : vector<256x128xbf16>, vector<128x128xbf16>, vector<256x128xf32> -> vector<256x128xf32>
    %c0_15 = arith.constant 0 : index
    %c0_16 = arith.constant 0 : index
    %45 = vector.load %arg5[%c0_15, %c0_16] : memref<1x128xf32, #tpu.memory_space<vmem>>, vector<1x128xf32>
    %46 = vector.broadcast %45 : vector<1x128xf32> to vector<256x128xf32>
    %47 = arith.mulf %44, %46 : vector<256x128xf32>
    %c0_17 = arith.constant 0 : index
    %c0_18 = arith.constant 0 : index
    %48 = vector.load %arg6[%c0_17, %c0_18] : memref<1x128xf32, #tpu.memory_space<vmem>>, vector<1x128xf32>
    %49 = vector.broadcast %48 : vector<1x128xf32> to vector<256x128xf32>
    %50 = arith.addf %47, %49 : vector<256x128xf32>
    %cst_19 = arith.constant 0.000000e+00 : f32
    %51 = vector.broadcast %cst_19 : f32 to vector<256x128xf32>
    %52 = arith.cmpf oge, %50, %51 : vector<256x128xf32>
    %cst_20 = arith.constant 0.00999999977 : f32
    %53 = vector.broadcast %cst_20 : f32 to vector<256x128xf32>
    %54 = arith.mulf %53, %50 : vector<256x128xf32>
    %55 = arith.select %52, %50, %54 : vector<256x128xi1>, vector<256x128xf32>
    %56 = vector.extract_strided_slice %55 {offsets = [0, 0], sizes = [256, 4], strides = [1, 1]} : vector<256x128xf32> to vector<256x4xf32>
    %57 = vector.shape_cast %56 : vector<256x4xf32> to vector<16x16x4xf32>
    %cst_21 = arith.constant 0.000000e+00 : f32
    %58 = vector.broadcast %cst_21 : f32 to vector<16x1x4xf32>
    %59 = tpu.concatenate %58, %57, %58 in 1 : vector<16x1x4xf32>, vector<16x16x4xf32>, vector<16x1x4xf32> -> vector<16x18x4xf32>
    %cst_22 = arith.constant 0.000000e+00 : f32
    %60 = vector.broadcast %cst_22 : f32 to vector<1x18x4xf32>
    %61 = tpu.concatenate %60, %59, %60 in 0 : vector<1x18x4xf32>, vector<16x18x4xf32>, vector<1x18x4xf32> -> vector<18x18x4xf32>
    %62 = vector.extract_strided_slice %61 {offsets = [0, 0, 0], sizes = [16, 16, 4], strides = [1, 1, 1]} : vector<18x18x4xf32> to vector<16x16x4xf32>
    %63 = vector.shape_cast %62 : vector<16x16x4xf32> to vector<256x4xf32>
    %64 = vector.extract_strided_slice %61 {offsets = [0, 1, 0], sizes = [16, 16, 4], strides = [1, 1, 1]} : vector<18x18x4xf32> to vector<16x16x4xf32>
    %65 = vector.shape_cast %64 : vector<16x16x4xf32> to vector<256x4xf32>
    %66 = vector.extract_strided_slice %61 {offsets = [0, 2, 0], sizes = [16, 16, 4], strides = [1, 1, 1]} : vector<18x18x4xf32> to vector<16x16x4xf32>
    %67 = vector.shape_cast %66 : vector<16x16x4xf32> to vector<256x4xf32>
    %68 = vector.extract_strided_slice %61 {offsets = [1, 0, 0], sizes = [16, 16, 4], strides = [1, 1, 1]} : vector<18x18x4xf32> to vector<16x16x4xf32>
    %69 = vector.shape_cast %68 : vector<16x16x4xf32> to vector<256x4xf32>
    %70 = vector.extract_strided_slice %61 {offsets = [1, 1, 0], sizes = [16, 16, 4], strides = [1, 1, 1]} : vector<18x18x4xf32> to vector<16x16x4xf32>
    %71 = vector.shape_cast %70 : vector<16x16x4xf32> to vector<256x4xf32>
    %72 = vector.extract_strided_slice %61 {offsets = [1, 2, 0], sizes = [16, 16, 4], strides = [1, 1, 1]} : vector<18x18x4xf32> to vector<16x16x4xf32>
    %73 = vector.shape_cast %72 : vector<16x16x4xf32> to vector<256x4xf32>
    %74 = vector.extract_strided_slice %61 {offsets = [2, 0, 0], sizes = [16, 16, 4], strides = [1, 1, 1]} : vector<18x18x4xf32> to vector<16x16x4xf32>
    %75 = vector.shape_cast %74 : vector<16x16x4xf32> to vector<256x4xf32>
    %76 = vector.extract_strided_slice %61 {offsets = [2, 1, 0], sizes = [16, 16, 4], strides = [1, 1, 1]} : vector<18x18x4xf32> to vector<16x16x4xf32>
    %77 = vector.shape_cast %76 : vector<16x16x4xf32> to vector<256x4xf32>
    %78 = vector.extract_strided_slice %61 {offsets = [2, 2, 0], sizes = [16, 16, 4], strides = [1, 1, 1]} : vector<18x18x4xf32> to vector<16x16x4xf32>
    %79 = vector.shape_cast %78 : vector<16x16x4xf32> to vector<256x4xf32>
    %cst_23 = arith.constant 1.000000e+00 : f32
    %80 = vector.broadcast %cst_23 : f32 to vector<256x1xf32>
    %cst_24 = arith.constant 0.000000e+00 : f32
    %81 = vector.broadcast %cst_24 : f32 to vector<256x91xf32>
    %82 = tpu.concatenate %63, %65, %67, %69, %71, %73, %75, %77, %79, %80, %81 in 1 : vector<256x4xf32>, vector<256x4xf32>, vector<256x4xf32>, vector<256x4xf32>, vector<256x4xf32>, vector<256x4xf32>, vector<256x4xf32>, vector<256x4xf32>, vector<256x4xf32>, vector<256x1xf32>, vector<256x91xf32> -> vector<256x128xf32>
    %83 = arith.truncf %82 : vector<256x128xf32> to vector<256x128xbf16>
    %c0_25 = arith.constant 0 : index
    %c0_26 = arith.constant 0 : index
    %84 = vector.load %arg7[%c0_25, %c0_26] : memref<128x128xbf16, #tpu.memory_space<vmem>>, vector<128x128xbf16>
    %cst_27 = arith.constant dense<0.000000e+00> : vector<256x128xf32>
    %85 = tpu.matmul %83, %84, %cst_27 {dimension_numbers = #tpu.dot_dimension_numbers<[1], [0], [0], [1], [0, 0, 1, 1], [], []>} : vector<256x128xbf16>, vector<128x128xbf16>, vector<256x128xf32> -> vector<256x128xf32>
    %86 = vector.extract_strided_slice %85 {offsets = [0, 0], sizes = [256, 4], strides = [1, 1]} : vector<256x128xf32> to vector<256x4xf32>
    %87 = vector.shape_cast %86 : vector<256x4xf32> to vector<16x16x4xf32>
    %c0_28 = arith.constant 0 : index
    %c0_29 = arith.constant 0 : index
    %c0_30 = arith.constant 0 : index
    %c0_31 = arith.constant 0 : index
    %88 = vector.load %arg8[%c0_28, %c0_29, %c0_30, %c0_31] : memref<1x16x16x4xf32, #tpu.memory_space<vmem>>, vector<1x16x16x4xf32>
    %89 = vector.shape_cast %88 : vector<1x16x16x4xf32> to vector<16x16x4xf32>
    %90 = vector.shape_cast %87 : vector<16x16x4xf32> to vector<1x16x16x4xf32>
    tpu.vector_store %arg8[%c0_28, %c0_29, %c0_30, %c0_31], %90 {strides = array<i32>} : memref<1x16x16x4xf32, #tpu.memory_space<vmem>>, vector<1x16x16x4xf32>,
    return
  }
  func.func @transform_0(%arg0: i32) -> (i32, i32, i32, i32) {
    %c0_i32 = arith.constant 0 : i32
    %c0_i32_0 = arith.constant 0 : i32
    %c0_i32_1 = arith.constant 0 : i32
    %c0_i32_2 = arith.constant 0 : i32
    return %arg0, %c0_i32, %c0_i32_0, %c0_i32_1 : i32, i32, i32, i32
  }
  func.func @transform_1(%arg0: i32) -> (i32, i32) {
    %c0_i32 = arith.constant 0 : i32
    %c0_i32_0 = arith.constant 0 : i32
    %c0_i32_1 = arith.constant 0 : i32
    return %c0_i32, %c0_i32_0 : i32, i32
  }
  func.func @transform_2(%arg0: i32) -> (i32, i32) {
    %c0_i32 = arith.constant 0 : i32
    %c0_i32_0 = arith.constant 0 : i32
    %c0_i32_1 = arith.constant 0 : i32
    return %c0_i32, %c0_i32_0 : i32, i32
  }
  func.func @transform_3(%arg0: i32) -> (i32, i32) {
    %c0_i32 = arith.constant 0 : i32
    %c0_i32_0 = arith.constant 0 : i32
    %c0_i32_1 = arith.constant 0 : i32
    return %c0_i32, %c0_i32_0 : i32, i32
  }
  func.func @transform_4(%arg0: i32) -> (i32, i32) {
    %c0_i32 = arith.constant 0 : i32
    %c0_i32_0 = arith.constant 0 : i32
    %c0_i32_1 = arith.constant 0 : i32
    return %c0_i32, %c0_i32_0 : i32, i32
  }
  func.func @transform_5(%arg0: i32) -> (i32, i32) {
    %c0_i32 = arith.constant 0 : i32
    %c0_i32_0 = arith.constant 0 : i32
    %c0_i32_1 = arith.constant 0 : i32
    return %c0_i32, %c0_i32_0 : i32, i32
  }
  func.func @transform_6(%arg0: i32) -> (i32, i32) {
    %c0_i32 = arith.constant 0 : i32
    %c0_i32_0 = arith.constant 0 : i32
    %c0_i32_1 = arith.constant 0 : i32
    return %c0_i32, %c0_i32_0 : i32, i32
  }
  func.func @transform_7(%arg0: i32) -> (i32, i32, i32, i32) {
    %c0_i32 = arith.constant 0 : i32
    %c0_i32_0 = arith.constant 0 : i32
    %c0_i32_1 = arith.constant 0 : i32
    %c0_i32_2 = arith.constant 0 : i32
    return %arg0, %c0_i32, %c0_i32_0, %c0_i32_1 : i32, i32, i32, i32
  }
}

</mosaic_0001>

<llo_original>
// kernel: tpu_custom_call.1
$region0: #{tpu_custom_call.1}
  #allocation0 [shape = 'u32[]', space=smem, size = 0x4, offset = 0x4, fixed_abs, tag = 'smem constant byte address 0x4 - core index']
  #allocation1 [shape = 'u32[144,128]{1,0:T(1,128)}', space=vmem, size = 0x12000, scoped, tag = 'internal scratch']
  %s0 = inlined_call_operand.vmem [shape: f32[2,16,16,4], index: 0, kind: input, shape index: {}]
  %s1 = inlined_call_operand.vmem [shape: f32[1,4], index: 1, kind: input, shape index: {}]
  %s2 = inlined_call_operand.vmem [shape: f32[1,4], index: 2, kind: input, shape index: {}]
  %s3 = inlined_call_operand.vmem [shape: bf16[128,128], index: 3, kind: input, shape index: {}]
  %s4 = inlined_call_operand.vmem [shape: f32[1,128], index: 4, kind: input, shape index: {}]
  %s5 = inlined_call_operand.vmem [shape: f32[1,128], index: 5, kind: input, shape index: {}]
  %s6 = inlined_call_operand.vmem [shape: bf16[128,128], index: 6, kind: input, shape index: {}]
  %s7 = inlined_call_operand.vmem [shape: f32[2,16,16,4], index: 7, kind: output, shape index: {}]
  %s8 = sld [smem:[#allocation0]]
  $region61: #{tpu_custom_call.1} parent=0
    _
  %s10 = ssub.s32 1, %s8
  %s11 = scalar_select 0, %s10, %s8
  loop: start=0, step=1, limit=4
  $region2: #{tpu_custom_call.1} parent=0 // loop_pre_header
    _
  $region3: #{tpu_custom_call.1} parent=0 // loop_header
    %s13 = sphi 0, %s17
    %p14 = scmp.ge.s32.totalorder %s13, 4
    %s23 = sphi 0, %s25
    %s26 = sphi 0, %s23
    %s27 = sphi 0, %s26
    %s43 = sphi 0, %s27
    %s47 = sphi 0, %s47
    %s49 = sphi 0, %s47
    %s50 = sphi 0, %s49
    %s64 = sphi 0, %s50
    %s68 = sphi 0, %s68
    %s70 = sphi 0, %s68
    %s71 = sphi 0, %s70
    %s85 = sphi 0, %s71
    %s89 = sphi 0, %s89
    %s91 = sphi 0, %s89
    %s92 = sphi 0, %s91
    %s106 = sphi 0, %s92
    %s110 = sphi 0, %s110
    %s112 = sphi 0, %s110
    %s113 = sphi 0, %s112
    %s127 = sphi 0, %s113
    %s131 = sphi 0, %s131
    %s133 = sphi 0, %s131
    %s134 = sphi 0, %s133
    %s148 = sphi 0, %s134
    %s152 = sphi 0, %s152
    %s154 = sphi 0, %s152
    %s155 = sphi 0, %s154
    %s169 = sphi 0, %s155
    %s175 = sphi 0, %s177
    %s178 = sphi 0, %s175
    %s179 = sphi 0, %s178
    %s195 = sphi 0, %s179
  $region4: #{tpu_custom_call.1} parent=0 // loop_header_branch
    %16 = sbr.rel (%p14) target = $region8
  $region5: #{tpu_custom_call.1} parent=0 // loop_body
    %s18 = ssub.s32 %s13, 1
    %s19 = ssub.s32 %s13, 2
    %s20 = sadd.s32 %s13, 1
    %s21 = ssub.s32 %s13, %s20
    %p22 = scmp.eq.s32.totalorder %s21, 0
    %s24 = sadd.s32 %s23, 1
    %s25 = scalar_select %p22, %s23, %s24
    %p28 = pneg %p22
    %p29 = scmp.eq.s32.totalorder %s13, 1
    %p30 = por %p28, %p29
    %p31 = scmp.ne.s32.totalorder %s23, %s26
    %p32 = scmp.eq.s32.totalorder %s13, 0
    %p33 = por %p31, %p32
    %p34 = scmp.ne.s32.totalorder %s23, %s26
    %p35 = scmp.eq.s32.totalorder %s18, 1
    %p36 = por %p34, %p35
    %p37 = scmp.ne.s32.totalorder %s26, %s27
    %p38 = scmp.eq.s32.totalorder %s18, 0
    %p39 = por %p37, %p38
    %p40 = scmp.ne.s32.totalorder %s26, %s27
    %p41 = scmp.eq.s32.totalorder %s19, 1
    %p42 = por %p40, %p41
    %p44 = scmp.ne.s32.totalorder %s27, %s43
    %p45 = scmp.eq.s32.totalorder %s19, 0
    %p46 = por %p44, %p45
    %s48 = sadd.s32 %s47, 1
    %p51 = scmp.eq.s32.totalorder %s13, 1
    %p52 = scmp.ne.s32.totalorder %s47, %s49
    %p53 = scmp.eq.s32.totalorder %s13, 0
    %p54 = por %p52, %p53
    %p55 = scmp.ne.s32.totalorder %s47, %s49
    %p56 = scmp.eq.s32.totalorder %s18, 1
    %p57 = por %p55, %p56
    %p58 = scmp.ne.s32.totalorder %s49, %s50
    %p59 = scmp.eq.s32.totalorder %s18, 0
    %p60 = por %p58, %p59
    %p61 = scmp.ne.s32.totalorder %s49, %s50
    %p62 = scmp.eq.s32.totalorder %s19, 1
    %p63 = por %p61, %p62
    %p65 = scmp.ne.s32.totalorder %s50, %s64
    %p66 = scmp.eq.s32.totalorder %s19, 0
    %p67 = por %p65, %p66
    %s69 = sadd.s32 %s68, 1
    %p72 = scmp.eq.s32.totalorder %s13, 1
    %p73 = scmp.ne.s32.totalorder %s68, %s70
    %p74 = scmp.eq.s32.totalorder %s13, 0
    %p75 = por %p73, %p74
    %p76 = scmp.ne.s32.totalorder %s68, %s70
    %p77 = scmp.eq.s32.totalorder %s18, 1
    %p78 = por %p76, %p77
    %p79 = scmp.ne.s32.totalorder %s70, %s71
    %p80 = scmp.eq.s32.totalorder %s18, 0
    %p81 = por %p79, %p80
    %p82 = scmp.ne.s32.totalorder %s70, %s71
    %p83 = scmp.eq.s32.totalorder %s19, 1
    %p84 = por %p82, %p83
    %p86 = scmp.ne.s32.totalorder %s71, %s85
    %p87 = scmp.eq.s32.totalorder %s19, 0
    %p88 = por %p86, %p87
    %s90 = sadd.s32 %s89, 1
    %p93 = scmp.eq.s32.totalorder %s13, 1
    %p94 = scmp.ne.s32.totalorder %s89, %s91
    %p95 = scmp.eq.s32.totalorder %s13, 0
    %p96 = por %p94, %p95
    %p97 = scmp.ne.s32.totalorder %s89, %s91
    %p98 = scmp.eq.s32.totalorder %s18, 1
    %p99 = por %p97, %p98
    %p100 = scmp.ne.s32.totalorder %s91, %s92
    %p101 = scmp.eq.s32.totalorder %s18, 0
    %p102 = por %p100, %p101
    %p103 = scmp.ne.s32.totalorder %s91, %s92
    %p104 = scmp.eq.s32.totalorder %s19, 1
    %p105 = por %p103, %p104
    %p107 = scmp.ne.s32.totalorder %s92, %s106
    %p108 = scmp.eq.s32.totalorder %s19, 0
    %p109 = por %p107, %p108
    %s111 = sadd.s32 %s110, 1
    %p114 = scmp.eq.s32.totalorder %s13, 1
    %p115 = scmp.ne.s32.totalorder %s110, %s112
    %p116 = scmp.eq.s32.totalorder %s13, 0
    %p117 = por %p115, %p116
    %p118 = scmp.ne.s32.totalorder %s110, %s112
    %p119 = scmp.eq.s32.totalorder %s18, 1
    %p120 = por %p118, %p119
    %p121 = scmp.ne.s32.totalorder %s112, %s113
    %p122 = scmp.eq.s32.totalorder %s18, 0
    %p123 = por %p121, %p122
    %p124 = scmp.ne.s32.totalorder %s112, %s113
    %p125 = scmp.eq.s32.totalorder %s19, 1
    %p126 = por %p124, %p125
    %p128 = scmp.ne.s32.totalorder %s113, %s127
    %p129 = scmp.eq.s32.totalorder %s19, 0
    %p130 = por %p128, %p129
    %s132 = sadd.s32 %s131, 1
    %p135 = scmp.eq.s32.totalorder %s13, 1
    %p136 = scmp.ne.s32.totalorder %s131, %s133
    %p137 = scmp.eq.s32.totalorder %s13, 0
    %p138 = por %p136, %p137
    %p139 = scmp.ne.s32.totalorder %s131, %s133
    %p140 = scmp.eq.s32.totalorder %s18, 1
    %p141 = por %p139, %p140
    %p142 = scmp.ne.s32.totalorder %s133, %s134
    %p143 = scmp.eq.s32.totalorder %s18, 0
    %p144 = por %p142, %p143
    %p145 = scmp.ne.s32.totalorder %s133, %s134
    %p146 = scmp.eq.s32.totalorder %s19, 1
    %p147 = por %p145, %p146
    %p149 = scmp.ne.s32.totalorder %s134, %s148
    %p150 = scmp.eq.s32.totalorder %s19, 0
    %p151 = por %p149, %p150
    %s153 = sadd.s32 %s152, 1
    %p156 = scmp.eq.s32.totalorder %s13, 1
    %p157 = scmp.ne.s32.totalorder %s152, %s154
    %p158 = scmp.eq.s32.totalorder %s13, 0
    %p159 = por %p157, %p158
    %p160 = scmp.ne.s32.totalorder %s152, %s154
    %p161 = scmp.eq.s32.totalorder %s18, 1
    %p162 = por %p160, %p161
    %p163 = scmp.ne.s32.totalorder %s154, %s155
    %p164 = scmp.eq.s32.totalorder %s18, 0
    %p165 = por %p163, %p164
    %p166 = scmp.ne.s32.totalorder %s154, %s155
    %p167 = scmp.eq.s32.totalorder %s19, 1
    %p168 = por %p166, %p167
    %p170 = scmp.ne.s32.totalorder %s155, %s169
    %p171 = scmp.eq.s32.totalorder %s19, 0
    %p172 = por %p170, %p171
    %s173 = ssub.s32 %s13, %s20
    %p174 = scmp.eq.s32.totalorder %s173, 0
    %s176 = sadd.s32 %s175, 1
    %s177 = scalar_select %p174, %s175, %s176
    %p180 = pneg %p174
    %p181 = scmp.eq.s32.totalorder %s13, 1
    %p182 = por %p180, %p181
    %p183 = scmp.ne.s32.totalorder %s175, %s178
    %p184 = scmp.eq.s32.totalorder %s13, 0
    %p185 = por %p183, %p184
    %p186 = scmp.ne.s32.totalorder %s175, %s178
    %p187 = scmp.eq.s32.totalorder %s18, 1
    %p188 = por %p186, %p187
    %p189 = scmp.ne.s32.totalorder %s178, %s179
    %p190 = scmp.eq.s32.totalorder %s18, 0
    %p191 = por %p189, %p190
    %p192 = scmp.ne.s32.totalorder %s178, %s179
    %p193 = scmp.eq.s32.totalorder %s19, 1
    %p194 = por %p192, %p193
    %p196 = scmp.ne.s32.totalorder %s179, %s195
    %p197 = scmp.eq.s32.totalorder %s19, 0
    %p198 = por %p196, %p197
    %p199 = scmp.le.s32.totalorder 1, %s13
    %p200 = scmp.lt.s32.totalorder %s13, 3
    %p201 = pnand %p199, %p200
    %p202 = pneg %p201
    // Predicated region
    $region9: #{tpu_custom_call.1} parent=5 // pred_check
      _
    $region10: #{tpu_custom_call.1} parent=5 // pred_check_branch
      %204 = sbr.rel (%p201) target = $region12
    $region11: #{tpu_custom_call.1} parent=5 // pred_region
      %s205 = ssub.s32 %s13, 1
      // Predicated region
      $region13: #{tpu_custom_call.1} parent=11 // pred_check
        %p206 = pneg %p60
      $region14: #{tpu_custom_call.1} parent=11 // pred_check_branch
        %208 = sbr.rel (%p206) target = $region16
      $region15: #{tpu_custom_call.1} parent=11 // pred_region
        _
      $region16: #{tpu_custom_call.1} parent=11 // pred_fallthru
        _
      // Predicated region
      $region17: #{tpu_custom_call.1} parent=11 // pred_check
        %p209 = pneg %p81
      $region18: #{tpu_custom_call.1} parent=11 // pred_check_branch
        %211 = sbr.rel (%p209) target = $region20
      $region19: #{tpu_custom_call.1} parent=11 // pred_region
        _
      $region20: #{tpu_custom_call.1} parent=11 // pred_fallthru
        _
      // Predicated region
      $region21: #{tpu_custom_call.1} parent=11 // pred_check
        %p212 = pneg %p102
      $region22: #{tpu_custom_call.1} parent=11 // pred_check_branch
        %214 = sbr.rel (%p212) target = $region24
      $region23: #{tpu_custom_call.1} parent=11 // pred_region
        _
      $region24: #{tpu_custom_call.1} parent=11 // pred_fallthru
        _
      // Predicated region
      $region25: #{tpu_custom_call.1} parent=11 // pred_check
        %p215 = pneg %p123
      $region26: #{tpu_custom_call.1} parent=11 // pred_check_branch
        %217 = sbr.rel (%p215) target = $region28
      $region27: #{tpu_custom_call.1} parent=11 // pred_region
        _
      $region28: #{tpu_custom_call.1} parent=11 // pred_fallthru
        _
      // Predicated region
      $region29: #{tpu_custom_call.1} parent=11 // pred_check
        %p218 = pneg %p144
      $region30: #{tpu_custom_call.1} parent=11 // pred_check_branch
        %220 = sbr.rel (%p218) target = $region32
      $region31: #{tpu_custom_call.1} parent=11 // pred_region
        _
      $region32: #{tpu_custom_call.1} parent=11 // pred_fallthru
        _
      // Predicated region
      $region33: #{tpu_custom_call.1} parent=11 // pred_check
        %p221 = pneg %p165
      $region34: #{tpu_custom_call.1} parent=11 // pred_check_branch
        %223 = sbr.rel (%p221) target = $region36
      $region35: #{tpu_custom_call.1} parent=11 // pred_region
        _
      $region36: #{tpu_custom_call.1} parent=11 // pred_fallthru
        _
    $region12: #{tpu_custom_call.1} parent=5 // pred_fallthru
      _
    %p224 = scmp.lt.s32.totalorder %s13, 2
    // Predicated region
    $region37: #{tpu_custom_call.1} parent=5 // pred_check
      %p225 = pneg %p224
    $region38: #{tpu_custom_call.1} parent=5 // pred_check_branch
      %227 = sbr.rel (%p225) target = $region40
    $region39: #{tpu_custom_call.1} parent=5 // pred_region
      // Predicated region
      $region41: #{tpu_custom_call.1} parent=39 // pred_check
        %p228 = pneg %p33
      $region42: #{tpu_custom_call.1} parent=39 // pred_check_branch
        %230 = sbr.rel (%p228) target = $region44
      $region43: #{tpu_custom_call.1} parent=39 // pred_region
        %p231 = scmp.lt.s32.totalorder %s13, 1
        %s232 = scalar_select %p231, %s13, 1
        %s233 = smul.addr %s232, 32
        %s234 = smul.addr %s233, 8
        %s235 = scalar_lea.vmem %s0, %s234
      $region44: #{tpu_custom_call.1} parent=39 // pred_fallthru
        _
    $region40: #{tpu_custom_call.1} parent=5 // pred_fallthru
      _
    %p236 = scmp.le.s32.totalorder 1, %s13
    %p237 = scmp.lt.s32.totalorder %s13, 3
    %p238 = pnand %p236, %p237
    %p239 = pneg %p238
    // Predicated region
    $region45: #{tpu_custom_call.1} parent=5 // pred_check
      _
    $region46: #{tpu_custom_call.1} parent=5 // pred_check_branch
      %241 = sbr.rel (%p238) target = $region48
    $region47: #{tpu_custom_call.1} parent=5 // pred_region
      %s242 = ssub.s32 %s13, 1
      %p243 = scmp.lt.s32.totalorder %s18, 1
      %s244 = scalar_select %p243, %s18, 1
      %s245 = smul.addr %s244, 32
      %s246 = smul.addr %s245, 8
      %s247 = scalar_lea.vmem %s0, %s246
      %p248 = pneg %p39
      %p249 = pneg %p36
      %p250 = pneg %p60
      %p251 = pneg %p57
      %p252 = pneg %p81
      %p253 = pneg %p78
      %p254 = pneg %p102
      %p255 = pneg %p99
      %p256 = pneg %p123
      %p257 = pneg %p120
      %p258 = pneg %p144
      %p259 = pneg %p141
      %p260 = pneg %p165
      %p261 = pneg %p162
      %p262 = pneg %p191
      %p263 = pneg %p188
      %p264 = scmp.lt.s32.totalorder %s18, 1
      %s265 = scalar_select %p264, %s18, 1
      %s266 = smul.addr %s265, 32
      %s267 = smul.addr %s266, 8
      %s268 = scalar_lea.vmem %s7, %s267
      %p269 = scmp.lt.s32.totalorder %s18, 1
      %s270 = scalar_select %p269, %s18, 1
      %s271 = smul.addr %s270, 32
      %s272 = smul.addr %s271, 8
      %s273 = scalar_lea.vmem %s0, %s272
      %p274 = scmp.lt.s32.totalorder %s18, 1
      %s275 = scalar_select %p274, %s18, 1
      %s276 = smul.addr %s275, 32
      %s277 = smul.addr %s276, 8
      %s278 = scalar_lea.vmem %s7, %s277
      %v280 = vld [vmem:[%s273] sm:$0xff]
      %v281 = vld [vmem:[%s273 + $0x8] sm:$0xff]
      %v282 = vld [vmem:[%s273 + $0x10] sm:$0xff]
      %v283 = vld [vmem:[%s273 + $0x18] sm:$0xff]
      %v284 = vld [vmem:[%s273 + $0x20] sm:$0xff]
      %v285 = vld [vmem:[%s273 + $0x28] sm:$0xff]
      %v286 = vld [vmem:[%s273 + $0x30] sm:$0xff]
      %v287 = vld [vmem:[%s273 + $0x38] sm:$0xff]
      %v288 = vld [vmem:[%s273 + $0x40] sm:$0xff]
      %v289 = vld [vmem:[%s273 + $0x48] sm:$0xff]
      %v290 = vld [vmem:[%s273 + $0x50] sm:$0xff]
      %v291 = vld [vmem:[%s273 + $0x58] sm:$0xff]
      %v292 = vld [vmem:[%s273 + $0x60] sm:$0xff]
      %v293 = vld [vmem:[%s273 + $0x68] sm:$0xff]
      %v294 = vld [vmem:[%s273 + $0x70] sm:$0xff]
      %v295 = vld [vmem:[%s273 + $0x78] sm:$0xff]
      %v296 = vld [vmem:[%s273 + $0x80] sm:$0xff]
      %v297 = vld [vmem:[%s273 + $0x88] sm:$0xff]
      %v298 = vld [vmem:[%s273 + $0x90] sm:$0xff]
      %v299 = vld [vmem:[%s273 + $0x98] sm:$0xff]
      %v300 = vld [vmem:[%s273 + $0xa0] sm:$0xff]
      %v301 = vld [vmem:[%s273 + $0xa8] sm:$0xff]
      %v302 = vld [vmem:[%s273 + $0xb0] sm:$0xff]
      %v303 = vld [vmem:[%s273 + $0xb8] sm:$0xff]
      %v304 = vld [vmem:[%s273 + $0xc0] sm:$0xff]
      %v305 = vld [vmem:[%s273 + $0xc8] sm:$0xff]
      %v306 = vld [vmem:[%s273 + $0xd0] sm:$0xff]
      %v307 = vld [vmem:[%s273 + $0xd8] sm:$0xff]
      %v308 = vld [vmem:[%s273 + $0xe0] sm:$0xff]
      %v309 = vld [vmem:[%s273 + $0xe8] sm:$0xff]
      %v310 = vld [vmem:[%s273 + $0xf0] sm:$0xff]
      %v311 = vld [vmem:[%s273 + $0xf8] sm:$0xff]
      %v312 = vld [vmem:[%s1] sm:$0x1]
      %v313 = vld [vmem:[%s2] sm:$0x1]
      %v315 = vlaneseq
      %v316 = vshrl.u32 %v315, 7
      %v317 = vsub.s32 0, %v316
      %v318 = vrot.slane %v312, %v317
      %v320 = vmul.f32 %v280, %v318
      %v321 = vmul.f32 %v281, %v318
      %v322 = vmul.f32 %v282, %v318
      %v323 = vmul.f32 %v283, %v318
      %v324 = vmul.f32 %v284, %v318
      %v325 = vmul.f32 %v285, %v318
      %v326 = vmul.f32 %v286, %v318
      %v327 = vmul.f32 %v287, %v318
      %v328 = vmul.f32 %v288, %v318
      %v329 = vmul.f32 %v289, %v318
      %v330 = vmul.f32 %v290, %v318
      %v331 = vmul.f32 %v291, %v318
      %v332 = vmul.f32 %v292, %v318
      %v333 = vmul.f32 %v293, %v318
      %v334 = vmul.f32 %v294, %v318
      %v335 = vmul.f32 %v295, %v318
      %v336 = vmul.f32 %v296, %v318
      %v337 = vmul.f32 %v297, %v318
      %v338 = vmul.f32 %v298, %v318
      %v339 = vmul.f32 %v299, %v318
      %v340 = vmul.f32 %v300, %v318
      %v341 = vmul.f32 %v301, %v318
      %v342 = vmul.f32 %v302, %v318
      %v343 = vmul.f32 %v303, %v318
      %v344 = vmul.f32 %v304, %v318
      %v345 = vmul.f32 %v305, %v318
      %v346 = vmul.f32 %v306, %v318
      %v347 = vmul.f32 %v307, %v318
      %v348 = vmul.f32 %v308, %v318
      %v349 = vmul.f32 %v309, %v318
      %v350 = vmul.f32 %v310, %v318
      %v351 = vmul.f32 %v311, %v318
      %v353 = vlaneseq
      %v354 = vshrl.u32 %v353, 7
      %v355 = vsub.s32 0, %v354
      %v356 = vrot.slane %v313, %v355
      %v358 = vadd.f32 %v320, %v356
      %v359 = vadd.f32 %v321, %v356
      %v360 = vadd.f32 %v322, %v356
      %v361 = vadd.f32 %v323, %v356
      %v362 = vadd.f32 %v324, %v356
      %v363 = vadd.f32 %v325, %v356
      %v364 = vadd.f32 %v326, %v356
      %v365 = vadd.f32 %v327, %v356
      %v366 = vadd.f32 %v328, %v356
      %v367 = vadd.f32 %v329, %v356
      %v368 = vadd.f32 %v330, %v356
      %v369 = vadd.f32 %v331, %v356
      %v370 = vadd.f32 %v332, %v356
      %v371 = vadd.f32 %v333, %v356
      %v372 = vadd.f32 %v334, %v356
      %v373 = vadd.f32 %v335, %v356
      %v374 = vadd.f32 %v336, %v356
      %v375 = vadd.f32 %v337, %v356
      %v376 = vadd.f32 %v338, %v356
      %v377 = vadd.f32 %v339, %v356
      %v378 = vadd.f32 %v340, %v356
      %v379 = vadd.f32 %v341, %v356
      %v380 = vadd.f32 %v342, %v356
      %v381 = vadd.f32 %v343, %v356
      %v382 = vadd.f32 %v344, %v356
      %v383 = vadd.f32 %v345, %v356
      %v384 = vadd.f32 %v346, %v356
      %v385 = vadd.f32 %v347, %v356
      %v386 = vadd.f32 %v348, %v356
      %v387 = vadd.f32 %v349, %v356
      %v388 = vadd.f32 %v350, %v356
      %v389 = vadd.f32 %v351, %v356
      %vm390 = vcmp.ge.f32.partialorder %v358, 0.0
      %vm391 = vcmp.ge.f32.partialorder %v359, 0.0
      %vm392 = vcmp.ge.f32.partialorder %v360, 0.0
      %vm393 = vcmp.ge.f32.partialorder %v361, 0.0
      %vm394 = vcmp.ge.f32.partialorder %v362, 0.0
      %vm395 = vcmp.ge.f32.partialorder %v363, 0.0
      %vm396 = vcmp.ge.f32.partialorder %v364, 0.0
      %vm397 = vcmp.ge.f32.partialorder %v365, 0.0
      %vm398 = vcmp.ge.f32.partialorder %v366, 0.0
      %vm399 = vcmp.ge.f32.partialorder %v367, 0.0
      %vm400 = vcmp.ge.f32.partialorder %v368, 0.0
      %vm401 = vcmp.ge.f32.partialorder %v369, 0.0
      %vm402 = vcmp.ge.f32.partialorder %v370, 0.0
      %vm403 = vcmp.ge.f32.partialorder %v371, 0.0
      %vm404 = vcmp.ge.f32.partialorder %v372, 0.0
      %vm405 = vcmp.ge.f32.partialorder %v373, 0.0
      %vm406 = vcmp.ge.f32.partialorder %v374, 0.0
      %vm407 = vcmp.ge.f32.partialorder %v375, 0.0
      %vm408 = vcmp.ge.f32.partialorder %v376, 0.0
      %vm409 = vcmp.ge.f32.partialorder %v377, 0.0
      %vm410 = vcmp.ge.f32.partialorder %v378, 0.0
      %vm411 = vcmp.ge.f32.partialorder %v379, 0.0
      %vm412 = vcmp.ge.f32.partialorder %v380, 0.0
      %vm413 = vcmp.ge.f32.partialorder %v381, 0.0
      %vm414 = vcmp.ge.f32.partialorder %v382, 0.0
      %vm415 = vcmp.ge.f32.partialorder %v383, 0.0
      %vm416 = vcmp.ge.f32.partialorder %v384, 0.0
      %vm417 = vcmp.ge.f32.partialorder %v385, 0.0
      %vm418 = vcmp.ge.f32.partialorder %v386, 0.0
      %vm419 = vcmp.ge.f32.partialorder %v387, 0.0
      %vm420 = vcmp.ge.f32.partialorder %v388, 0.0
      %vm421 = vcmp.ge.f32.partialorder %v389, 0.0
      %v422 = vmul.f32 %v358, 0.01
      %v423 = vmul.f32 %v359, 0.01
      %v424 = vmul.f32 %v360, 0.01
      %v425 = vmul.f32 %v361, 0.01
      %v426 = vmul.f32 %v362, 0.01
      %v427 = vmul.f32 %v363, 0.01
      %v428 = vmul.f32 %v364, 0.01
      %v429 = vmul.f32 %v365, 0.01
      %v430 = vmul.f32 %v366, 0.01
      %v431 = vmul.f32 %v367, 0.01
      %v432 = vmul.f32 %v368, 0.01
      %v433 = vmul.f32 %v369, 0.01
      %v434 = vmul.f32 %v370, 0.01
      %v435 = vmul.f32 %v371, 0.01
      %v436 = vmul.f32 %v372, 0.01
      %v437 = vmul.f32 %v373, 0.01
      %v438 = vmul.f32 %v374, 0.01
      %v439 = vmul.f32 %v375, 0.01
      %v440 = vmul.f32 %v376, 0.01
      %v441 = vmul.f32 %v377, 0.01
      %v442 = vmul.f32 %v378, 0.01
      %v443 = vmul.f32 %v379, 0.01
      %v444 = vmul.f32 %v380, 0.01
      %v445 = vmul.f32 %v381, 0.01
      %v446 = vmul.f32 %v382, 0.01
      %v447 = vmul.f32 %v383, 0.01
      %v448 = vmul.f32 %v384, 0.01
      %v449 = vmul.f32 %v385, 0.01
      %v450 = vmul.f32 %v386, 0.01
      %v451 = vmul.f32 %v387, 0.01
      %v452 = vmul.f32 %v388, 0.01
      %v453 = vmul.f32 %v389, 0.01
      %v454 = vsel %vm390, %v358, %v422
      %v455 = vsel %vm391, %v359, %v423
      %v456 = vsel %vm392, %v360, %v424
      %v457 = vsel %vm393, %v361, %v425
      %v458 = vsel %vm394, %v362, %v426
      %v459 = vsel %vm395, %v363, %v427
      %v460 = vsel %vm396, %v364, %v428
      %v461 = vsel %vm397, %v365, %v429
      %v462 = vsel %vm398, %v366, %v430
      %v463 = vsel %vm399, %v367, %v431
      %v464 = vsel %vm400, %v368, %v432
      %v465 = vsel %vm401, %v369, %v433
      %v466 = vsel %vm402, %v370, %v434
      %v467 = vsel %vm403, %v371, %v435
      %v468 = vsel %vm404, %v372, %v436
      %v469 = vsel %vm405, %v373, %v437
      %v470 = vsel %vm406, %v374, %v438
      %v471 = vsel %vm407, %v375, %v439
      %v472 = vsel %vm408, %v376, %v440
      %v473 = vsel %vm409, %v377, %v441
      %v474 = vsel %vm410, %v378, %v442
      %v475 = vsel %vm411, %v379, %v443
      %v476 = vsel %vm412, %v380, %v444
      %v477 = vsel %vm413, %v381, %v445
      %v478 = vsel %vm414, %v382, %v446
      %v479 = vsel %vm415, %v383, %v447
      %v480 = vsel %vm416, %v384, %v448
      %v481 = vsel %vm417, %v385, %v449
      %v482 = vsel %vm418, %v386, %v450
      %v483 = vsel %vm419, %v387, %v451
      %v484 = vsel %vm420, %v388, %v452
      %v485 = vsel %vm421, %v389, %v453
      %vm518 = vcmask 1040384
      %v519 = vrot.slane %v454, 7
      %v520 = vrot.slane %v455, 7
      %v521 = vsel %vm518, %v519, %v520
      %v522 = vrot.slane %v456, 7
      %v523 = vrot.slane %v457, 7
      %v524 = vsel %vm518, %v522, %v523
      %v525 = vrot.slane %v458, 7
      %v526 = vrot.slane %v459, 7
      %v527 = vsel %vm518, %v525, %v526
      %v528 = vrot.slane %v460, 7
      %v529 = vrot.slane %v461, 7
      %v530 = vsel %vm518, %v528, %v529
      %v531 = vrot.slane %v462, 7
      %v532 = vrot.slane %v463, 7
      %v533 = vsel %vm518, %v531, %v532
      %v534 = vrot.slane %v464, 7
      %v535 = vrot.slane %v465, 7
      %v536 = vsel %vm518, %v534, %v535
      %v537 = vrot.slane %v466, 7
      %v538 = vrot.slane %v467, 7
      %v539 = vsel %vm518, %v537, %v538
      %v540 = vrot.slane %v468, 7
      %v541 = vrot.slane %v469, 7
      %v542 = vsel %vm518, %v540, %v541
      %v543 = vrot.slane %v470, 7
      %v544 = vrot.slane %v471, 7
      %v545 = vsel %vm518, %v543, %v544
      %v546 = vrot.slane %v472, 7
      %v547 = vrot.slane %v473, 7
      %v548 = vsel %vm518, %v546, %v547
      %v549 = vrot.slane %v474, 7
      %v550 = vrot.slane %v475, 7
      %v551 = vsel %vm518, %v549, %v550
      %v552 = vrot.slane %v476, 7
      %v553 = vrot.slane %v477, 7
      %v554 = vsel %vm518, %v552, %v553
      %v555 = vrot.slane %v478, 7
      %v556 = vrot.slane %v479, 7
      %v557 = vsel %vm518, %v555, %v556
      %v558 = vrot.slane %v480, 7
      %v559 = vrot.slane %v481, 7
      %v560 = vsel %vm518, %v558, %v559
      %v561 = vrot.slane %v482, 7
      %v562 = vrot.slane %v483, 7
      %v563 = vsel %vm518, %v561, %v562
      %v564 = vrot.slane %v484, 7
      %v565 = vrot.slane %v485, 7
      %v566 = vsel %vm518, %v564, %v565
      %v614 = vsel %vm518, 0.0, %v519
      %v615 = vsel %vm518, 0.0, %v522
      %v616 = vsel %vm518, 0.0, %v525
      %v617 = vsel %vm518, 0.0, %v528
      %v618 = vsel %vm518, 0.0, %v531
      %v619 = vsel %vm518, 0.0, %v534
      %v620 = vsel %vm518, 0.0, %v537
      %v621 = vsel %vm518, 0.0, %v540
      %v622 = vsel %vm518, 0.0, %v543
      %v623 = vsel %vm518, 0.0, %v546
      %v624 = vsel %vm518, 0.0, %v549
      %v625 = vsel %vm518, 0.0, %v552
      %v626 = vsel %vm518, 0.0, %v555
      %v627 = vsel %vm518, 0.0, %v558
      %v628 = vsel %vm518, 0.0, %v561
      %v629 = vsel %vm518, 0.0, %v564
      %v630 = vsel %vm518, %v520, 0.0
      %v631 = vsel %vm518, %v523, 0.0
      %v632 = vsel %vm518, %v526, 0.0
      %v633 = vsel %vm518, %v529, 0.0
      %v634 = vsel %vm518, %v532, 0.0
      %v635 = vsel %vm518, %v535, 0.0
      %v636 = vsel %vm518, %v538, 0.0
      %v637 = vsel %vm518, %v541, 0.0
      %v638 = vsel %vm518, %v544, 0.0
      %v639 = vsel %vm518, %v547, 0.0
      %v640 = vsel %vm518, %v550, 0.0
      %v641 = vsel %vm518, %v553, 0.0
      %v642 = vsel %vm518, %v556, 0.0
      %v643 = vsel %vm518, %v559, 0.0
      %v644 = vsel %vm518, %v562, 0.0
      %v645 = vsel %vm518, %v565, 0.0
      %vm677 = vcmask 1046528
      %v678 = vrot.slane 0.0, 1
      %v679 = vsel %vm677, %v678, %v678
      %v680 = vrot.slane %v614, 1
      %v681 = vrot.slane %v521, 1
      %v682 = vsel %vm677, %v680, %v681
      %v683 = vrot.slane %v630, 1
      %v684 = vsel %vm677, %v681, %v683
      %v685 = vrot.slane %v615, 1
      %v686 = vrot.slane %v524, 1
      %v687 = vsel %vm677, %v685, %v686
      %v688 = vrot.slane %v631, 1
      %v689 = vsel %vm677, %v686, %v688
      %v690 = vrot.slane %v616, 1
      %v691 = vrot.slane %v527, 1
      %v692 = vsel %vm677, %v690, %v691
      %v693 = vrot.slane %v632, 1
      %v694 = vsel %vm677, %v691, %v693
      %v695 = vrot.slane %v617, 1
      %v696 = vrot.slane %v530, 1
      %v697 = vsel %vm677, %v695, %v696
      %v698 = vrot.slane %v633, 1
      %v699 = vsel %vm677, %v696, %v698
      %v700 = vrot.slane %v618, 1
      %v701 = vrot.slane %v533, 1
      %v702 = vsel %vm677, %v700, %v701
      %v703 = vrot.slane %v634, 1
      %v704 = vsel %vm677, %v701, %v703
      %v705 = vrot.slane %v619, 1
      %v706 = vrot.slane %v536, 1
      %v707 = vsel %vm677, %v705, %v706
      %v708 = vrot.slane %v635, 1
      %v709 = vsel %vm677, %v706, %v708
      %v710 = vrot.slane %v620, 1
      %v711 = vrot.slane %v539, 1
      %v712 = vsel %vm677, %v710, %v711
      %v713 = vrot.slane %v636, 1
      %v714 = vsel %vm677, %v711, %v713
      %v715 = vrot.slane %v621, 1
      %v716 = vrot.slane %v542, 1
      %v717 = vsel %vm677, %v715, %v716
      %v718 = vrot.slane %v637, 1
      %v719 = vsel %vm677, %v716, %v718
      %v720 = vrot.slane %v622, 1
      %v721 = vrot.slane %v545, 1
      %v722 = vsel %vm677, %v720, %v721
      %v723 = vrot.slane %v638, 1
      %v724 = vsel %vm677, %v721, %v723
      %v725 = vrot.slane %v623, 1
      %v726 = vrot.slane %v548, 1
      %v727 = vsel %vm677, %v725, %v726
      %v728 = vrot.slane %v639, 1
      %v729 = vsel %vm677, %v726, %v728
      %v730 = vrot.slane %v624, 1
      %v731 = vrot.slane %v551, 1
      %v732 = vsel %vm677, %v730, %v731
      %v733 = vrot.slane %v640, 1
      %v734 = vsel %vm677, %v731, %v733
      %v735 = vrot.slane %v625, 1
      %v736 = vrot.slane %v554, 1
      %v737 = vsel %vm677, %v735, %v736
      %v738 = vrot.slane %v641, 1
      %v739 = vsel %vm677, %v736, %v738
      %v740 = vrot.slane %v626, 1
      %v741 = vrot.slane %v557, 1
      %v742 = vsel %vm677, %v740, %v741
      %v743 = vrot.slane %v642, 1
      %v744 = vsel %vm677, %v741, %v743
      %v745 = vrot.slane %v627, 1
      %v746 = vrot.slane %v560, 1
      %v747 = vsel %vm677, %v745, %v746
      %v748 = vrot.slane %v643, 1
      %v749 = vsel %vm677, %v746, %v748
      %v750 = vrot.slane %v628, 1
      %v751 = vrot.slane %v563, 1
      %v752 = vsel %vm677, %v750, %v751
      %v753 = vrot.slane %v644, 1
      %v754 = vsel %vm677, %v751, %v753
      %vm755 = vcmask 1045504
      %v756 = vrot.slane 0.0, 2
      %v757 = vsel %vm755, %v756, %v756
      %v758 = vrot.slane %v614, 2
      %v759 = vrot.slane %v521, 2
      %v760 = vsel %vm755, %v758, %v759
      %v761 = vrot.slane %v630, 2
      %v762 = vsel %vm755, %v759, %v761
      %v763 = vrot.slane %v615, 2
      %v764 = vrot.slane %v524, 2
      %v765 = vsel %vm755, %v763, %v764
      %v766 = vrot.slane %v631, 2
      %v767 = vsel %vm755, %v764, %v766
      %v768 = vrot.slane %v616, 2
      %v769 = vrot.slane %v527, 2
      %v770 = vsel %vm755, %v768, %v769
      %v771 = vrot.slane %v632, 2
      %v772 = vsel %vm755, %v769, %v771
      %v773 = vrot.slane %v617, 2
      %v774 = vrot.slane %v530, 2
      %v775 = vsel %vm755, %v773, %v774
      %v776 = vrot.slane %v633, 2
      %v777 = vsel %vm755, %v774, %v776
      %v778 = vrot.slane %v618, 2
      %v779 = vrot.slane %v533, 2
      %v780 = vsel %vm755, %v778, %v779
      %v781 = vrot.slane %v634, 2
      %v782 = vsel %vm755, %v779, %v781
      %v783 = vrot.slane %v619, 2
      %v784 = vrot.slane %v536, 2
      %v785 = vsel %vm755, %v783, %v784
      %v786 = vrot.slane %v635, 2
      %v787 = vsel %vm755, %v784, %v786
      %v788 = vrot.slane %v620, 2
      %v789 = vrot.slane %v539, 2
      %v790 = vsel %vm755, %v788, %v789
      %v791 = vrot.slane %v636, 2
      %v792 = vsel %vm755, %v789, %v791
      %v793 = vrot.slane %v621, 2
      %v794 = vrot.slane %v542, 2
      %v795 = vsel %vm755, %v793, %v794
      %v796 = vrot.slane %v637, 2
      %v797 = vsel %vm755, %v794, %v796
      %v798 = vrot.slane %v622, 2
      %v799 = vrot.slane %v545, 2
      %v800 = vsel %vm755, %v798, %v799
      %v801 = vrot.slane %v638, 2
      %v802 = vsel %vm755, %v799, %v801
      %v803 = vrot.slane %v623, 2
      %v804 = vrot.slane %v548, 2
      %v805 = vsel %vm755, %v803, %v804
      %v806 = vrot.slane %v639, 2
      %v807 = vsel %vm755, %v804, %v806
      %v808 = vrot.slane %v624, 2
      %v809 = vrot.slane %v551, 2
      %v810 = vsel %vm755, %v808, %v809
      %v811 = vrot.slane %v640, 2
      %v812 = vsel %vm755, %v809, %v811
      %v813 = vrot.slane %v625, 2
      %v814 = vrot.slane %v554, 2
      %v815 = vsel %vm755, %v813, %v814
      %v816 = vrot.slane %v641, 2
      %v817 = vsel %vm755, %v814, %v816
      %v818 = vrot.slane %v626, 2
      %v819 = vrot.slane %v557, 2
      %v820 = vsel %vm755, %v818, %v819
      %v821 = vrot.slane %v642, 2
      %v822 = vsel %vm755, %v819, %v821
      %v823 = vrot.slane %v627, 2
      %v824 = vrot.slane %v560, 2
      %v825 = vsel %vm755, %v823, %v824
      %v826 = vrot.slane %v643, 2
      %v827 = vsel %vm755, %v824, %v826
      %v828 = vrot.slane %v628, 2
      %v829 = vrot.slane %v563, 2
      %v830 = vsel %vm755, %v828, %v829
      %v831 = vrot.slane %v644, 2
      %v832 = vsel %vm755, %v829, %v831
      %v835 = vrot.slane %v629, 1
      %v836 = vrot.slane %v566, 1
      %v837 = vsel %vm677, %v835, %v836
      %v838 = vrot.slane %v645, 1
      %v839 = vsel %vm677, %v836, %v838
      %v840 = vrot.slane %v629, 2
      %v841 = vrot.slane %v566, 2
      %v842 = vsel %vm755, %v840, %v841
      %v843 = vrot.slane %v645, 2
      %v844 = vsel %vm755, %v841, %v843
      %845 = vrot.lane.b32.xlu0 %v679, 4
      %v846 = vpop.permute.xlu0 %845
      %847 = vrot.lane.b32.xlu0 %v682, 4
      %v848 = vpop.permute.xlu0 %847
      %849 = vrot.lane.b32.xlu0 %v684, 4
      %v850 = vpop.permute.xlu0 %849
      %851 = vrot.lane.b32.xlu0 %v687, 4
      %v852 = vpop.permute.xlu0 %851
      %853 = vrot.lane.b32.xlu0 %v689, 4
      %v854 = vpop.permute.xlu0 %853
      %855 = vrot.lane.b32.xlu0 %v692, 4
      %v856 = vpop.permute.xlu0 %855
      %857 = vrot.lane.b32.xlu0 %v694, 4
      %v858 = vpop.permute.xlu0 %857
      %859 = vrot.lane.b32.xlu0 %v697, 4
      %v860 = vpop.permute.xlu0 %859
      %861 = vrot.lane.b32.xlu0 %v699, 4
      %v862 = vpop.permute.xlu0 %861
      %863 = vrot.lane.b32.xlu0 %v702, 4
      %v864 = vpop.permute.xlu0 %863
      %865 = vrot.lane.b32.xlu0 %v704, 4
      %v866 = vpop.permute.xlu0 %865
      %867 = vrot.lane.b32.xlu0 %v707, 4
      %v868 = vpop.permute.xlu0 %867
      %869 = vrot.lane.b32.xlu0 %v709, 4
      %v870 = vpop.permute.xlu0 %869
      %871 = vrot.lane.b32.xlu0 %v712, 4
      %v872 = vpop.permute.xlu0 %871
      %873 = vrot.lane.b32.xlu0 %v714, 4
      %v874 = vpop.permute.xlu0 %873
      %875 = vrot.lane.b32.xlu0 %v717, 4
      %v876 = vpop.permute.xlu0 %875
      %877 = vrot.lane.b32.xlu0 %v719, 4
      %v878 = vpop.permute.xlu0 %877
      %879 = vrot.lane.b32.xlu0 %v722, 4
      %v880 = vpop.permute.xlu0 %879
      %881 = vrot.lane.b32.xlu0 %v724, 4
      %v882 = vpop.permute.xlu0 %881
      %883 = vrot.lane.b32.xlu0 %v727, 4
      %v884 = vpop.permute.xlu0 %883
      %885 = vrot.lane.b32.xlu0 %v729, 4
      %v886 = vpop.permute.xlu0 %885
      %887 = vrot.lane.b32.xlu0 %v732, 4
      %v888 = vpop.permute.xlu0 %887
      %889 = vrot.lane.b32.xlu0 %v734, 4
      %v890 = vpop.permute.xlu0 %889
      %891 = vrot.lane.b32.xlu0 %v737, 4
      %v892 = vpop.permute.xlu0 %891
      %893 = vrot.lane.b32.xlu0 %v739, 4
      %v894 = vpop.permute.xlu0 %893
      %895 = vrot.lane.b32.xlu0 %v742, 4
      %v896 = vpop.permute.xlu0 %895
      %897 = vrot.lane.b32.xlu0 %v744, 4
      %v898 = vpop.permute.xlu0 %897
      %899 = vrot.lane.b32.xlu0 %v747, 4
      %v900 = vpop.permute.xlu0 %899
      %901 = vrot.lane.b32.xlu0 %v749, 4
      %v902 = vpop.permute.xlu0 %901
      %903 = vrot.lane.b32.xlu0 %v752, 4
      %v904 = vpop.permute.xlu0 %903
      %905 = vrot.lane.b32.xlu0 %v754, 4
      %v906 = vpop.permute.xlu0 %905
      %938 = vrot.lane.b32.xlu0 %v757, 8
      %v939 = vpop.permute.xlu0 %938
      %940 = vrot.lane.b32.xlu0 %v760, 8
      %v941 = vpop.permute.xlu0 %940
      %942 = vrot.lane.b32.xlu0 %v762, 8
      %v943 = vpop.permute.xlu0 %942
      %944 = vrot.lane.b32.xlu0 %v765, 8
      %v945 = vpop.permute.xlu0 %944
      %946 = vrot.lane.b32.xlu0 %v767, 8
      %v947 = vpop.permute.xlu0 %946
      %948 = vrot.lane.b32.xlu0 %v770, 8
      %v949 = vpop.permute.xlu0 %948
      %950 = vrot.lane.b32.xlu0 %v772, 8
      %v951 = vpop.permute.xlu0 %950
      %952 = vrot.lane.b32.xlu0 %v775, 8
      %v953 = vpop.permute.xlu0 %952
      %954 = vrot.lane.b32.xlu0 %v777, 8
      %v955 = vpop.permute.xlu0 %954
      %956 = vrot.lane.b32.xlu0 %v780, 8
      %v957 = vpop.permute.xlu0 %956
      %958 = vrot.lane.b32.xlu0 %v782, 8
      %v959 = vpop.permute.xlu0 %958
      %960 = vrot.lane.b32.xlu0 %v785, 8
      %v961 = vpop.permute.xlu0 %960
      %962 = vrot.lane.b32.xlu0 %v787, 8
      %v963 = vpop.permute.xlu0 %962
      %964 = vrot.lane.b32.xlu0 %v790, 8
      %v965 = vpop.permute.xlu0 %964
      %966 = vrot.lane.b32.xlu0 %v792, 8
      %v967 = vpop.permute.xlu0 %966
      %968 = vrot.lane.b32.xlu0 %v795, 8
      %v969 = vpop.permute.xlu0 %968
      %970 = vrot.lane.b32.xlu0 %v797, 8
      %v971 = vpop.permute.xlu0 %970
      %972 = vrot.lane.b32.xlu0 %v800, 8
      %v973 = vpop.permute.xlu0 %972
      %974 = vrot.lane.b32.xlu0 %v802, 8
      %v975 = vpop.permute.xlu0 %974
      %976 = vrot.lane.b32.xlu0 %v805, 8
      %v977 = vpop.permute.xlu0 %976
      %978 = vrot.lane.b32.xlu0 %v807, 8
      %v979 = vpop.permute.xlu0 %978
      %980 = vrot.lane.b32.xlu0 %v810, 8
      %v981 = vpop.permute.xlu0 %980
      %982 = vrot.lane.b32.xlu0 %v812, 8
      %v983 = vpop.permute.xlu0 %982
      %984 = vrot.lane.b32.xlu0 %v815, 8
      %v985 = vpop.permute.xlu0 %984
      %986 = vrot.lane.b32.xlu0 %v817, 8
      %v987 = vpop.permute.xlu0 %986
      %988 = vrot.lane.b32.xlu0 %v820, 8
      %v989 = vpop.permute.xlu0 %988
      %990 = vrot.lane.b32.xlu0 %v822, 8
      %v991 = vpop.permute.xlu0 %990
      %992 = vrot.lane.b32.xlu0 %v825, 8
      %v993 = vpop.permute.xlu0 %992
      %994 = vrot.lane.b32.xlu0 %v827, 8
      %v995 = vpop.permute.xlu0 %994
      %996 = vrot.lane.b32.xlu0 %v830, 8
      %v997 = vpop.permute.xlu0 %996
      %998 = vrot.lane.b32.xlu0 %v832, 8
      %v999 = vpop.permute.xlu0 %998
      %1031 = vrot.lane.b32.xlu0 %v614, 12
      %v1032 = vpop.permute.xlu0 %1031
      %1033 = vrot.lane.b32.xlu0 %v521, 12
      %v1034 = vpop.permute.xlu0 %1033
      %1035 = vrot.lane.b32.xlu0 %v615, 12
      %v1036 = vpop.permute.xlu0 %1035
      %1037 = vrot.lane.b32.xlu0 %v524, 12
      %v1038 = vpop.permute.xlu0 %1037
      %1039 = vrot.lane.b32.xlu0 %v616, 12
      %v1040 = vpop.permute.xlu0 %1039
      %1041 = vrot.lane.b32.xlu0 %v527, 12
      %v1042 = vpop.permute.xlu0 %1041
      %1043 = vrot.lane.b32.xlu0 %v617, 12
      %v1044 = vpop.permute.xlu0 %1043
      %1045 = vrot.lane.b32.xlu0 %v530, 12
      %v1046 = vpop.permute.xlu0 %1045
      %1047 = vrot.lane.b32.xlu0 %v618, 12
      %v1048 = vpop.permute.xlu0 %1047
      %1049 = vrot.lane.b32.xlu0 %v533, 12
      %v1050 = vpop.permute.xlu0 %1049
      %1051 = vrot.lane.b32.xlu0 %v619, 12
      %v1052 = vpop.permute.xlu0 %1051
      %1053 = vrot.lane.b32.xlu0 %v536, 12
      %v1054 = vpop.permute.xlu0 %1053
      %1055 = vrot.lane.b32.xlu0 %v620, 12
      %v1056 = vpop.permute.xlu0 %1055
      %1057 = vrot.lane.b32.xlu0 %v539, 12
      %v1058 = vpop.permute.xlu0 %1057
      %1059 = vrot.lane.b32.xlu0 %v621, 12
      %v1060 = vpop.permute.xlu0 %1059
      %1061 = vrot.lane.b32.xlu0 %v542, 12
      %v1062 = vpop.permute.xlu0 %1061
      %1063 = vrot.lane.b32.xlu0 %v622, 12
      %v1064 = vpop.permute.xlu0 %1063
      %1065 = vrot.lane.b32.xlu0 %v545, 12
      %v1066 = vpop.permute.xlu0 %1065
      %1067 = vrot.lane.b32.xlu0 %v623, 12
      %v1068 = vpop.permute.xlu0 %1067
      %1069 = vrot.lane.b32.xlu0 %v548, 12
      %v1070 = vpop.permute.xlu0 %1069
      %1071 = vrot.lane.b32.xlu0 %v624, 12
      %v1072 = vpop.permute.xlu0 %1071
      %1073 = vrot.lane.b32.xlu0 %v551, 12
      %v1074 = vpop.permute.xlu0 %1073
      %1075 = vrot.lane.b32.xlu0 %v625, 12
      %v1076 = vpop.permute.xlu0 %1075
      %1077 = vrot.lane.b32.xlu0 %v554, 12
      %v1078 = vpop.permute.xlu0 %1077
      %1079 = vrot.lane.b32.xlu0 %v626, 12
      %v1080 = vpop.permute.xlu0 %1079
      %1081 = vrot.lane.b32.xlu0 %v557, 12
      %v1082 = vpop.permute.xlu0 %1081
      %1083 = vrot.lane.b32.xlu0 %v627, 12
      %v1084 = vpop.permute.xlu0 %1083
      %1085 = vrot.lane.b32.xlu0 %v560, 12
      %v1086 = vpop.permute.xlu0 %1085
      %1087 = vrot.lane.b32.xlu0 %v628, 12
      %v1088 = vpop.permute.xlu0 %1087
      %1089 = vrot.lane.b32.xlu0 %v563, 12
      %v1090 = vpop.permute.xlu0 %1089
      %1091 = vrot.lane.b32.xlu0 %v629, 12
      %v1092 = vpop.permute.xlu0 %1091
      %1093 = vrot.lane.b32.xlu0 %v566, 12
      %v1094 = vpop.permute.xlu0 %1093
      %1127 = vrot.lane.b32.xlu0 %v682, 16
      %v1128 = vpop.permute.xlu0 %1127
      %1129 = vrot.lane.b32.xlu0 %v684, 16
      %v1130 = vpop.permute.xlu0 %1129
      %1131 = vrot.lane.b32.xlu0 %v687, 16
      %v1132 = vpop.permute.xlu0 %1131
      %1133 = vrot.lane.b32.xlu0 %v689, 16
      %v1134 = vpop.permute.xlu0 %1133
      %1135 = vrot.lane.b32.xlu0 %v692, 16
      %v1136 = vpop.permute.xlu0 %1135
      %1137 = vrot.lane.b32.xlu0 %v694, 16
      %v1138 = vpop.permute.xlu0 %1137
      %1139 = vrot.lane.b32.xlu0 %v697, 16
      %v1140 = vpop.permute.xlu0 %1139
      %1141 = vrot.lane.b32.xlu0 %v699, 16
      %v1142 = vpop.permute.xlu0 %1141
      %1143 = vrot.lane.b32.xlu0 %v702, 16
      %v1144 = vpop.permute.xlu0 %1143
      %1145 = vrot.lane.b32.xlu0 %v704, 16
      %v1146 = vpop.permute.xlu0 %1145
      %1147 = vrot.lane.b32.xlu0 %v707, 16
      %v1148 = vpop.permute.xlu0 %1147
      %1149 = vrot.lane.b32.xlu0 %v709, 16
      %v1150 = vpop.permute.xlu0 %1149
      %1151 = vrot.lane.b32.xlu0 %v712, 16
      %v1152 = vpop.permute.xlu0 %1151
      %1153 = vrot.lane.b32.xlu0 %v714, 16
      %v1154 = vpop.permute.xlu0 %1153
      %1155 = vrot.lane.b32.xlu0 %v717, 16
      %v1156 = vpop.permute.xlu0 %1155
      %1157 = vrot.lane.b32.xlu0 %v719, 16
      %v1158 = vpop.permute.xlu0 %1157
      %1159 = vrot.lane.b32.xlu0 %v722, 16
      %v1160 = vpop.permute.xlu0 %1159
      %1161 = vrot.lane.b32.xlu0 %v724, 16
      %v1162 = vpop.permute.xlu0 %1161
      %1163 = vrot.lane.b32.xlu0 %v727, 16
      %v1164 = vpop.permute.xlu0 %1163
      %1165 = vrot.lane.b32.xlu0 %v729, 16
      %v1166 = vpop.permute.xlu0 %1165
      %1167 = vrot.lane.b32.xlu0 %v732, 16
      %v1168 = vpop.permute.xlu0 %1167
      %1169 = vrot.lane.b32.xlu0 %v734, 16
      %v1170 = vpop.permute.xlu0 %1169
      %1171 = vrot.lane.b32.xlu0 %v737, 16
      %v1172 = vpop.permute.xlu0 %1171
      %1173 = vrot.lane.b32.xlu0 %v739, 16
      %v1174 = vpop.permute.xlu0 %1173
      %1175 = vrot.lane.b32.xlu0 %v742, 16
      %v1176 = vpop.permute.xlu0 %1175
      %1177 = vrot.lane.b32.xlu0 %v744, 16
      %v1178 = vpop.permute.xlu0 %1177
      %1179 = vrot.lane.b32.xlu0 %v747, 16
      %v1180 = vpop.permute.xlu0 %1179
      %1181 = vrot.lane.b32.xlu0 %v749, 16
      %v1182 = vpop.permute.xlu0 %1181
      %1183 = vrot.lane.b32.xlu0 %v752, 16
      %v1184 = vpop.permute.xlu0 %1183
      %1185 = vrot.lane.b32.xlu0 %v754, 16
      %v1186 = vpop.permute.xlu0 %1185
      %1187 = vrot.lane.b32.xlu0 %v837, 16
      %v1188 = vpop.permute.xlu0 %1187
      %1189 = vrot.lane.b32.xlu0 %v839, 16
      %v1190 = vpop.permute.xlu0 %1189
      %1223 = vrot.lane.b32.xlu0 %v760, 20
      %v1224 = vpop.permute.xlu0 %1223
      %1225 = vrot.lane.b32.xlu0 %v762, 20
      %v1226 = vpop.permute.xlu0 %1225
      %1227 = vrot.lane.b32.xlu0 %v765, 20
      %v1228 = vpop.permute.xlu0 %1227
      %1229 = vrot.lane.b32.xlu0 %v767, 20
      %v1230 = vpop.permute.xlu0 %1229
      %1231 = vrot.lane.b32.xlu0 %v770, 20
      %v1232 = vpop.permute.xlu0 %1231
      %1233 = vrot.lane.b32.xlu0 %v772, 20
      %v1234 = vpop.permute.xlu0 %1233
      %1235 = vrot.lane.b32.xlu0 %v775, 20
      %v1236 = vpop.permute.xlu0 %1235
      %1237 = vrot.lane.b32.xlu0 %v777, 20
      %v1238 = vpop.permute.xlu0 %1237
      %1239 = vrot.lane.b32.xlu0 %v780, 20
      %v1240 = vpop.permute.xlu0 %1239
      %1241 = vrot.lane.b32.xlu0 %v782, 20
      %v1242 = vpop.permute.xlu0 %1241
      %1243 = vrot.lane.b32.xlu0 %v785, 20
      %v1244 = vpop.permute.xlu0 %1243
      %1245 = vrot.lane.b32.xlu0 %v787, 20
      %v1246 = vpop.permute.xlu0 %1245
      %1247 = vrot.lane.b32.xlu0 %v790, 20
      %v1248 = vpop.permute.xlu0 %1247
      %1249 = vrot.lane.b32.xlu0 %v792, 20
      %v1250 = vpop.permute.xlu0 %1249
      %1251 = vrot.lane.b32.xlu0 %v795, 20
      %v1252 = vpop.permute.xlu0 %1251
      %1253 = vrot.lane.b32.xlu0 %v797, 20
      %v1254 = vpop.permute.xlu0 %1253
      %1255 = vrot.lane.b32.xlu0 %v800, 20
      %v1256 = vpop.permute.xlu0 %1255
      %1257 = vrot.lane.b32.xlu0 %v802, 20
      %v1258 = vpop.permute.xlu0 %1257
      %1259 = vrot.lane.b32.xlu0 %v805, 20
      %v1260 = vpop.permute.xlu0 %1259
      %1261 = vrot.lane.b32.xlu0 %v807, 20
      %v1262 = vpop.permute.xlu0 %1261
      %1263 = vrot.lane.b32.xlu0 %v810, 20
      %v1264 = vpop.permute.xlu0 %1263
      %1265 = vrot.lane.b32.xlu0 %v812, 20
      %v1266 = vpop.permute.xlu0 %1265
      %1267 = vrot.lane.b32.xlu0 %v815, 20
      %v1268 = vpop.permute.xlu0 %1267
      %1269 = vrot.lane.b32.xlu0 %v817, 20
      %v1270 = vpop.permute.xlu0 %1269
      %1271 = vrot.lane.b32.xlu0 %v820, 20
      %v1272 = vpop.permute.xlu0 %1271
      %1273 = vrot.lane.b32.xlu0 %v822, 20
      %v1274 = vpop.permute.xlu0 %1273
      %1275 = vrot.lane.b32.xlu0 %v825, 20
      %v1276 = vpop.permute.xlu0 %1275
      %1277 = vrot.lane.b32.xlu0 %v827, 20
      %v1278 = vpop.permute.xlu0 %1277
      %1279 = vrot.lane.b32.xlu0 %v830, 20
      %v1280 = vpop.permute.xlu0 %1279
      %1281 = vrot.lane.b32.xlu0 %v832, 20
      %v1282 = vpop.permute.xlu0 %1281
      %1283 = vrot.lane.b32.xlu0 %v842, 20
      %v1284 = vpop.permute.xlu0 %1283
      %1285 = vrot.lane.b32.xlu0 %v844, 20
      %v1286 = vpop.permute.xlu0 %1285
      %1319 = vrot.lane.b32.xlu0 %v615, 24
      %v1320 = vpop.permute.xlu0 %1319
      %1321 = vrot.lane.b32.xlu0 %v524, 24
      %v1322 = vpop.permute.xlu0 %1321
      %1323 = vrot.lane.b32.xlu0 %v616, 24
      %v1324 = vpop.permute.xlu0 %1323
      %1325 = vrot.lane.b32.xlu0 %v527, 24
      %v1326 = vpop.permute.xlu0 %1325
      %1327 = vrot.lane.b32.xlu0 %v617, 24
      %v1328 = vpop.permute.xlu0 %1327
      %1329 = vrot.lane.b32.xlu0 %v530, 24
      %v1330 = vpop.permute.xlu0 %1329
      %1331 = vrot.lane.b32.xlu0 %v618, 24
      %v1332 = vpop.permute.xlu0 %1331
      %1333 = vrot.lane.b32.xlu0 %v533, 24
      %v1334 = vpop.permute.xlu0 %1333
      %1335 = vrot.lane.b32.xlu0 %v619, 24
      %v1336 = vpop.permute.xlu0 %1335
      %1337 = vrot.lane.b32.xlu0 %v536, 24
      %v1338 = vpop.permute.xlu0 %1337
      %1339 = vrot.lane.b32.xlu0 %v620, 24
      %v1340 = vpop.permute.xlu0 %1339
      %1341 = vrot.lane.b32.xlu0 %v539, 24
      %v1342 = vpop.permute.xlu0 %1341
      %1343 = vrot.lane.b32.xlu0 %v621, 24
      %v1344 = vpop.permute.xlu0 %1343
      %1345 = vrot.lane.b32.xlu0 %v542, 24
      %v1346 = vpop.permute.xlu0 %1345
      %1347 = vrot.lane.b32.xlu0 %v622, 24
      %v1348 = vpop.permute.xlu0 %1347
      %1349 = vrot.lane.b32.xlu0 %v545, 24
      %v1350 = vpop.permute.xlu0 %1349
      %1351 = vrot.lane.b32.xlu0 %v623, 24
      %v1352 = vpop.permute.xlu0 %1351
      %1353 = vrot.lane.b32.xlu0 %v548, 24
      %v1354 = vpop.permute.xlu0 %1353
      %1355 = vrot.lane.b32.xlu0 %v624, 24
      %v1356 = vpop.permute.xlu0 %1355
      %1357 = vrot.lane.b32.xlu0 %v551, 24
      %v1358 = vpop.permute.xlu0 %1357
      %1359 = vrot.lane.b32.xlu0 %v625, 24
      %v1360 = vpop.permute.xlu0 %1359
      %1361 = vrot.lane.b32.xlu0 %v554, 24
      %v1362 = vpop.permute.xlu0 %1361
      %1363 = vrot.lane.b32.xlu0 %v626, 24
      %v1364 = vpop.permute.xlu0 %1363
      %1365 = vrot.lane.b32.xlu0 %v557, 24
      %v1366 = vpop.permute.xlu0 %1365
      %1367 = vrot.lane.b32.xlu0 %v627, 24
      %v1368 = vpop.permute.xlu0 %1367
      %1369 = vrot.lane.b32.xlu0 %v560, 24
      %v1370 = vpop.permute.xlu0 %1369
      %1371 = vrot.lane.b32.xlu0 %v628, 24
      %v1372 = vpop.permute.xlu0 %1371
      %1373 = vrot.lane.b32.xlu0 %v563, 24
      %v1374 = vpop.permute.xlu0 %1373
      %1375 = vrot.lane.b32.xlu0 %v629, 24
      %v1376 = vpop.permute.xlu0 %1375
      %1377 = vrot.lane.b32.xlu0 %v566, 24
      %v1378 = vpop.permute.xlu0 %1377
      %1379 = vrot.lane.b32.xlu0 0.0, 24
      %v1380 = vpop.permute.xlu0 %1379
      %1412 = vrot.lane.b32.xlu0 %v687, 28
      %v1413 = vpop.permute.xlu0 %1412
      %1414 = vrot.lane.b32.xlu0 %v689, 28
      %v1415 = vpop.permute.xlu0 %1414
      %1416 = vrot.lane.b32.xlu0 %v692, 28
      %v1417 = vpop.permute.xlu0 %1416
      %1418 = vrot.lane.b32.xlu0 %v694, 28
      %v1419 = vpop.permute.xlu0 %1418
      %1420 = vrot.lane.b32.xlu0 %v697, 28
      %v1421 = vpop.permute.xlu0 %1420
      %1422 = vrot.lane.b32.xlu0 %v699, 28
      %v1423 = vpop.permute.xlu0 %1422
      %1424 = vrot.lane.b32.xlu0 %v702, 28
      %v1425 = vpop.permute.xlu0 %1424
      %1426 = vrot.lane.b32.xlu0 %v704, 28
      %v1427 = vpop.permute.xlu0 %1426
      %1428 = vrot.lane.b32.xlu0 %v707, 28
      %v1429 = vpop.permute.xlu0 %1428
      %1430 = vrot.lane.b32.xlu0 %v709, 28
      %v1431 = vpop.permute.xlu0 %1430
      %1432 = vrot.lane.b32.xlu0 %v712, 28
      %v1433 = vpop.permute.xlu0 %1432
      %1434 = vrot.lane.b32.xlu0 %v714, 28
      %v1435 = vpop.permute.xlu0 %1434
      %1436 = vrot.lane.b32.xlu0 %v717, 28
      %v1437 = vpop.permute.xlu0 %1436
      %1438 = vrot.lane.b32.xlu0 %v719, 28
      %v1439 = vpop.permute.xlu0 %1438
      %1440 = vrot.lane.b32.xlu0 %v722, 28
      %v1441 = vpop.permute.xlu0 %1440
      %1442 = vrot.lane.b32.xlu0 %v724, 28
      %v1443 = vpop.permute.xlu0 %1442
      %1444 = vrot.lane.b32.xlu0 %v727, 28
      %v1445 = vpop.permute.xlu0 %1444
      %1446 = vrot.lane.b32.xlu0 %v729, 28
      %v1447 = vpop.permute.xlu0 %1446
      %1448 = vrot.lane.b32.xlu0 %v732, 28
      %v1449 = vpop.permute.xlu0 %1448
      %1450 = vrot.lane.b32.xlu0 %v734, 28
      %v1451 = vpop.permute.xlu0 %1450
      %1452 = vrot.lane.b32.xlu0 %v737, 28
      %v1453 = vpop.permute.xlu0 %1452
      %1454 = vrot.lane.b32.xlu0 %v739, 28
      %v1455 = vpop.permute.xlu0 %1454
      %1456 = vrot.lane.b32.xlu0 %v742, 28
      %v1457 = vpop.permute.xlu0 %1456
      %1458 = vrot.lane.b32.xlu0 %v744, 28
      %v1459 = vpop.permute.xlu0 %1458
      %1460 = vrot.lane.b32.xlu0 %v747, 28
      %v1461 = vpop.permute.xlu0 %1460
      %1462 = vrot.lane.b32.xlu0 %v749, 28
      %v1463 = vpop.permute.xlu0 %1462
      %1464 = vrot.lane.b32.xlu0 %v752, 28
      %v1465 = vpop.permute.xlu0 %1464
      %1466 = vrot.lane.b32.xlu0 %v754, 28
      %v1467 = vpop.permute.xlu0 %1466
      %1468 = vrot.lane.b32.xlu0 %v837, 28
      %v1469 = vpop.permute.xlu0 %1468
      %1470 = vrot.lane.b32.xlu0 %v839, 28
      %v1471 = vpop.permute.xlu0 %1470
      %1472 = vrot.lane.b32.xlu0 %v679, 28
      %v1473 = vpop.permute.xlu0 %1472
      %1505 = vrot.lane.b32.xlu0 %v765, 32
      %v1506 = vpop.permute.xlu0 %1505
      %1507 = vrot.lane.b32.xlu0 %v767, 32
      %v1508 = vpop.permute.xlu0 %1507
      %1509 = vrot.lane.b32.xlu0 %v770, 32
      %v1510 = vpop.permute.xlu0 %1509
      %1511 = vrot.lane.b32.xlu0 %v772, 32
      %v1512 = vpop.permute.xlu0 %1511
      %1513 = vrot.lane.b32.xlu0 %v775, 32
      %v1514 = vpop.permute.xlu0 %1513
      %1515 = vrot.lane.b32.xlu0 %v777, 32
      %v1516 = vpop.permute.xlu0 %1515
      %1517 = vrot.lane.b32.xlu0 %v780, 32
      %v1518 = vpop.permute.xlu0 %1517
      %1519 = vrot.lane.b32.xlu0 %v782, 32
      %v1520 = vpop.permute.xlu0 %1519
      %1521 = vrot.lane.b32.xlu0 %v785, 32
      %v1522 = vpop.permute.xlu0 %1521
      %1523 = vrot.lane.b32.xlu0 %v787, 32
      %v1524 = vpop.permute.xlu0 %1523
      %1525 = vrot.lane.b32.xlu0 %v790, 32
      %v1526 = vpop.permute.xlu0 %1525
      %1527 = vrot.lane.b32.xlu0 %v792, 32
      %v1528 = vpop.permute.xlu0 %1527
      %1529 = vrot.lane.b32.xlu0 %v795, 32
      %v1530 = vpop.permute.xlu0 %1529
      %1531 = vrot.lane.b32.xlu0 %v797, 32
      %v1532 = vpop.permute.xlu0 %1531
      %1533 = vrot.lane.b32.xlu0 %v800, 32
      %v1534 = vpop.permute.xlu0 %1533
      %1535 = vrot.lane.b32.xlu0 %v802, 32
      %v1536 = vpop.permute.xlu0 %1535
      %1537 = vrot.lane.b32.xlu0 %v805, 32
      %v1538 = vpop.permute.xlu0 %1537
      %1539 = vrot.lane.b32.xlu0 %v807, 32
      %v1540 = vpop.permute.xlu0 %1539
      %1541 = vrot.lane.b32.xlu0 %v810, 32
      %v1542 = vpop.permute.xlu0 %1541
      %1543 = vrot.lane.b32.xlu0 %v812, 32
      %v1544 = vpop.permute.xlu0 %1543
      %1545 = vrot.lane.b32.xlu0 %v815, 32
      %v1546 = vpop.permute.xlu0 %1545
      %1547 = vrot.lane.b32.xlu0 %v817, 32
      %v1548 = vpop.permute.xlu0 %1547
      %1549 = vrot.lane.b32.xlu0 %v820, 32
      %v1550 = vpop.permute.xlu0 %1549
      %1551 = vrot.lane.b32.xlu0 %v822, 32
      %v1552 = vpop.permute.xlu0 %1551
      %1553 = vrot.lane.b32.xlu0 %v825, 32
      %v1554 = vpop.permute.xlu0 %1553
      %1555 = vrot.lane.b32.xlu0 %v827, 32
      %v1556 = vpop.permute.xlu0 %1555
      %1557 = vrot.lane.b32.xlu0 %v830, 32
      %v1558 = vpop.permute.xlu0 %1557
      %1559 = vrot.lane.b32.xlu0 %v832, 32
      %v1560 = vpop.permute.xlu0 %1559
      %1561 = vrot.lane.b32.xlu0 %v842, 32
      %v1562 = vpop.permute.xlu0 %1561
      %1563 = vrot.lane.b32.xlu0 %v844, 32
      %v1564 = vpop.permute.xlu0 %1563
      %1565 = vrot.lane.b32.xlu0 %v757, 32
      %v1566 = vpop.permute.xlu0 %1565
      %vm1598 = vcmask 31744
      %v1599 = vsel %vm1598, 0.0, %v846
      %v1600 = vsel %vm1598, %v614, %v848
      %v1601 = vsel %vm1598, %v521, %v850
      %v1602 = vsel %vm1598, %v615, %v852
      %v1603 = vsel %vm1598, %v524, %v854
      %v1604 = vsel %vm1598, %v616, %v856
      %v1605 = vsel %vm1598, %v527, %v858
      %v1606 = vsel %vm1598, %v617, %v860
      %v1607 = vsel %vm1598, %v530, %v862
      %v1608 = vsel %vm1598, %v618, %v864
      %v1609 = vsel %vm1598, %v533, %v866
      %v1610 = vsel %vm1598, %v619, %v868
      %v1611 = vsel %vm1598, %v536, %v870
      %v1612 = vsel %vm1598, %v620, %v872
      %v1613 = vsel %vm1598, %v539, %v874
      %v1614 = vsel %vm1598, %v621, %v876
      %v1615 = vsel %vm1598, %v542, %v878
      %v1616 = vsel %vm1598, %v622, %v880
      %v1617 = vsel %vm1598, %v545, %v882
      %v1618 = vsel %vm1598, %v623, %v884
      %v1619 = vsel %vm1598, %v548, %v886
      %v1620 = vsel %vm1598, %v624, %v888
      %v1621 = vsel %vm1598, %v551, %v890
      %v1622 = vsel %vm1598, %v625, %v892
      %v1623 = vsel %vm1598, %v554, %v894
      %v1624 = vsel %vm1598, %v626, %v896
      %v1625 = vsel %vm1598, %v557, %v898
      %v1626 = vsel %vm1598, %v627, %v900
      %v1627 = vsel %vm1598, %v560, %v902
      %v1628 = vsel %vm1598, %v628, %v904
      %v1629 = vsel %vm1598, %v563, %v906
      %vm1630 = vcmask 64512
      %v1631 = vsel %vm1630, %v1599, %v939
      %v1632 = vsel %vm1630, %v1600, %v941
      %v1633 = vsel %vm1630, %v1601, %v943
      %v1634 = vsel %vm1630, %v1602, %v945
      %v1635 = vsel %vm1630, %v1603, %v947
      %v1636 = vsel %vm1630, %v1604, %v949
      %v1637 = vsel %vm1630, %v1605, %v951
      %v1638 = vsel %vm1630, %v1606, %v953
      %v1639 = vsel %vm1630, %v1607, %v955
      %v1640 = vsel %vm1630, %v1608, %v957
      %v1641 = vsel %vm1630, %v1609, %v959
      %v1642 = vsel %vm1630, %v1610, %v961
      %v1643 = vsel %vm1630, %v1611, %v963
      %v1644 = vsel %vm1630, %v1612, %v965
      %v1645 = vsel %vm1630, %v1613, %v967
      %v1646 = vsel %vm1630, %v1614, %v969
      %v1647 = vsel %vm1630, %v1615, %v971
      %v1648 = vsel %vm1630, %v1616, %v973
      %v1649 = vsel %vm1630, %v1617, %v975
      %v1650 = vsel %vm1630, %v1618, %v977
      %v1651 = vsel %vm1630, %v1619, %v979
      %v1652 = vsel %vm1630, %v1620, %v981
      %v1653 = vsel %vm1630, %v1621, %v983
      %v1654 = vsel %vm1630, %v1622, %v985
      %v1655 = vsel %vm1630, %v1623, %v987
      %v1656 = vsel %vm1630, %v1624, %v989
      %v1657 = vsel %vm1630, %v1625, %v991
      %v1658 = vsel %vm1630, %v1626, %v993
      %v1659 = vsel %vm1630, %v1627, %v995
      %v1660 = vsel %vm1630, %v1628, %v997
      %v1661 = vsel %vm1630, %v1629, %v999
      %vm1662 = vcmask 97280
      %v1663 = vsel %vm1662, %v1631, %v1032
      %v1664 = vsel %vm1662, %v1631, %v1034
      %v1665 = vsel %vm1662, %v1632, %v1036
      %v1666 = vsel %vm1662, %v1633, %v1038
      %v1667 = vsel %vm1662, %v1634, %v1040
      %v1668 = vsel %vm1662, %v1635, %v1042
      %v1669 = vsel %vm1662, %v1636, %v1044
      %v1670 = vsel %vm1662, %v1637, %v1046
      %v1671 = vsel %vm1662, %v1638, %v1048
      %v1672 = vsel %vm1662, %v1639, %v1050
      %v1673 = vsel %vm1662, %v1640, %v1052
      %v1674 = vsel %vm1662, %v1641, %v1054
      %v1675 = vsel %vm1662, %v1642, %v1056
      %v1676 = vsel %vm1662, %v1643, %v1058
      %v1677 = vsel %vm1662, %v1644, %v1060
      %v1678 = vsel %vm1662, %v1645, %v1062
      %v1679 = vsel %vm1662, %v1646, %v1064
      %v1680 = vsel %vm1662, %v1647, %v1066
      %v1681 = vsel %vm1662, %v1648, %v1068
      %v1682 = vsel %vm1662, %v1649, %v1070
      %v1683 = vsel %vm1662, %v1650, %v1072
      %v1684 = vsel %vm1662, %v1651, %v1074
      %v1685 = vsel %vm1662, %v1652, %v1076
      %v1686 = vsel %vm1662, %v1653, %v1078
      %v1687 = vsel %vm1662, %v1654, %v1080
      %v1688 = vsel %vm1662, %v1655, %v1082
      %v1689 = vsel %vm1662, %v1656, %v1084
      %v1690 = vsel %vm1662, %v1657, %v1086
      %v1691 = vsel %vm1662, %v1658, %v1088
      %v1692 = vsel %vm1662, %v1659, %v1090
      %v1693 = vsel %vm1662, %v1660, %v1092
      %v1694 = vsel %vm1662, %v1661, %v1094
      %vm1695 = vcmask 130048
      %v1696 = vsel %vm1695, %v1663, %v1128
      %v1697 = vsel %vm1695, %v1664, %v1130
      %v1698 = vsel %vm1695, %v1665, %v1132
      %v1699 = vsel %vm1695, %v1666, %v1134
      %v1700 = vsel %vm1695, %v1667, %v1136
      %v1701 = vsel %vm1695, %v1668, %v1138
      %v1702 = vsel %vm1695, %v1669, %v1140
      %v1703 = vsel %vm1695, %v1670, %v1142
      %v1704 = vsel %vm1695, %v1671, %v1144
      %v1705 = vsel %vm1695, %v1672, %v1146
      %v1706 = vsel %vm1695, %v1673, %v1148
      %v1707 = vsel %vm1695, %v1674, %v1150
      %v1708 = vsel %vm1695, %v1675, %v1152
      %v1709 = vsel %vm1695, %v1676, %v1154
      %v1710 = vsel %vm1695, %v1677, %v1156
      %v1711 = vsel %vm1695, %v1678, %v1158
      %v1712 = vsel %vm1695, %v1679, %v1160
      %v1713 = vsel %vm1695, %v1680, %v1162
      %v1714 = vsel %vm1695, %v1681, %v1164
      %v1715 = vsel %vm1695, %v1682, %v1166
      %v1716 = vsel %vm1695, %v1683, %v1168
      %v1717 = vsel %vm1695, %v1684, %v1170
      %v1718 = vsel %vm1695, %v1685, %v1172
      %v1719 = vsel %vm1695, %v1686, %v1174
      %v1720 = vsel %vm1695, %v1687, %v1176
      %v1721 = vsel %vm1695, %v1688, %v1178
      %v1722 = vsel %vm1695, %v1689, %v1180
      %v1723 = vsel %vm1695, %v1690, %v1182
      %v1724 = vsel %vm1695, %v1691, %v1184
      %v1725 = vsel %vm1695, %v1692, %v1186
      %v1726 = vsel %vm1695, %v1693, %v1188
      %v1727 = vsel %vm1695, %v1694, %v1190
      %vm1728 = vcmask 162816
      %v1729 = vsel %vm1728, %v1696, %v1224
      %v1730 = vsel %vm1728, %v1697, %v1226
      %v1731 = vsel %vm1728, %v1698, %v1228
      %v1732 = vsel %vm1728, %v1699, %v1230
      %v1733 = vsel %vm1728, %v1700, %v1232
      %v1734 = vsel %vm1728, %v1701, %v1234
      %v1735 = vsel %vm1728, %v1702, %v1236
      %v1736 = vsel %vm1728, %v1703, %v1238
      %v1737 = vsel %vm1728, %v1704, %v1240
      %v1738 = vsel %vm1728, %v1705, %v1242
      %v1739 = vsel %vm1728, %v1706, %v1244
      %v1740 = vsel %vm1728, %v1707, %v1246
      %v1741 = vsel %vm1728, %v1708, %v1248
      %v1742 = vsel %vm1728, %v1709, %v1250
      %v1743 = vsel %vm1728, %v1710, %v1252
      %v1744 = vsel %vm1728, %v1711, %v1254
      %v1745 = vsel %vm1728, %v1712, %v1256
      %v1746 = vsel %vm1728, %v1713, %v1258
      %v1747 = vsel %vm1728, %v1714, %v1260
      %v1748 = vsel %vm1728, %v1715, %v1262
      %v1749 = vsel %vm1728, %v1716, %v1264
      %v1750 = vsel %vm1728, %v1717, %v1266
      %v1751 = vsel %vm1728, %v1718, %v1268
      %v1752 = vsel %vm1728, %v1719, %v1270
      %v1753 = vsel %vm1728, %v1720, %v1272
      %v1754 = vsel %vm1728, %v1721, %v1274
      %v1755 = vsel %vm1728, %v1722, %v1276
      %v1756 = vsel %vm1728, %v1723, %v1278
      %v1757 = vsel %vm1728, %v1724, %v1280
      %v1758 = vsel %vm1728, %v1725, %v1282
      %v1759 = vsel %vm1728, %v1726, %v1284
      %v1760 = vsel %vm1728, %v1727, %v1286
      %vm1761 = vcmask 195584
      %v1762 = vsel %vm1761, %v1729, %v1320
      %v1763 = vsel %vm1761, %v1730, %v1322
      %v1764 = vsel %vm1761, %v1731, %v1324
      %v1765 = vsel %vm1761, %v1732, %v1326
      %v1766 = vsel %vm1761, %v1733, %v1328
      %v1767 = vsel %vm1761, %v1734, %v1330
      %v1768 = vsel %vm1761, %v1735, %v1332
      %v1769 = vsel %vm1761, %v1736, %v1334
      %v1770 = vsel %vm1761, %v1737, %v1336
      %v1771 = vsel %vm1761, %v1738, %v1338
      %v1772 = vsel %vm1761, %v1739, %v1340
      %v1773 = vsel %vm1761, %v1740, %v1342
      %v1774 = vsel %vm1761, %v1741, %v1344
      %v1775 = vsel %vm1761, %v1742, %v1346
      %v1776 = vsel %vm1761, %v1743, %v1348
      %v1777 = vsel %vm1761, %v1744, %v1350
      %v1778 = vsel %vm1761, %v1745, %v1352
      %v1779 = vsel %vm1761, %v1746, %v1354
      %v1780 = vsel %vm1761, %v1747, %v1356
      %v1781 = vsel %vm1761, %v1748, %v1358
      %v1782 = vsel %vm1761, %v1749, %v1360
      %v1783 = vsel %vm1761, %v1750, %v1362
      %v1784 = vsel %vm1761, %v1751, %v1364
      %v1785 = vsel %vm1761, %v1752, %v1366
      %v1786 = vsel %vm1761, %v1753, %v1368
      %v1787 = vsel %vm1761, %v1754, %v1370
      %v1788 = vsel %vm1761, %v1755, %v1372
      %v1789 = vsel %vm1761, %v1756, %v1374
      %v1790 = vsel %vm1761, %v1757, %v1376
      %v1791 = vsel %vm1761, %v1758, %v1378
      %v1792 = vsel %vm1761, %v1759, %v1380
      %v1793 = vsel %vm1761, %v1760, %v1380
      %vm1794 = vcmask 228352
      %v1795 = vsel %vm1794, %v1762, %v1413
      %v1796 = vsel %vm1794, %v1763, %v1415
      %v1797 = vsel %vm1794, %v1764, %v1417
      %v1798 = vsel %vm1794, %v1765, %v1419
      %v1799 = vsel %vm1794, %v1766, %v1421
      %v1800 = vsel %vm1794, %v1767, %v1423
      %v1801 = vsel %vm1794, %v1768, %v1425
      %v1802 = vsel %vm1794, %v1769, %v1427
      %v1803 = vsel %vm1794, %v1770, %v1429
      %v1804 = vsel %vm1794, %v1771, %v1431
      %v1805 = vsel %vm1794, %v1772, %v1433
      %v1806 = vsel %vm1794, %v1773, %v1435
      %v1807 = vsel %vm1794, %v1774, %v1437
      %v1808 = vsel %vm1794, %v1775, %v1439
      %v1809 = vsel %vm1794, %v1776, %v1441
      %v1810 = vsel %vm1794, %v1777, %v1443
      %v1811 = vsel %vm1794, %v1778, %v1445
      %v1812 = vsel %vm1794, %v1779, %v1447
      %v1813 = vsel %vm1794, %v1780, %v1449
      %v1814 = vsel %vm1794, %v1781, %v1451
      %v1815 = vsel %vm1794, %v1782, %v1453
      %v1816 = vsel %vm1794, %v1783, %v1455
      %v1817 = vsel %vm1794, %v1784, %v1457
      %v1818 = vsel %vm1794, %v1785, %v1459
      %v1819 = vsel %vm1794, %v1786, %v1461
      %v1820 = vsel %vm1794, %v1787, %v1463
      %v1821 = vsel %vm1794, %v1788, %v1465
      %v1822 = vsel %vm1794, %v1789, %v1467
      %v1823 = vsel %vm1794, %v1790, %v1469
      %v1824 = vsel %vm1794, %v1791, %v1471
      %v1825 = vsel %vm1794, %v1792, %v1473
      %v1826 = vsel %vm1794, %v1793, %v1473
      %vm1827 = vcmask 261120
      %v1828 = vsel %vm1827, %v1795, %v1506
      %v1829 = vsel %vm1827, %v1796, %v1508
      %v1830 = vsel %vm1827, %v1797, %v1510
      %v1831 = vsel %vm1827, %v1798, %v1512
      %v1832 = vsel %vm1827, %v1799, %v1514
      %v1833 = vsel %vm1827, %v1800, %v1516
      %v1834 = vsel %vm1827, %v1801, %v1518
      %v1835 = vsel %vm1827, %v1802, %v1520
      %v1836 = vsel %vm1827, %v1803, %v1522
      %v1837 = vsel %vm1827, %v1804, %v1524
      %v1838 = vsel %vm1827, %v1805, %v1526
      %v1839 = vsel %vm1827, %v1806, %v1528
      %v1840 = vsel %vm1827, %v1807, %v1530
      %v1841 = vsel %vm1827, %v1808, %v1532
      %v1842 = vsel %vm1827, %v1809, %v1534
      %v1843 = vsel %vm1827, %v1810, %v1536
      %v1844 = vsel %vm1827, %v1811, %v1538
      %v1845 = vsel %vm1827, %v1812, %v1540
      %v1846 = vsel %vm1827, %v1813, %v1542
      %v1847 = vsel %vm1827, %v1814, %v1544
      %v1848 = vsel %vm1827, %v1815, %v1546
      %v1849 = vsel %vm1827, %v1816, %v1548
      %v1850 = vsel %vm1827, %v1817, %v1550
      %v1851 = vsel %vm1827, %v1818, %v1552
      %v1852 = vsel %vm1827, %v1819, %v1554
      %v1853 = vsel %vm1827, %v1820, %v1556
      %v1854 = vsel %vm1827, %v1821, %v1558
      %v1855 = vsel %vm1827, %v1822, %v1560
      %v1856 = vsel %vm1827, %v1823, %v1562
      %v1857 = vsel %vm1827, %v1824, %v1564
      %v1858 = vsel %vm1827, %v1825, %v1566
      %v1859 = vsel %vm1827, %v1826, %v1566
      %vm1860 = vcmask 293888
      %v1861 = vsel %vm1860, %v1828, 1.0
      %v1862 = vsel %vm1860, %v1829, 1.0
      %v1863 = vsel %vm1860, %v1830, 1.0
      %v1864 = vsel %vm1860, %v1831, 1.0
      %v1865 = vsel %vm1860, %v1832, 1.0
      %v1866 = vsel %vm1860, %v1833, 1.0
      %v1867 = vsel %vm1860, %v1834, 1.0
      %v1868 = vsel %vm1860, %v1835, 1.0
      %v1869 = vsel %vm1860, %v1836, 1.0
      %v1870 = vsel %vm1860, %v1837, 1.0
      %v1871 = vsel %vm1860, %v1838, 1.0
      %v1872 = vsel %vm1860, %v1839, 1.0
      %v1873 = vsel %vm1860, %v1840, 1.0
      %v1874 = vsel %vm1860, %v1841, 1.0
      %v1875 = vsel %vm1860, %v1842, 1.0
      %v1876 = vsel %vm1860, %v1843, 1.0
      %v1877 = vsel %vm1860, %v1844, 1.0
      %v1878 = vsel %vm1860, %v1845, 1.0
      %v1879 = vsel %vm1860, %v1846, 1.0
      %v1880 = vsel %vm1860, %v1847, 1.0
      %v1881 = vsel %vm1860, %v1848, 1.0
      %v1882 = vsel %vm1860, %v1849, 1.0
      %v1883 = vsel %vm1860, %v1850, 1.0
      %v1884 = vsel %vm1860, %v1851, 1.0
      %v1885 = vsel %vm1860, %v1852, 1.0
      %v1886 = vsel %vm1860, %v1853, 1.0
      %v1887 = vsel %vm1860, %v1854, 1.0
      %v1888 = vsel %vm1860, %v1855, 1.0
      %v1889 = vsel %vm1860, %v1856, 1.0
      %v1890 = vsel %vm1860, %v1857, 1.0
      %v1891 = vsel %vm1860, %v1858, 1.0
      %v1892 = vsel %vm1860, %v1859, 1.0
      %vm1893 = vcmask 302080
      %v1894 = vsel %vm1893, %v1861, 0.0
      %v1895 = vsel %vm1893, %v1862, 0.0
      %v1896 = vsel %vm1893, %v1863, 0.0
      %v1897 = vsel %vm1893, %v1864, 0.0
      %v1898 = vsel %vm1893, %v1865, 0.0
      %v1899 = vsel %vm1893, %v1866, 0.0
      %v1900 = vsel %vm1893, %v1867, 0.0
      %v1901 = vsel %vm1893, %v1868, 0.0
      %v1902 = vsel %vm1893, %v1869, 0.0
      %v1903 = vsel %vm1893, %v1870, 0.0
      %v1904 = vsel %vm1893, %v1871, 0.0
      %v1905 = vsel %vm1893, %v1872, 0.0
      %v1906 = vsel %vm1893, %v1873, 0.0
      %v1907 = vsel %vm1893, %v1874, 0.0
      %v1908 = vsel %vm1893, %v1875, 0.0
      %v1909 = vsel %vm1893, %v1876, 0.0
      %v1910 = vsel %vm1893, %v1877, 0.0
      %v1911 = vsel %vm1893, %v1878, 0.0
      %v1912 = vsel %vm1893, %v1879, 0.0
      %v1913 = vsel %vm1893, %v1880, 0.0
      %v1914 = vsel %vm1893, %v1881, 0.0
      %v1915 = vsel %vm1893, %v1882, 0.0
      %v1916 = vsel %vm1893, %v1883, 0.0
      %v1917 = vsel %vm1893, %v1884, 0.0
      %v1918 = vsel %vm1893, %v1885, 0.0
      %v1919 = vsel %vm1893, %v1886, 0.0
      %v1920 = vsel %vm1893, %v1887, 0.0
      %v1921 = vsel %vm1893, %v1888, 0.0
      %v1922 = vsel %vm1893, %v1889, 0.0
      %v1923 = vsel %vm1893, %v1890, 0.0
      %v1924 = vsel %vm1893, %v1891, 0.0
      %v1925 = vsel %vm1893, %v1892, 0.0
      %v1926 = vpack.c.bf16 %v1895, %v1894
      %v1927 = vpack.c.bf16 %v1897, %v1896
      %v1928 = vpack.c.bf16 %v1899, %v1898
      %v1929 = vpack.c.bf16 %v1901, %v1900
      %v1930 = vpack.c.bf16 %v1903, %v1902
      %v1931 = vpack.c.bf16 %v1905, %v1904
      %v1932 = vpack.c.bf16 %v1907, %v1906
      %v1933 = vpack.c.bf16 %v1909, %v1908
      %v1934 = vpack.c.bf16 %v1911, %v1910
      %v1935 = vpack.c.bf16 %v1913, %v1912
      %v1936 = vpack.c.bf16 %v1915, %v1914
      %v1937 = vpack.c.bf16 %v1917, %v1916
      %v1938 = vpack.c.bf16 %v1919, %v1918
      %v1939 = vpack.c.bf16 %v1921, %v1920
      %v1940 = vpack.c.bf16 %v1923, %v1922
      %v1941 = vpack.c.bf16 %v1925, %v1924
      %v1942 = vld [vmem:[%s3] sm:$0xf]
      %v1943 = vld [vmem:[%s3 + $0x4] sm:$0xf]
      %v1944 = vld [vmem:[%s3 + $0x8] sm:$0xf]
      %v1945 = vld [vmem:[%s3 + $0xc] sm:$0xf]
      %v1946 = vld [vmem:[%s3 + $0x10] sm:$0xf]
      %v1947 = vld [vmem:[%s3 + $0x14] sm:$0xf]
      %v1948 = vld [vmem:[%s3 + $0x18] sm:$0xf]
      %v1949 = vld [vmem:[%s3 + $0x1c] sm:$0xf]
      %v1950 = vld [vmem:[%s3 + $0x20] sm:$0xf]
      %v1951 = vld [vmem:[%s3 + $0x24] sm:$0xf]
      %v1952 = vld [vmem:[%s3 + $0x28] sm:$0xf]
      %v1953 = vld [vmem:[%s3 + $0x2c] sm:$0xf]
      %v1954 = vld [vmem:[%s3 + $0x30] sm:$0xf]
      %v1955 = vld [vmem:[%s3 + $0x34] sm:$0xf]
      %v1956 = vld [vmem:[%s3 + $0x38] sm:$0xf]
      %v1957 = vld [vmem:[%s3 + $0x3c] sm:$0xf]
      %v1974 = vunpack.c.l.b16 %v1942
      %v1975 = vunpack.c.l.b16 %v1943
      %v1976 = vunpack.c.l.b16 %v1944
      %v1977 = vunpack.c.l.b16 %v1945
      %v1978 = vunpack.c.l.b16 %v1946
      %v1979 = vunpack.c.l.b16 %v1947
      %v1980 = vunpack.c.l.b16 %v1948
      %v1981 = vunpack.c.l.b16 %v1949
      %v1982 = vunpack.c.l.b16 %v1950
      %v1983 = vunpack.c.l.b16 %v1951
      %v1984 = vunpack.c.l.b16 %v1952
      %v1985 = vunpack.c.l.b16 %v1953
      %v1986 = vunpack.c.l.b16 %v1954
      %v1987 = vunpack.c.l.b16 %v1955
      %v1988 = vunpack.c.l.b16 %v1956
      %v1989 = vunpack.c.l.b16 %v1957
      %v1990 = vpack.c.b16 %v1975, %v1974
      %v1991 = vpack.c.b16 %v1977, %v1976
      %v1992 = vpack.c.b16 %v1979, %v1978
      %v1993 = vpack.c.b16 %v1981, %v1980
      %v1994 = vpack.c.b16 %v1983, %v1982
      %v1995 = vpack.c.b16 %v1985, %v1984
      %v1996 = vpack.c.b16 %v1987, %v1986
      %v1997 = vpack.c.b16 %v1989, %v1988
      %2006 = vmatprep.subr.bf16.mxu0 0
      %2007 = vmatpush1.bf16.msra.mxu0 %v1997
      %2008 = vmatprep.subr.bf16.mxu0 0
      %2009 = vmatpush1.bf16.msra.mxu0 %v1996
      %2010 = vmatprep.subr.bf16.mxu0 0
      %2011 = vmatpush1.bf16.msra.mxu0 %v1995
      %2012 = vmatprep.subr.bf16.mxu0 0
      %2013 = vmatpush1.bf16.msra.mxu0 %v1994
      %2014 = vmatprep.subr.bf16.mxu0 0
      %2015 = vmatpush1.bf16.msra.mxu0 %v1993
      %2016 = vmatprep.subr.bf16.mxu0 0
      %2017 = vmatpush1.bf16.msra.mxu0 %v1992
      %2018 = vmatprep.subr.bf16.mxu0 0
      %2019 = vmatpush1.bf16.msra.mxu0 %v1991
      %2020 = vmatprep.subr.bf16.mxu0 0
      %2021 = vmatpush1.bf16.msra.mxu0 %v1990
      %2022 = vmatprep.subr.bf16.mxu0 0
      %2023 = vmatpush2.bf16.msra.mxu0 0
      %2024 = vmatprep.subr.bf16.mxu0 0
      %2025 = vmatpush2.bf16.msra.mxu0 0
      %2026 = vmatprep.subr.bf16.mxu0 0
      %2027 = vmatpush2.bf16.msra.mxu0 0
      %2028 = vmatprep.subr.bf16.mxu0 0
      %2029 = vmatpush2.bf16.msra.mxu0 0
      %2030 = vmatprep.subr.bf16.mxu0 0
      %2031 = vmatpush2.bf16.msra.mxu0 0
      %2032 = vmatprep.subr.bf16.mxu0 0
      %2033 = vmatpush2.bf16.msra.mxu0 0
      %2034 = vmatprep.subr.bf16.mxu0 0
      %2035 = vmatpush2.bf16.msra.mxu0 0
      %2036 = vmatprep.subr.bf16.mxu0 0
      %2037 = vmatpush2.bf16.msra.mxu0 0
      %2038 = vmatprep.mubr.bf16.mxu0 0
      %2039 = vmatmul.mubr.bf16.gmra.mxu0 %v1926
      %v2040 = vpop.f32.mrf.mxu0
      %v2041 = vadd.f32 0.0, %v2040
      %v2042 = vpop.f32.mrf.mxu0
      %v2043 = vpop.f32.mrf.mxu0
      %v2044 = vadd.f32 0.0, %v2043
      %v2045 = vpop.f32.mrf.mxu0
      %2046 = vmatprep.mubr.bf16.mxu0 0
      %2047 = vmatmul.mubr.bf16.gmra.mxu0 %v1927
      %v2048 = vpop.f32.mrf.mxu0
      %v2049 = vadd.f32 0.0, %v2048
      %v2050 = vpop.f32.mrf.mxu0
      %v2051 = vpop.f32.mrf.mxu0
      %v2052 = vadd.f32 0.0, %v2051
      %v2053 = vpop.f32.mrf.mxu0
      %2054 = vmatprep.mubr.bf16.mxu0 0
      %2055 = vmatmul.mubr.bf16.gmra.mxu0 %v1928
      %v2056 = vpop.f32.mrf.mxu0
      %v2057 = vadd.f32 0.0, %v2056
      %v2058 = vpop.f32.mrf.mxu0
      %v2059 = vpop.f32.mrf.mxu0
      %v2060 = vadd.f32 0.0, %v2059
      %v2061 = vpop.f32.mrf.mxu0
      %2062 = vmatprep.mubr.bf16.mxu0 0
      %2063 = vmatmul.mubr.bf16.gmra.mxu0 %v1929
      %v2064 = vpop.f32.mrf.mxu0
      %v2065 = vadd.f32 0.0, %v2064
      %v2066 = vpop.f32.mrf.mxu0
      %v2067 = vpop.f32.mrf.mxu0
      %v2068 = vadd.f32 0.0, %v2067
      %v2069 = vpop.f32.mrf.mxu0
      %2070 = vmatprep.mubr.bf16.mxu0 0
      %2071 = vmatmul.mubr.bf16.gmra.mxu0 %v1930
      %v2072 = vpop.f32.mrf.mxu0
      %v2073 = vadd.f32 0.0, %v2072
      %v2074 = vpop.f32.mrf.mxu0
      %v2075 = vpop.f32.mrf.mxu0
      %v2076 = vadd.f32 0.0, %v2075
      %v2077 = vpop.f32.mrf.mxu0
      %2078 = vmatprep.mubr.bf16.mxu0 0
      %2079 = vmatmul.mubr.bf16.gmra.mxu0 %v1931
      %v2080 = vpop.f32.mrf.mxu0
      %v2081 = vadd.f32 0.0, %v2080
      %v2082 = vpop.f32.mrf.mxu0
      %v2083 = vpop.f32.mrf.mxu0
      %v2084 = vadd.f32 0.0, %v2083
      %v2085 = vpop.f32.mrf.mxu0
      %2086 = vmatprep.mubr.bf16.mxu0 0
      %2087 = vmatmul.mubr.bf16.gmra.mxu0 %v1932
      %v2088 = vpop.f32.mrf.mxu0
      %v2089 = vadd.f32 0.0, %v2088
      %v2090 = vpop.f32.mrf.mxu0
      %v2091 = vpop.f32.mrf.mxu0
      %v2092 = vadd.f32 0.0, %v2091
      %v2093 = vpop.f32.mrf.mxu0
      %2094 = vmatprep.mubr.bf16.mxu0 0
      %2095 = vmatmul.mubr.bf16.gmra.mxu0 %v1933
      %v2096 = vpop.f32.mrf.mxu0
      %v2097 = vadd.f32 0.0, %v2096
      %v2098 = vpop.f32.mrf.mxu0
      %v2099 = vpop.f32.mrf.mxu0
      %v2100 = vadd.f32 0.0, %v2099
      %v2101 = vpop.f32.mrf.mxu0
      %2102 = vmatprep.mubr.bf16.mxu0 0
      %2103 = vmatmul.mubr.bf16.gmra.mxu0 %v1934
      %v2104 = vpop.f32.mrf.mxu0
      %v2105 = vadd.f32 0.0, %v2104
      %v2106 = vpop.f32.mrf.mxu0
      %v2107 = vpop.f32.mrf.mxu0
      %v2108 = vadd.f32 0.0, %v2107
      %v2109 = vpop.f32.mrf.mxu0
      %2110 = vmatprep.mubr.bf16.mxu0 0
      %2111 = vmatmul.mubr.bf16.gmra.mxu0 %v1935
      %v2112 = vpop.f32.mrf.mxu0
      %v2113 = vadd.f32 0.0, %v2112
      %v2114 = vpop.f32.mrf.mxu0
      %v2115 = vpop.f32.mrf.mxu0
      %v2116 = vadd.f32 0.0, %v2115
      %v2117 = vpop.f32.mrf.mxu0
      %2118 = vmatprep.mubr.bf16.mxu0 0
      %2119 = vmatmul.mubr.bf16.gmra.mxu0 %v1936
      %v2120 = vpop.f32.mrf.mxu0
      %v2121 = vadd.f32 0.0, %v2120
      %v2122 = vpop.f32.mrf.mxu0
      %v2123 = vpop.f32.mrf.mxu0
      %v2124 = vadd.f32 0.0, %v2123
      %v2125 = vpop.f32.mrf.mxu0
      %2126 = vmatprep.mubr.bf16.mxu0 0
      %2127 = vmatmul.mubr.bf16.gmra.mxu0 %v1937
      %v2128 = vpop.f32.mrf.mxu0
      %v2129 = vadd.f32 0.0, %v2128
      %v2130 = vpop.f32.mrf.mxu0
      %v2131 = vpop.f32.mrf.mxu0
      %v2132 = vadd.f32 0.0, %v2131
      %v2133 = vpop.f32.mrf.mxu0
      %2134 = vmatprep.mubr.bf16.mxu0 0
      %2135 = vmatmul.mubr.bf16.gmra.mxu0 %v1938
      %v2136 = vpop.f32.mrf.mxu0
      %v2137 = vadd.f32 0.0, %v2136
      %v2138 = vpop.f32.mrf.mxu0
      %v2139 = vpop.f32.mrf.mxu0
      %v2140 = vadd.f32 0.0, %v2139
      %v2141 = vpop.f32.mrf.mxu0
      %2142 = vmatprep.mubr.bf16.mxu0 0
      %2143 = vmatmul.mubr.bf16.gmra.mxu0 %v1939
      %v2144 = vpop.f32.mrf.mxu0
      %v2145 = vadd.f32 0.0, %v2144
      %v2146 = vpop.f32.mrf.mxu0
      %v2147 = vpop.f32.mrf.mxu0
      %v2148 = vadd.f32 0.0, %v2147
      %v2149 = vpop.f32.mrf.mxu0
      %2150 = vmatprep.mubr.bf16.mxu0 0
      %2151 = vmatmul.mubr.bf16.gmra.mxu0 %v1940
      %v2152 = vpop.f32.mrf.mxu0
      %v2153 = vadd.f32 0.0, %v2152
      %v2154 = vpop.f32.mrf.mxu0
      %v2155 = vpop.f32.mrf.mxu0
      %v2156 = vadd.f32 0.0, %v2155
      %v2157 = vpop.f32.mrf.mxu0
      %2158 = vmatprep.mubr.bf16.mxu0 0
      %2159 = vmatmul.mubr.bf16.gmra.mxu0 %v1941
      %v2160 = vpop.f32.mrf.mxu0
      %v2161 = vadd.f32 0.0, %v2160
      %v2162 = vpop.f32.mrf.mxu0
      %v2163 = vpop.f32.mrf.mxu0
      %v2164 = vadd.f32 0.0, %v2163
      %v2165 = vpop.f32.mrf.mxu0
      %2166 = vdwg.mxu0
      %v2167 = vld [vmem:[%s4] sm:$0x1]
      %v2169 = vlaneseq
      %v2170 = vshrl.u32 %v2169, 7
      %v2171 = vsub.s32 0, %v2170
      %v2172 = vrot.slane %v2167, %v2171
      %v2174 = vmul.f32 %v2041, %v2172
      %v2175 = vmul.f32 %v2044, %v2172
      %v2176 = vmul.f32 %v2049, %v2172
      %v2177 = vmul.f32 %v2052, %v2172
      %v2178 = vmul.f32 %v2057, %v2172
      %v2179 = vmul.f32 %v2060, %v2172
      %v2180 = vmul.f32 %v2065, %v2172
      %v2181 = vmul.f32 %v2068, %v2172
      %v2182 = vmul.f32 %v2073, %v2172
      %v2183 = vmul.f32 %v2076, %v2172
      %v2184 = vmul.f32 %v2081, %v2172
      %v2185 = vmul.f32 %v2084, %v2172
      %v2186 = vmul.f32 %v2089, %v2172
      %v2187 = vmul.f32 %v2092, %v2172
      %v2188 = vmul.f32 %v2097, %v2172
      %v2189 = vmul.f32 %v2100, %v2172
      %v2190 = vmul.f32 %v2105, %v2172
      %v2191 = vmul.f32 %v2108, %v2172
      %v2192 = vmul.f32 %v2113, %v2172
      %v2193 = vmul.f32 %v2116, %v2172
      %v2194 = vmul.f32 %v2121, %v2172
      %v2195 = vmul.f32 %v2124, %v2172
      %v2196 = vmul.f32 %v2129, %v2172
      %v2197 = vmul.f32 %v2132, %v2172
      %v2198 = vmul.f32 %v2137, %v2172
      %v2199 = vmul.f32 %v2140, %v2172
      %v2200 = vmul.f32 %v2145, %v2172
      %v2201 = vmul.f32 %v2148, %v2172
      %v2202 = vmul.f32 %v2153, %v2172
      %v2203 = vmul.f32 %v2156, %v2172
      %v2204 = vmul.f32 %v2161, %v2172
      %v2205 = vmul.f32 %v2164, %v2172
      %v2206 = vld [vmem:[%s5] sm:$0x1]
      %v2208 = vlaneseq
      %v2209 = vshrl.u32 %v2208, 7
      %v2210 = vsub.s32 0, %v2209
      %v2211 = vrot.slane %v2206, %v2210
      %v2213 = vadd.f32 %v2174, %v2211
      %v2214 = vadd.f32 %v2175, %v2211
      %v2215 = vadd.f32 %v2176, %v2211
      %v2216 = vadd.f32 %v2177, %v2211
      %v2217 = vadd.f32 %v2178, %v2211
      %v2218 = vadd.f32 %v2179, %v2211
      %v2219 = vadd.f32 %v2180, %v2211
      %v2220 = vadd.f32 %v2181, %v2211
      %v2221 = vadd.f32 %v2182, %v2211
      %v2222 = vadd.f32 %v2183, %v2211
      %v2223 = vadd.f32 %v2184, %v2211
      %v2224 = vadd.f32 %v2185, %v2211
      %v2225 = vadd.f32 %v2186, %v2211
      %v2226 = vadd.f32 %v2187, %v2211
      %v2227 = vadd.f32 %v2188, %v2211
      %v2228 = vadd.f32 %v2189, %v2211
      %v2229 = vadd.f32 %v2190, %v2211
      %v2230 = vadd.f32 %v2191, %v2211
      %v2231 = vadd.f32 %v2192, %v2211
      %v2232 = vadd.f32 %v2193, %v2211
      %v2233 = vadd.f32 %v2194, %v2211
      %v2234 = vadd.f32 %v2195, %v2211
      %v2235 = vadd.f32 %v2196, %v2211
      %v2236 = vadd.f32 %v2197, %v2211
      %v2237 = vadd.f32 %v2198, %v2211
      %v2238 = vadd.f32 %v2199, %v2211
      %v2239 = vadd.f32 %v2200, %v2211
      %v2240 = vadd.f32 %v2201, %v2211
      %v2241 = vadd.f32 %v2202, %v2211
      %v2242 = vadd.f32 %v2203, %v2211
      %v2243 = vadd.f32 %v2204, %v2211
      %v2244 = vadd.f32 %v2205, %v2211
      %vm2245 = vcmp.ge.f32.partialorder %v2213, 0.0
      %vm2246 = vcmp.ge.f32.partialorder %v2214, 0.0
      %vm2247 = vcmp.ge.f32.partialorder %v2215, 0.0
      %vm2248 = vcmp.ge.f32.partialorder %v2216, 0.0
      %vm2249 = vcmp.ge.f32.partialorder %v2217, 0.0
      %vm2250 = vcmp.ge.f32.partialorder %v2218, 0.0
      %vm2251 = vcmp.ge.f32.partialorder %v2219, 0.0
      %vm2252 = vcmp.ge.f32.partialorder %v2220, 0.0
      %vm2253 = vcmp.ge.f32.partialorder %v2221, 0.0
      %vm2254 = vcmp.ge.f32.partialorder %v2222, 0.0
      %vm2255 = vcmp.ge.f32.partialorder %v2223, 0.0
      %vm2256 = vcmp.ge.f32.partialorder %v2224, 0.0
      %vm2257 = vcmp.ge.f32.partialorder %v2225, 0.0
      %vm2258 = vcmp.ge.f32.partialorder %v2226, 0.0
      %vm2259 = vcmp.ge.f32.partialorder %v2227, 0.0
      %vm2260 = vcmp.ge.f32.partialorder %v2228, 0.0
      %vm2261 = vcmp.ge.f32.partialorder %v2229, 0.0
      %vm2262 = vcmp.ge.f32.partialorder %v2230, 0.0
      %vm2263 = vcmp.ge.f32.partialorder %v2231, 0.0
      %vm2264 = vcmp.ge.f32.partialorder %v2232, 0.0
      %vm2265 = vcmp.ge.f32.partialorder %v2233, 0.0
      %vm2266 = vcmp.ge.f32.partialorder %v2234, 0.0
      %vm2267 = vcmp.ge.f32.partialorder %v2235, 0.0
      %vm2268 = vcmp.ge.f32.partialorder %v2236, 0.0
      %vm2269 = vcmp.ge.f32.partialorder %v2237, 0.0
      %vm2270 = vcmp.ge.f32.partialorder %v2238, 0.0
      %vm2271 = vcmp.ge.f32.partialorder %v2239, 0.0
      %vm2272 = vcmp.ge.f32.partialorder %v2240, 0.0
      %vm2273 = vcmp.ge.f32.partialorder %v2241, 0.0
      %vm2274 = vcmp.ge.f32.partialorder %v2242, 0.0
      %vm2275 = vcmp.ge.f32.partialorder %v2243, 0.0
      %vm2276 = vcmp.ge.f32.partialorder %v2244, 0.0
      %v2277 = vmul.f32 %v2213, 0.01
      %v2278 = vmul.f32 %v2214, 0.01
      %v2279 = vmul.f32 %v2215, 0.01
      %v2280 = vmul.f32 %v2216, 0.01
      %v2281 = vmul.f32 %v2217, 0.01
      %v2282 = vmul.f32 %v2218, 0.01
      %v2283 = vmul.f32 %v2219, 0.01
      %v2284 = vmul.f32 %v2220, 0.01
      %v2285 = vmul.f32 %v2221, 0.01
      %v2286 = vmul.f32 %v2222, 0.01
      %v2287 = vmul.f32 %v2223, 0.01
      %v2288 = vmul.f32 %v2224, 0.01
      %v2289 = vmul.f32 %v2225, 0.01
      %v2290 = vmul.f32 %v2226, 0.01
      %v2291 = vmul.f32 %v2227, 0.01
      %v2292 = vmul.f32 %v2228, 0.01
      %v2293 = vmul.f32 %v2229, 0.01
      %v2294 = vmul.f32 %v2230, 0.01
      %v2295 = vmul.f32 %v2231, 0.01
      %v2296 = vmul.f32 %v2232, 0.01
      %v2297 = vmul.f32 %v2233, 0.01
      %v2298 = vmul.f32 %v2234, 0.01
      %v2299 = vmul.f32 %v2235, 0.01
      %v2300 = vmul.f32 %v2236, 0.01
      %v2301 = vmul.f32 %v2237, 0.01
      %v2302 = vmul.f32 %v2238, 0.01
      %v2303 = vmul.f32 %v2239, 0.01
      %v2304 = vmul.f32 %v2240, 0.01
      %v2305 = vmul.f32 %v2241, 0.01
      %v2306 = vmul.f32 %v2242, 0.01
      %v2307 = vmul.f32 %v2243, 0.01
      %v2308 = vmul.f32 %v2244, 0.01
      %v2309 = vsel %vm2245, %v2213, %v2277
      %v2310 = vsel %vm2246, %v2214, %v2278
      %v2311 = vsel %vm2247, %v2215, %v2279
      %v2312 = vsel %vm2248, %v2216, %v2280
      %v2313 = vsel %vm2249, %v2217, %v2281
      %v2314 = vsel %vm2250, %v2218, %v2282
      %v2315 = vsel %vm2251, %v2219, %v2283
      %v2316 = vsel %vm2252, %v2220, %v2284
      %v2317 = vsel %vm2253, %v2221, %v2285
      %v2318 = vsel %vm2254, %v2222, %v2286
      %v2319 = vsel %vm2255, %v2223, %v2287
      %v2320 = vsel %vm2256, %v2224, %v2288
      %v2321 = vsel %vm2257, %v2225, %v2289
      %v2322 = vsel %vm2258, %v2226, %v2290
      %v2323 = vsel %vm2259, %v2227, %v2291
      %v2324 = vsel %vm2260, %v2228, %v2292
      %v2325 = vsel %vm2261, %v2229, %v2293
      %v2326 = vsel %vm2262, %v2230, %v2294
      %v2327 = vsel %vm2263, %v2231, %v2295
      %v2328 = vsel %vm2264, %v2232, %v2296
      %v2329 = vsel %vm2265, %v2233, %v2297
      %v2330 = vsel %vm2266, %v2234, %v2298
      %v2331 = vsel %vm2267, %v2235, %v2299
      %v2332 = vsel %vm2268, %v2236, %v2300
      %v2333 = vsel %vm2269, %v2237, %v2301
      %v2334 = vsel %vm2270, %v2238, %v2302
      %v2335 = vsel %vm2271, %v2239, %v2303
      %v2336 = vsel %vm2272, %v2240, %v2304
      %v2337 = vsel %vm2273, %v2241, %v2305
      %v2338 = vsel %vm2274, %v2242, %v2306
      %v2339 = vsel %vm2275, %v2243, %v2307
      %v2340 = vsel %vm2276, %v2244, %v2308
      %v2373 = vrot.slane %v2309, 7
      %v2374 = vrot.slane %v2310, 7
      %v2375 = vsel %vm518, %v2373, %v2374
      %v2376 = vrot.slane %v2311, 7
      %v2377 = vrot.slane %v2312, 7
      %v2378 = vsel %vm518, %v2376, %v2377
      %v2379 = vrot.slane %v2313, 7
      %v2380 = vrot.slane %v2314, 7
      %v2381 = vsel %vm518, %v2379, %v2380
      %v2382 = vrot.slane %v2315, 7
      %v2383 = vrot.slane %v2316, 7
      %v2384 = vsel %vm518, %v2382, %v2383
      %v2385 = vrot.slane %v2317, 7
      %v2386 = vrot.slane %v2318, 7
      %v2387 = vsel %vm518, %v2385, %v2386
      %v2388 = vrot.slane %v2319, 7
      %v2389 = vrot.slane %v2320, 7
      %v2390 = vsel %vm518, %v2388, %v2389
      %v2391 = vrot.slane %v2321, 7
      %v2392 = vrot.slane %v2322, 7
      %v2393 = vsel %vm518, %v2391, %v2392
      %v2394 = vrot.slane %v2323, 7
      %v2395 = vrot.slane %v2324, 7
      %v2396 = vsel %vm518, %v2394, %v2395
      %v2397 = vrot.slane %v2325, 7
      %v2398 = vrot.slane %v2326, 7
      %v2399 = vsel %vm518, %v2397, %v2398
      %v2400 = vrot.slane %v2327, 7
      %v2401 = vrot.slane %v2328, 7
      %v2402 = vsel %vm518, %v2400, %v2401
      %v2403 = vrot.slane %v2329, 7
      %v2404 = vrot.slane %v2330, 7
      %v2405 = vsel %vm518, %v2403, %v2404
      %v2406 = vrot.slane %v2331, 7
      %v2407 = vrot.slane %v2332, 7
      %v2408 = vsel %vm518, %v2406, %v2407
      %v2409 = vrot.slane %v2333, 7
      %v2410 = vrot.slane %v2334, 7
      %v2411 = vsel %vm518, %v2409, %v2410
      %v2412 = vrot.slane %v2335, 7
      %v2413 = vrot.slane %v2336, 7
      %v2414 = vsel %vm518, %v2412, %v2413
      %v2415 = vrot.slane %v2337, 7
      %v2416 = vrot.slane %v2338, 7
      %v2417 = vsel %vm518, %v2415, %v2416
      %v2418 = vrot.slane %v2339, 7
      %v2419 = vrot.slane %v2340, 7
      %v2420 = vsel %vm518, %v2418, %v2419
      %v2468 = vsel %vm518, 0.0, %v2373
      %v2469 = vsel %vm518, 0.0, %v2376
      %v2470 = vsel %vm518, 0.0, %v2379
      %v2471 = vsel %vm518, 0.0, %v2382
      %v2472 = vsel %vm518, 0.0, %v2385
      %v2473 = vsel %vm518, 0.0, %v2388
      %v2474 = vsel %vm518, 0.0, %v2391
      %v2475 = vsel %vm518, 0.0, %v2394
      %v2476 = vsel %vm518, 0.0, %v2397
      %v2477 = vsel %vm518, 0.0, %v2400
      %v2478 = vsel %vm518, 0.0, %v2403
      %v2479 = vsel %vm518, 0.0, %v2406
      %v2480 = vsel %vm518, 0.0, %v2409
      %v2481 = vsel %vm518, 0.0, %v2412
      %v2482 = vsel %vm518, 0.0, %v2415
      %v2483 = vsel %vm518, 0.0, %v2418
      %v2484 = vsel %vm518, %v2374, 0.0
      %v2485 = vsel %vm518, %v2377, 0.0
      %v2486 = vsel %vm518, %v2380, 0.0
      %v2487 = vsel %vm518, %v2383, 0.0
      %v2488 = vsel %vm518, %v2386, 0.0
      %v2489 = vsel %vm518, %v2389, 0.0
      %v2490 = vsel %vm518, %v2392, 0.0
      %v2491 = vsel %vm518, %v2395, 0.0
      %v2492 = vsel %vm518, %v2398, 0.0
      %v2493 = vsel %vm518, %v2401, 0.0
      %v2494 = vsel %vm518, %v2404, 0.0
      %v2495 = vsel %vm518, %v2407, 0.0
      %v2496 = vsel %vm518, %v2410, 0.0
      %v2497 = vsel %vm518, %v2413, 0.0
      %v2498 = vsel %vm518, %v2416, 0.0
      %v2499 = vsel %vm518, %v2419, 0.0
      %v2530 = vrot.slane %v2468, 1
      %v2531 = vrot.slane %v2375, 1
      %v2532 = vsel %vm677, %v2530, %v2531
      %v2533 = vrot.slane %v2484, 1
      %v2534 = vsel %vm677, %v2531, %v2533
      %v2535 = vrot.slane %v2469, 1
      %v2536 = vrot.slane %v2378, 1
      %v2537 = vsel %vm677, %v2535, %v2536
      %v2538 = vrot.slane %v2485, 1
      %v2539 = vsel %vm677, %v2536, %v2538
      %v2540 = vrot.slane %v2470, 1
      %v2541 = vrot.slane %v2381, 1
      %v2542 = vsel %vm677, %v2540, %v2541
      %v2543 = vrot.slane %v2486, 1
      %v2544 = vsel %vm677, %v2541, %v2543
      %v2545 = vrot.slane %v2471, 1
      %v2546 = vrot.slane %v2384, 1
      %v2547 = vsel %vm677, %v2545, %v2546
      %v2548 = vrot.slane %v2487, 1
      %v2549 = vsel %vm677, %v2546, %v2548
      %v2550 = vrot.slane %v2472, 1
      %v2551 = vrot.slane %v2387, 1
      %v2552 = vsel %vm677, %v2550, %v2551
      %v2553 = vrot.slane %v2488, 1
      %v2554 = vsel %vm677, %v2551, %v2553
      %v2555 = vrot.slane %v2473, 1
      %v2556 = vrot.slane %v2390, 1
      %v2557 = vsel %vm677, %v2555, %v2556
      %v2558 = vrot.slane %v2489, 1
      %v2559 = vsel %vm677, %v2556, %v2558
      %v2560 = vrot.slane %v2474, 1
      %v2561 = vrot.slane %v2393, 1
      %v2562 = vsel %vm677, %v2560, %v2561
      %v2563 = vrot.slane %v2490, 1
      %v2564 = vsel %vm677, %v2561, %v2563
      %v2565 = vrot.slane %v2475, 1
      %v2566 = vrot.slane %v2396, 1
      %v2567 = vsel %vm677, %v2565, %v2566
      %v2568 = vrot.slane %v2491, 1
      %v2569 = vsel %vm677, %v2566, %v2568
      %v2570 = vrot.slane %v2476, 1
      %v2571 = vrot.slane %v2399, 1
      %v2572 = vsel %vm677, %v2570, %v2571
      %v2573 = vrot.slane %v2492, 1
      %v2574 = vsel %vm677, %v2571, %v2573
      %v2575 = vrot.slane %v2477, 1
      %v2576 = vrot.slane %v2402, 1
      %v2577 = vsel %vm677, %v2575, %v2576
      %v2578 = vrot.slane %v2493, 1
      %v2579 = vsel %vm677, %v2576, %v2578
      %v2580 = vrot.slane %v2478, 1
      %v2581 = vrot.slane %v2405, 1
      %v2582 = vsel %vm677, %v2580, %v2581
      %v2583 = vrot.slane %v2494, 1
      %v2584 = vsel %vm677, %v2581, %v2583
      %v2585 = vrot.slane %v2479, 1
      %v2586 = vrot.slane %v2408, 1
      %v2587 = vsel %vm677, %v2585, %v2586
      %v2588 = vrot.slane %v2495, 1
      %v2589 = vsel %vm677, %v2586, %v2588
      %v2590 = vrot.slane %v2480, 1
      %v2591 = vrot.slane %v2411, 1
      %v2592 = vsel %vm677, %v2590, %v2591
      %v2593 = vrot.slane %v2496, 1
      %v2594 = vsel %vm677, %v2591, %v2593
      %v2595 = vrot.slane %v2481, 1
      %v2596 = vrot.slane %v2414, 1
      %v2597 = vsel %vm677, %v2595, %v2596
      %v2598 = vrot.slane %v2497, 1
      %v2599 = vsel %vm677, %v2596, %v2598
      %v2600 = vrot.slane %v2482, 1
      %v2601 = vrot.slane %v2417, 1
      %v2602 = vsel %vm677, %v2600, %v2601
      %v2603 = vrot.slane %v2498, 1
      %v2604 = vsel %vm677, %v2601, %v2603
      %v2605 = vrot.slane %v2468, 2
      %v2606 = vrot.slane %v2375, 2
      %v2607 = vsel %vm755, %v2605, %v2606
      %v2608 = vrot.slane %v2484, 2
      %v2609 = vsel %vm755, %v2606, %v2608
      %v2610 = vrot.slane %v2469, 2
      %v2611 = vrot.slane %v2378, 2
      %v2612 = vsel %vm755, %v2610, %v2611
      %v2613 = vrot.slane %v2485, 2
      %v2614 = vsel %vm755, %v2611, %v2613
      %v2615 = vrot.slane %v2470, 2
      %v2616 = vrot.slane %v2381, 2
      %v2617 = vsel %vm755, %v2615, %v2616
      %v2618 = vrot.slane %v2486, 2
      %v2619 = vsel %vm755, %v2616, %v2618
      %v2620 = vrot.slane %v2471, 2
      %v2621 = vrot.slane %v2384, 2
      %v2622 = vsel %vm755, %v2620, %v2621
      %v2623 = vrot.slane %v2487, 2
      %v2624 = vsel %vm755, %v2621, %v2623
      %v2625 = vrot.slane %v2472, 2
      %v2626 = vrot.slane %v2387, 2
      %v2627 = vsel %vm755, %v2625, %v2626
      %v2628 = vrot.slane %v2488, 2
      %v2629 = vsel %vm755, %v2626, %v2628
      %v2630 = vrot.slane %v2473, 2
      %v2631 = vrot.slane %v2390, 2
      %v2632 = vsel %vm755, %v2630, %v2631
      %v2633 = vrot.slane %v2489, 2
      %v2634 = vsel %vm755, %v2631, %v2633
      %v2635 = vrot.slane %v2474, 2
      %v2636 = vrot.slane %v2393, 2
      %v2637 = vsel %vm755, %v2635, %v2636
      %v2638 = vrot.slane %v2490, 2
      %v2639 = vsel %vm755, %v2636, %v2638
      %v2640 = vrot.slane %v2475, 2
      %v2641 = vrot.slane %v2396, 2
      %v2642 = vsel %vm755, %v2640, %v2641
      %v2643 = vrot.slane %v2491, 2
      %v2644 = vsel %vm755, %v2641, %v2643
      %v2645 = vrot.slane %v2476, 2
      %v2646 = vrot.slane %v2399, 2
      %v2647 = vsel %vm755, %v2645, %v2646
      %v2648 = vrot.slane %v2492, 2
      %v2649 = vsel %vm755, %v2646, %v2648
      %v2650 = vrot.slane %v2477, 2
      %v2651 = vrot.slane %v2402, 2
      %v2652 = vsel %vm755, %v2650, %v2651
      %v2653 = vrot.slane %v2493, 2
      %v2654 = vsel %vm755, %v2651, %v2653
      %v2655 = vrot.slane %v2478, 2
      %v2656 = vrot.slane %v2405, 2
      %v2657 = vsel %vm755, %v2655, %v2656
      %v2658 = vrot.slane %v2494, 2
      %v2659 = vsel %vm755, %v2656, %v2658
      %v2660 = vrot.slane %v2479, 2
      %v2661 = vrot.slane %v2408, 2
      %v2662 = vsel %vm755, %v2660, %v2661
      %v2663 = vrot.slane %v2495, 2
      %v2664 = vsel %vm755, %v2661, %v2663
      %v2665 = vrot.slane %v2480, 2
      %v2666 = vrot.slane %v2411, 2
      %v2667 = vsel %vm755, %v2665, %v2666
      %v2668 = vrot.slane %v2496, 2
      %v2669 = vsel %vm755, %v2666, %v2668
      %v2670 = vrot.slane %v2481, 2
      %v2671 = vrot.slane %v2414, 2
      %v2672 = vsel %vm755, %v2670, %v2671
      %v2673 = vrot.slane %v2497, 2
      %v2674 = vsel %vm755, %v2671, %v2673
      %v2675 = vrot.slane %v2482, 2
      %v2676 = vrot.slane %v2417, 2
      %v2677 = vsel %vm755, %v2675, %v2676
      %v2678 = vrot.slane %v2498, 2
      %v2679 = vsel %vm755, %v2676, %v2678
      %v2682 = vrot.slane %v2483, 1
      %v2683 = vrot.slane %v2420, 1
      %v2684 = vsel %vm677, %v2682, %v2683
      %v2685 = vrot.slane %v2499, 1
      %v2686 = vsel %vm677, %v2683, %v2685
      %v2687 = vrot.slane %v2483, 2
      %v2688 = vrot.slane %v2420, 2
      %v2689 = vsel %vm755, %v2687, %v2688
      %v2690 = vrot.slane %v2499, 2
      %v2691 = vsel %vm755, %v2688, %v2690
      %2692 = vrot.lane.b32.xlu0 %v2532, 4
      %v2693 = vpop.permute.xlu0 %2692
      %2694 = vrot.lane.b32.xlu0 %v2534, 4
      %v2695 = vpop.permute.xlu0 %2694
      %2696 = vrot.lane.b32.xlu0 %v2537, 4
      %v2697 = vpop.permute.xlu0 %2696
      %2698 = vrot.lane.b32.xlu0 %v2539, 4
      %v2699 = vpop.permute.xlu0 %2698
      %2700 = vrot.lane.b32.xlu0 %v2542, 4
      %v2701 = vpop.permute.xlu0 %2700
      %2702 = vrot.lane.b32.xlu0 %v2544, 4
      %v2703 = vpop.permute.xlu0 %2702
      %2704 = vrot.lane.b32.xlu0 %v2547, 4
      %v2705 = vpop.permute.xlu0 %2704
      %2706 = vrot.lane.b32.xlu0 %v2549, 4
      %v2707 = vpop.permute.xlu0 %2706
      %2708 = vrot.lane.b32.xlu0 %v2552, 4
      %v2709 = vpop.permute.xlu0 %2708
      %2710 = vrot.lane.b32.xlu0 %v2554, 4
      %v2711 = vpop.permute.xlu0 %2710
      %2712 = vrot.lane.b32.xlu0 %v2557, 4
      %v2713 = vpop.permute.xlu0 %2712
      %2714 = vrot.lane.b32.xlu0 %v2559, 4
      %v2715 = vpop.permute.xlu0 %2714
      %2716 = vrot.lane.b32.xlu0 %v2562, 4
      %v2717 = vpop.permute.xlu0 %2716
      %2718 = vrot.lane.b32.xlu0 %v2564, 4
      %v2719 = vpop.permute.xlu0 %2718
      %2720 = vrot.lane.b32.xlu0 %v2567, 4
      %v2721 = vpop.permute.xlu0 %2720
      %2722 = vrot.lane.b32.xlu0 %v2569, 4
      %v2723 = vpop.permute.xlu0 %2722
      %2724 = vrot.lane.b32.xlu0 %v2572, 4
      %v2725 = vpop.permute.xlu0 %2724
      %2726 = vrot.lane.b32.xlu0 %v2574, 4
      %v2727 = vpop.permute.xlu0 %2726
      %2728 = vrot.lane.b32.xlu0 %v2577, 4
      %v2729 = vpop.permute.xlu0 %2728
      %2730 = vrot.lane.b32.xlu0 %v2579, 4
      %v2731 = vpop.permute.xlu0 %2730
      %2732 = vrot.lane.b32.xlu0 %v2582, 4
      %v2733 = vpop.permute.xlu0 %2732
      %2734 = vrot.lane.b32.xlu0 %v2584, 4
      %v2735 = vpop.permute.xlu0 %2734
      %2736 = vrot.lane.b32.xlu0 %v2587, 4
      %v2737 = vpop.permute.xlu0 %2736
      %2738 = vrot.lane.b32.xlu0 %v2589, 4
      %v2739 = vpop.permute.xlu0 %2738
      %2740 = vrot.lane.b32.xlu0 %v2592, 4
      %v2741 = vpop.permute.xlu0 %2740
      %2742 = vrot.lane.b32.xlu0 %v2594, 4
      %v2743 = vpop.permute.xlu0 %2742
      %2744 = vrot.lane.b32.xlu0 %v2597, 4
      %v2745 = vpop.permute.xlu0 %2744
      %2746 = vrot.lane.b32.xlu0 %v2599, 4
      %v2747 = vpop.permute.xlu0 %2746
      %2748 = vrot.lane.b32.xlu0 %v2602, 4
      %v2749 = vpop.permute.xlu0 %2748
      %2750 = vrot.lane.b32.xlu0 %v2604, 4
      %v2751 = vpop.permute.xlu0 %2750
      %2782 = vrot.lane.b32.xlu0 %v2607, 8
      %v2783 = vpop.permute.xlu0 %2782
      %2784 = vrot.lane.b32.xlu0 %v2609, 8
      %v2785 = vpop.permute.xlu0 %2784
      %2786 = vrot.lane.b32.xlu0 %v2612, 8
      %v2787 = vpop.permute.xlu0 %2786
      %2788 = vrot.lane.b32.xlu0 %v2614, 8
      %v2789 = vpop.permute.xlu0 %2788
      %2790 = vrot.lane.b32.xlu0 %v2617, 8
      %v2791 = vpop.permute.xlu0 %2790
      %2792 = vrot.lane.b32.xlu0 %v2619, 8
      %v2793 = vpop.permute.xlu0 %2792
      %2794 = vrot.lane.b32.xlu0 %v2622, 8
      %v2795 = vpop.permute.xlu0 %2794
      %2796 = vrot.lane.b32.xlu0 %v2624, 8
      %v2797 = vpop.permute.xlu0 %2796
      %2798 = vrot.lane.b32.xlu0 %v2627, 8
      %v2799 = vpop.permute.xlu0 %2798
      %2800 = vrot.lane.b32.xlu0 %v2629, 8
      %v2801 = vpop.permute.xlu0 %2800
      %2802 = vrot.lane.b32.xlu0 %v2632, 8
      %v2803 = vpop.permute.xlu0 %2802
      %2804 = vrot.lane.b32.xlu0 %v2634, 8
      %v2805 = vpop.permute.xlu0 %2804
      %2806 = vrot.lane.b32.xlu0 %v2637, 8
      %v2807 = vpop.permute.xlu0 %2806
      %2808 = vrot.lane.b32.xlu0 %v2639, 8
      %v2809 = vpop.permute.xlu0 %2808
      %2810 = vrot.lane.b32.xlu0 %v2642, 8
      %v2811 = vpop.permute.xlu0 %2810
      %2812 = vrot.lane.b32.xlu0 %v2644, 8
      %v2813 = vpop.permute.xlu0 %2812
      %2814 = vrot.lane.b32.xlu0 %v2647, 8
      %v2815 = vpop.permute.xlu0 %2814
      %2816 = vrot.lane.b32.xlu0 %v2649, 8
      %v2817 = vpop.permute.xlu0 %2816
      %2818 = vrot.lane.b32.xlu0 %v2652, 8
      %v2819 = vpop.permute.xlu0 %2818
      %2820 = vrot.lane.b32.xlu0 %v2654, 8
      %v2821 = vpop.permute.xlu0 %2820
      %2822 = vrot.lane.b32.xlu0 %v2657, 8
      %v2823 = vpop.permute.xlu0 %2822
      %2824 = vrot.lane.b32.xlu0 %v2659, 8
      %v2825 = vpop.permute.xlu0 %2824
      %2826 = vrot.lane.b32.xlu0 %v2662, 8
      %v2827 = vpop.permute.xlu0 %2826
      %2828 = vrot.lane.b32.xlu0 %v2664, 8
      %v2829 = vpop.permute.xlu0 %2828
      %2830 = vrot.lane.b32.xlu0 %v2667, 8
      %v2831 = vpop.permute.xlu0 %2830
      %2832 = vrot.lane.b32.xlu0 %v2669, 8
      %v2833 = vpop.permute.xlu0 %2832
      %2834 = vrot.lane.b32.xlu0 %v2672, 8
      %v2835 = vpop.permute.xlu0 %2834
      %2836 = vrot.lane.b32.xlu0 %v2674, 8
      %v2837 = vpop.permute.xlu0 %2836
      %2838 = vrot.lane.b32.xlu0 %v2677, 8
      %v2839 = vpop.permute.xlu0 %2838
      %2840 = vrot.lane.b32.xlu0 %v2679, 8
      %v2841 = vpop.permute.xlu0 %2840
      %2872 = vrot.lane.b32.xlu0 %v2468, 12
      %v2873 = vpop.permute.xlu0 %2872
      %2874 = vrot.lane.b32.xlu0 %v2375, 12
      %v2875 = vpop.permute.xlu0 %2874
      %2876 = vrot.lane.b32.xlu0 %v2469, 12
      %v2877 = vpop.permute.xlu0 %2876
      %2878 = vrot.lane.b32.xlu0 %v2378, 12
      %v2879 = vpop.permute.xlu0 %2878
      %2880 = vrot.lane.b32.xlu0 %v2470, 12
      %v2881 = vpop.permute.xlu0 %2880
      %2882 = vrot.lane.b32.xlu0 %v2381, 12
      %v2883 = vpop.permute.xlu0 %2882
      %2884 = vrot.lane.b32.xlu0 %v2471, 12
      %v2885 = vpop.permute.xlu0 %2884
      %2886 = vrot.lane.b32.xlu0 %v2384, 12
      %v2887 = vpop.permute.xlu0 %2886
      %2888 = vrot.lane.b32.xlu0 %v2472, 12
      %v2889 = vpop.permute.xlu0 %2888
      %2890 = vrot.lane.b32.xlu0 %v2387, 12
      %v2891 = vpop.permute.xlu0 %2890
      %2892 = vrot.lane.b32.xlu0 %v2473, 12
      %v2893 = vpop.permute.xlu0 %2892
      %2894 = vrot.lane.b32.xlu0 %v2390, 12
      %v2895 = vpop.permute.xlu0 %2894
      %2896 = vrot.lane.b32.xlu0 %v2474, 12
      %v2897 = vpop.permute.xlu0 %2896
      %2898 = vrot.lane.b32.xlu0 %v2393, 12
      %v2899 = vpop.permute.xlu0 %2898
      %2900 = vrot.lane.b32.xlu0 %v2475, 12
      %v2901 = vpop.permute.xlu0 %2900
      %2902 = vrot.lane.b32.xlu0 %v2396, 12
      %v2903 = vpop.permute.xlu0 %2902
      %2904 = vrot.lane.b32.xlu0 %v2476, 12
      %v2905 = vpop.permute.xlu0 %2904
      %2906 = vrot.lane.b32.xlu0 %v2399, 12
      %v2907 = vpop.permute.xlu0 %2906
      %2908 = vrot.lane.b32.xlu0 %v2477, 12
      %v2909 = vpop.permute.xlu0 %2908
      %2910 = vrot.lane.b32.xlu0 %v2402, 12
      %v2911 = vpop.permute.xlu0 %2910
      %2912 = vrot.lane.b32.xlu0 %v2478, 12
      %v2913 = vpop.permute.xlu0 %2912
      %2914 = vrot.lane.b32.xlu0 %v2405, 12
      %v2915 = vpop.permute.xlu0 %2914
      %2916 = vrot.lane.b32.xlu0 %v2479, 12
      %v2917 = vpop.permute.xlu0 %2916
      %2918 = vrot.lane.b32.xlu0 %v2408, 12
      %v2919 = vpop.permute.xlu0 %2918
      %2920 = vrot.lane.b32.xlu0 %v2480, 12
      %v2921 = vpop.permute.xlu0 %2920
      %2922 = vrot.lane.b32.xlu0 %v2411, 12
      %v2923 = vpop.permute.xlu0 %2922
      %2924 = vrot.lane.b32.xlu0 %v2481, 12
      %v2925 = vpop.permute.xlu0 %2924
      %2926 = vrot.lane.b32.xlu0 %v2414, 12
      %v2927 = vpop.permute.xlu0 %2926
      %2928 = vrot.lane.b32.xlu0 %v2482, 12
      %v2929 = vpop.permute.xlu0 %2928
      %2930 = vrot.lane.b32.xlu0 %v2417, 12
      %v2931 = vpop.permute.xlu0 %2930
      %2932 = vrot.lane.b32.xlu0 %v2483, 12
      %v2933 = vpop.permute.xlu0 %2932
      %2934 = vrot.lane.b32.xlu0 %v2420, 12
      %v2935 = vpop.permute.xlu0 %2934
      %2968 = vrot.lane.b32.xlu0 %v2532, 16
      %v2969 = vpop.permute.xlu0 %2968
      %2970 = vrot.lane.b32.xlu0 %v2534, 16
      %v2971 = vpop.permute.xlu0 %2970
      %2972 = vrot.lane.b32.xlu0 %v2537, 16
      %v2973 = vpop.permute.xlu0 %2972
      %2974 = vrot.lane.b32.xlu0 %v2539, 16
      %v2975 = vpop.permute.xlu0 %2974
      %2976 = vrot.lane.b32.xlu0 %v2542, 16
      %v2977 = vpop.permute.xlu0 %2976
      %2978 = vrot.lane.b32.xlu0 %v2544, 16
      %v2979 = vpop.permute.xlu0 %2978
      %2980 = vrot.lane.b32.xlu0 %v2547, 16
      %v2981 = vpop.permute.xlu0 %2980
      %2982 = vrot.lane.b32.xlu0 %v2549, 16
      %v2983 = vpop.permute.xlu0 %2982
      %2984 = vrot.lane.b32.xlu0 %v2552, 16
      %v2985 = vpop.permute.xlu0 %2984
      %2986 = vrot.lane.b32.xlu0 %v2554, 16
      %v2987 = vpop.permute.xlu0 %2986
      %2988 = vrot.lane.b32.xlu0 %v2557, 16
      %v2989 = vpop.permute.xlu0 %2988
      %2990 = vrot.lane.b32.xlu0 %v2559, 16
      %v2991 = vpop.permute.xlu0 %2990
      %2992 = vrot.lane.b32.xlu0 %v2562, 16
      %v2993 = vpop.permute.xlu0 %2992
      %2994 = vrot.lane.b32.xlu0 %v2564, 16
      %v2995 = vpop.permute.xlu0 %2994
      %2996 = vrot.lane.b32.xlu0 %v2567, 16
      %v2997 = vpop.permute.xlu0 %2996
      %2998 = vrot.lane.b32.xlu0 %v2569, 16
      %v2999 = vpop.permute.xlu0 %2998
      %3000 = vrot.lane.b32.xlu0 %v2572, 16
      %v3001 = vpop.permute.xlu0 %3000
      %3002 = vrot.lane.b32.xlu0 %v2574, 16
      %v3003 = vpop.permute.xlu0 %3002
      %3004 = vrot.lane.b32.xlu0 %v2577, 16
      %v3005 = vpop.permute.xlu0 %3004
      %3006 = vrot.lane.b32.xlu0 %v2579, 16
      %v3007 = vpop.permute.xlu0 %3006
      %3008 = vrot.lane.b32.xlu0 %v2582, 16
      %v3009 = vpop.permute.xlu0 %3008
      %3010 = vrot.lane.b32.xlu0 %v2584, 16
      %v3011 = vpop.permute.xlu0 %3010
      %3012 = vrot.lane.b32.xlu0 %v2587, 16
      %v3013 = vpop.permute.xlu0 %3012
      %3014 = vrot.lane.b32.xlu0 %v2589, 16
      %v3015 = vpop.permute.xlu0 %3014
      %3016 = vrot.lane.b32.xlu0 %v2592, 16
      %v3017 = vpop.permute.xlu0 %3016
      %3018 = vrot.lane.b32.xlu0 %v2594, 16
      %v3019 = vpop.permute.xlu0 %3018
      %3020 = vrot.lane.b32.xlu0 %v2597, 16
      %v3021 = vpop.permute.xlu0 %3020
      %3022 = vrot.lane.b32.xlu0 %v2599, 16
      %v3023 = vpop.permute.xlu0 %3022
      %3024 = vrot.lane.b32.xlu0 %v2602, 16
      %v3025 = vpop.permute.xlu0 %3024
      %3026 = vrot.lane.b32.xlu0 %v2604, 16
      %v3027 = vpop.permute.xlu0 %3026
      %3028 = vrot.lane.b32.xlu0 %v2684, 16
      %v3029 = vpop.permute.xlu0 %3028
      %3030 = vrot.lane.b32.xlu0 %v2686, 16
      %v3031 = vpop.permute.xlu0 %3030
      %3064 = vrot.lane.b32.xlu0 %v2607, 20
      %v3065 = vpop.permute.xlu0 %3064
      %3066 = vrot.lane.b32.xlu0 %v2609, 20
      %v3067 = vpop.permute.xlu0 %3066
      %3068 = vrot.lane.b32.xlu0 %v2612, 20
      %v3069 = vpop.permute.xlu0 %3068
      %3070 = vrot.lane.b32.xlu0 %v2614, 20
      %v3071 = vpop.permute.xlu0 %3070
      %3072 = vrot.lane.b32.xlu0 %v2617, 20
      %v3073 = vpop.permute.xlu0 %3072
      %3074 = vrot.lane.b32.xlu0 %v2619, 20
      %v3075 = vpop.permute.xlu0 %3074
      %3076 = vrot.lane.b32.xlu0 %v2622, 20
      %v3077 = vpop.permute.xlu0 %3076
      %3078 = vrot.lane.b32.xlu0 %v2624, 20
      %v3079 = vpop.permute.xlu0 %3078
      %3080 = vrot.lane.b32.xlu0 %v2627, 20
      %v3081 = vpop.permute.xlu0 %3080
      %3082 = vrot.lane.b32.xlu0 %v2629, 20
      %v3083 = vpop.permute.xlu0 %3082
      %3084 = vrot.lane.b32.xlu0 %v2632, 20
      %v3085 = vpop.permute.xlu0 %3084
      %3086 = vrot.lane.b32.xlu0 %v2634, 20
      %v3087 = vpop.permute.xlu0 %3086
      %3088 = vrot.lane.b32.xlu0 %v2637, 20
      %v3089 = vpop.permute.xlu0 %3088
      %3090 = vrot.lane.b32.xlu0 %v2639, 20
      %v3091 = vpop.permute.xlu0 %3090
      %3092 = vrot.lane.b32.xlu0 %v2642, 20
      %v3093 = vpop.permute.xlu0 %3092
      %3094 = vrot.lane.b32.xlu0 %v2644, 20
      %v3095 = vpop.permute.xlu0 %3094
      %3096 = vrot.lane.b32.xlu0 %v2647, 20
      %v3097 = vpop.permute.xlu0 %3096
      %3098 = vrot.lane.b32.xlu0 %v2649, 20
      %v3099 = vpop.permute.xlu0 %3098
      %3100 = vrot.lane.b32.xlu0 %v2652, 20
      %v3101 = vpop.permute.xlu0 %3100
      %3102 = vrot.lane.b32.xlu0 %v2654, 20
      %v3103 = vpop.permute.xlu0 %3102
      %3104 = vrot.lane.b32.xlu0 %v2657, 20
      %v3105 = vpop.permute.xlu0 %3104
      %3106 = vrot.lane.b32.xlu0 %v2659, 20
      %v3107 = vpop.permute.xlu0 %3106
      %3108 = vrot.lane.b32.xlu0 %v2662, 20
      %v3109 = vpop.permute.xlu0 %3108
      %3110 = vrot.lane.b32.xlu0 %v2664, 20
      %v3111 = vpop.permute.xlu0 %3110
      %3112 = vrot.lane.b32.xlu0 %v2667, 20
      %v3113 = vpop.permute.xlu0 %3112
      %3114 = vrot.lane.b32.xlu0 %v2669, 20
      %v3115 = vpop.permute.xlu0 %3114
      %3116 = vrot.lane.b32.xlu0 %v2672, 20
      %v3117 = vpop.permute.xlu0 %3116
      %3118 = vrot.lane.b32.xlu0 %v2674, 20
      %v3119 = vpop.permute.xlu0 %3118
      %3120 = vrot.lane.b32.xlu0 %v2677, 20
      %v3121 = vpop.permute.xlu0 %3120
      %3122 = vrot.lane.b32.xlu0 %v2679, 20
      %v3123 = vpop.permute.xlu0 %3122
      %3124 = vrot.lane.b32.xlu0 %v2689, 20
      %v3125 = vpop.permute.xlu0 %3124
      %3126 = vrot.lane.b32.xlu0 %v2691, 20
      %v3127 = vpop.permute.xlu0 %3126
      %3160 = vrot.lane.b32.xlu0 %v2469, 24
      %v3161 = vpop.permute.xlu0 %3160
      %3162 = vrot.lane.b32.xlu0 %v2378, 24
      %v3163 = vpop.permute.xlu0 %3162
      %3164 = vrot.lane.b32.xlu0 %v2470, 24
      %v3165 = vpop.permute.xlu0 %3164
      %3166 = vrot.lane.b32.xlu0 %v2381, 24
      %v3167 = vpop.permute.xlu0 %3166
      %3168 = vrot.lane.b32.xlu0 %v2471, 24
      %v3169 = vpop.permute.xlu0 %3168
      %3170 = vrot.lane.b32.xlu0 %v2384, 24
      %v3171 = vpop.permute.xlu0 %3170
      %3172 = vrot.lane.b32.xlu0 %v2472, 24
      %v3173 = vpop.permute.xlu0 %3172
      %3174 = vrot.lane.b32.xlu0 %v2387, 24
      %v3175 = vpop.permute.xlu0 %3174
      %3176 = vrot.lane.b32.xlu0 %v2473, 24
      %v3177 = vpop.permute.xlu0 %3176
      %3178 = vrot.lane.b32.xlu0 %v2390, 24
      %v3179 = vpop.permute.xlu0 %3178
      %3180 = vrot.lane.b32.xlu0 %v2474, 24
      %v3181 = vpop.permute.xlu0 %3180
      %3182 = vrot.lane.b32.xlu0 %v2393, 24
      %v3183 = vpop.permute.xlu0 %3182
      %3184 = vrot.lane.b32.xlu0 %v2475, 24
      %v3185 = vpop.permute.xlu0 %3184
      %3186 = vrot.lane.b32.xlu0 %v2396, 24
      %v3187 = vpop.permute.xlu0 %3186
      %3188 = vrot.lane.b32.xlu0 %v2476, 24
      %v3189 = vpop.permute.xlu0 %3188
      %3190 = vrot.lane.b32.xlu0 %v2399, 24
      %v3191 = vpop.permute.xlu0 %3190
      %3192 = vrot.lane.b32.xlu0 %v2477, 24
      %v3193 = vpop.permute.xlu0 %3192
      %3194 = vrot.lane.b32.xlu0 %v2402, 24
      %v3195 = vpop.permute.xlu0 %3194
      %3196 = vrot.lane.b32.xlu0 %v2478, 24
      %v3197 = vpop.permute.xlu0 %3196
      %3198 = vrot.lane.b32.xlu0 %v2405, 24
      %v3199 = vpop.permute.xlu0 %3198
      %3200 = vrot.lane.b32.xlu0 %v2479, 24
      %v3201 = vpop.permute.xlu0 %3200
      %3202 = vrot.lane.b32.xlu0 %v2408, 24
      %v3203 = vpop.permute.xlu0 %3202
      %3204 = vrot.lane.b32.xlu0 %v2480, 24
      %v3205 = vpop.permute.xlu0 %3204
      %3206 = vrot.lane.b32.xlu0 %v2411, 24
      %v3207 = vpop.permute.xlu0 %3206
      %3208 = vrot.lane.b32.xlu0 %v2481, 24
      %v3209 = vpop.permute.xlu0 %3208
      %3210 = vrot.lane.b32.xlu0 %v2414, 24
      %v3211 = vpop.permute.xlu0 %3210
      %3212 = vrot.lane.b32.xlu0 %v2482, 24
      %v3213 = vpop.permute.xlu0 %3212
      %3214 = vrot.lane.b32.xlu0 %v2417, 24
      %v3215 = vpop.permute.xlu0 %3214
      %3216 = vrot.lane.b32.xlu0 %v2483, 24
      %v3217 = vpop.permute.xlu0 %3216
      %3218 = vrot.lane.b32.xlu0 %v2420, 24
      %v3219 = vpop.permute.xlu0 %3218
      %3250 = vrot.lane.b32.xlu0 %v2537, 28
      %v3251 = vpop.permute.xlu0 %3250
      %3252 = vrot.lane.b32.xlu0 %v2539, 28
      %v3253 = vpop.permute.xlu0 %3252
      %3254 = vrot.lane.b32.xlu0 %v2542, 28
      %v3255 = vpop.permute.xlu0 %3254
      %3256 = vrot.lane.b32.xlu0 %v2544, 28
      %v3257 = vpop.permute.xlu0 %3256
      %3258 = vrot.lane.b32.xlu0 %v2547, 28
      %v3259 = vpop.permute.xlu0 %3258
      %3260 = vrot.lane.b32.xlu0 %v2549, 28
      %v3261 = vpop.permute.xlu0 %3260
      %3262 = vrot.lane.b32.xlu0 %v2552, 28
      %v3263 = vpop.permute.xlu0 %3262
      %3264 = vrot.lane.b32.xlu0 %v2554, 28
      %v3265 = vpop.permute.xlu0 %3264
      %3266 = vrot.lane.b32.xlu0 %v2557, 28
      %v3267 = vpop.permute.xlu0 %3266
      %3268 = vrot.lane.b32.xlu0 %v2559, 28
      %v3269 = vpop.permute.xlu0 %3268
      %3270 = vrot.lane.b32.xlu0 %v2562, 28
      %v3271 = vpop.permute.xlu0 %3270
      %3272 = vrot.lane.b32.xlu0 %v2564, 28
      %v3273 = vpop.permute.xlu0 %3272
      %3274 = vrot.lane.b32.xlu0 %v2567, 28
      %v3275 = vpop.permute.xlu0 %3274
      %3276 = vrot.lane.b32.xlu0 %v2569, 28
      %v3277 = vpop.permute.xlu0 %3276
      %3278 = vrot.lane.b32.xlu0 %v2572, 28
      %v3279 = vpop.permute.xlu0 %3278
      %3280 = vrot.lane.b32.xlu0 %v2574, 28
      %v3281 = vpop.permute.xlu0 %3280
      %3282 = vrot.lane.b32.xlu0 %v2577, 28
      %v3283 = vpop.permute.xlu0 %3282
      %3284 = vrot.lane.b32.xlu0 %v2579, 28
      %v3285 = vpop.permute.xlu0 %3284
      %3286 = vrot.lane.b32.xlu0 %v2582, 28
      %v3287 = vpop.permute.xlu0 %3286
      %3288 = vrot.lane.b32.xlu0 %v2584, 28
      %v3289 = vpop.permute.xlu0 %3288
      %3290 = vrot.lane.b32.xlu0 %v2587, 28
      %v3291 = vpop.permute.xlu0 %3290
      %3292 = vrot.lane.b32.xlu0 %v2589, 28
      %v3293 = vpop.permute.xlu0 %3292
      %3294 = vrot.lane.b32.xlu0 %v2592, 28
      %v3295 = vpop.permute.xlu0 %3294
      %3296 = vrot.lane.b32.xlu0 %v2594, 28
      %v3297 = vpop.permute.xlu0 %3296
      %3298 = vrot.lane.b32.xlu0 %v2597, 28
      %v3299 = vpop.permute.xlu0 %3298
      %3300 = vrot.lane.b32.xlu0 %v2599, 28
      %v3301 = vpop.permute.xlu0 %3300
      %3302 = vrot.lane.b32.xlu0 %v2602, 28
      %v3303 = vpop.permute.xlu0 %3302
      %3304 = vrot.lane.b32.xlu0 %v2604, 28
      %v3305 = vpop.permute.xlu0 %3304
      %3306 = vrot.lane.b32.xlu0 %v2684, 28
      %v3307 = vpop.permute.xlu0 %3306
      %3308 = vrot.lane.b32.xlu0 %v2686, 28
      %v3309 = vpop.permute.xlu0 %3308
      %3340 = vrot.lane.b32.xlu0 %v2612, 32
      %v3341 = vpop.permute.xlu0 %3340
      %3342 = vrot.lane.b32.xlu0 %v2614, 32
      %v3343 = vpop.permute.xlu0 %3342
      %3344 = vrot.lane.b32.xlu0 %v2617, 32
      %v3345 = vpop.permute.xlu0 %3344
      %3346 = vrot.lane.b32.xlu0 %v2619, 32
      %v3347 = vpop.permute.xlu0 %3346
      %3348 = vrot.lane.b32.xlu0 %v2622, 32
      %v3349 = vpop.permute.xlu0 %3348
      %3350 = vrot.lane.b32.xlu0 %v2624, 32
      %v3351 = vpop.permute.xlu0 %3350
      %3352 = vrot.lane.b32.xlu0 %v2627, 32
      %v3353 = vpop.permute.xlu0 %3352
      %3354 = vrot.lane.b32.xlu0 %v2629, 32
      %v3355 = vpop.permute.xlu0 %3354
      %3356 = vrot.lane.b32.xlu0 %v2632, 32
      %v3357 = vpop.permute.xlu0 %3356
      %3358 = vrot.lane.b32.xlu0 %v2634, 32
      %v3359 = vpop.permute.xlu0 %3358
      %3360 = vrot.lane.b32.xlu0 %v2637, 32
      %v3361 = vpop.permute.xlu0 %3360
      %3362 = vrot.lane.b32.xlu0 %v2639, 32
      %v3363 = vpop.permute.xlu0 %3362
      %3364 = vrot.lane.b32.xlu0 %v2642, 32
      %v3365 = vpop.permute.xlu0 %3364
      %3366 = vrot.lane.b32.xlu0 %v2644, 32
      %v3367 = vpop.permute.xlu0 %3366
      %3368 = vrot.lane.b32.xlu0 %v2647, 32
      %v3369 = vpop.permute.xlu0 %3368
      %3370 = vrot.lane.b32.xlu0 %v2649, 32
      %v3371 = vpop.permute.xlu0 %3370
      %3372 = vrot.lane.b32.xlu0 %v2652, 32
      %v3373 = vpop.permute.xlu0 %3372
      %3374 = vrot.lane.b32.xlu0 %v2654, 32
      %v3375 = vpop.permute.xlu0 %3374
      %3376 = vrot.lane.b32.xlu0 %v2657, 32
      %v3377 = vpop.permute.xlu0 %3376
      %3378 = vrot.lane.b32.xlu0 %v2659, 32
      %v3379 = vpop.permute.xlu0 %3378
      %3380 = vrot.lane.b32.xlu0 %v2662, 32
      %v3381 = vpop.permute.xlu0 %3380
      %3382 = vrot.lane.b32.xlu0 %v2664, 32
      %v3383 = vpop.permute.xlu0 %3382
      %3384 = vrot.lane.b32.xlu0 %v2667, 32
      %v3385 = vpop.permute.xlu0 %3384
      %3386 = vrot.lane.b32.xlu0 %v2669, 32
      %v3387 = vpop.permute.xlu0 %3386
      %3388 = vrot.lane.b32.xlu0 %v2672, 32
      %v3389 = vpop.permute.xlu0 %3388
      %3390 = vrot.lane.b32.xlu0 %v2674, 32
      %v3391 = vpop.permute.xlu0 %3390
      %3392 = vrot.lane.b32.xlu0 %v2677, 32
      %v3393 = vpop.permute.xlu0 %3392
      %3394 = vrot.lane.b32.xlu0 %v2679, 32
      %v3395 = vpop.permute.xlu0 %3394
      %3396 = vrot.lane.b32.xlu0 %v2689, 32
      %v3397 = vpop.permute.xlu0 %3396
      %3398 = vrot.lane.b32.xlu0 %v2691, 32
      %v3399 = vpop.permute.xlu0 %3398
      %v3430 = vsel %vm1598, %v2468, %v2693
      %v3431 = vsel %vm1598, %v2375, %v2695
      %v3432 = vsel %vm1598, %v2469, %v2697
      %v3433 = vsel %vm1598, %v2378, %v2699
      %v3434 = vsel %vm1598, %v2470, %v2701
      %v3435 = vsel %vm1598, %v2381, %v2703
      %v3436 = vsel %vm1598, %v2471, %v2705
      %v3437 = vsel %vm1598, %v2384, %v2707
      %v3438 = vsel %vm1598, %v2472, %v2709
      %v3439 = vsel %vm1598, %v2387, %v2711
      %v3440 = vsel %vm1598, %v2473, %v2713
      %v3441 = vsel %vm1598, %v2390, %v2715
      %v3442 = vsel %vm1598, %v2474, %v2717
      %v3443 = vsel %vm1598, %v2393, %v2719
      %v3444 = vsel %vm1598, %v2475, %v2721
      %v3445 = vsel %vm1598, %v2396, %v2723
      %v3446 = vsel %vm1598, %v2476, %v2725
      %v3447 = vsel %vm1598, %v2399, %v2727
      %v3448 = vsel %vm1598, %v2477, %v2729
      %v3449 = vsel %vm1598, %v2402, %v2731
      %v3450 = vsel %vm1598, %v2478, %v2733
      %v3451 = vsel %vm1598, %v2405, %v2735
      %v3452 = vsel %vm1598, %v2479, %v2737
      %v3453 = vsel %vm1598, %v2408, %v2739
      %v3454 = vsel %vm1598, %v2480, %v2741
      %v3455 = vsel %vm1598, %v2411, %v2743
      %v3456 = vsel %vm1598, %v2481, %v2745
      %v3457 = vsel %vm1598, %v2414, %v2747
      %v3458 = vsel %vm1598, %v2482, %v2749
      %v3459 = vsel %vm1598, %v2417, %v2751
      %v3460 = vsel %vm1630, %v3430, %v2783
      %v3461 = vsel %vm1630, %v3431, %v2785
      %v3462 = vsel %vm1630, %v3432, %v2787
      %v3463 = vsel %vm1630, %v3433, %v2789
      %v3464 = vsel %vm1630, %v3434, %v2791
      %v3465 = vsel %vm1630, %v3435, %v2793
      %v3466 = vsel %vm1630, %v3436, %v2795
      %v3467 = vsel %vm1630, %v3437, %v2797
      %v3468 = vsel %vm1630, %v3438, %v2799
      %v3469 = vsel %vm1630, %v3439, %v2801
      %v3470 = vsel %vm1630, %v3440, %v2803
      %v3471 = vsel %vm1630, %v3441, %v2805
      %v3472 = vsel %vm1630, %v3442, %v2807
      %v3473 = vsel %vm1630, %v3443, %v2809
      %v3474 = vsel %vm1630, %v3444, %v2811
      %v3475 = vsel %vm1630, %v3445, %v2813
      %v3476 = vsel %vm1630, %v3446, %v2815
      %v3477 = vsel %vm1630, %v3447, %v2817
      %v3478 = vsel %vm1630, %v3448, %v2819
      %v3479 = vsel %vm1630, %v3449, %v2821
      %v3480 = vsel %vm1630, %v3450, %v2823
      %v3481 = vsel %vm1630, %v3451, %v2825
      %v3482 = vsel %vm1630, %v3452, %v2827
      %v3483 = vsel %vm1630, %v3453, %v2829
      %v3484 = vsel %vm1630, %v3454, %v2831
      %v3485 = vsel %vm1630, %v3455, %v2833
      %v3486 = vsel %vm1630, %v3456, %v2835
      %v3487 = vsel %vm1630, %v3457, %v2837
      %v3488 = vsel %vm1630, %v3458, %v2839
      %v3489 = vsel %vm1630, %v3459, %v2841
      %v3490 = vsel %vm1662, %v1631, %v2873
      %v3491 = vsel %vm1662, %v1631, %v2875
      %v3492 = vsel %vm1662, %v3460, %v2877
      %v3493 = vsel %vm1662, %v3461, %v2879
      %v3494 = vsel %vm1662, %v3462, %v2881
      %v3495 = vsel %vm1662, %v3463, %v2883
      %v3496 = vsel %vm1662, %v3464, %v2885
      %v3497 = vsel %vm1662, %v3465, %v2887
      %v3498 = vsel %vm1662, %v3466, %v2889
      %v3499 = vsel %vm1662, %v3467, %v2891
      %v3500 = vsel %vm1662, %v3468, %v2893
      %v3501 = vsel %vm1662, %v3469, %v2895
      %v3502 = vsel %vm1662, %v3470, %v2897
      %v3503 = vsel %vm1662, %v3471, %v2899
      %v3504 = vsel %vm1662, %v3472, %v2901
      %v3505 = vsel %vm1662, %v3473, %v2903
      %v3506 = vsel %vm1662, %v3474, %v2905
      %v3507 = vsel %vm1662, %v3475, %v2907
      %v3508 = vsel %vm1662, %v3476, %v2909
      %v3509 = vsel %vm1662, %v3477, %v2911
      %v3510 = vsel %vm1662, %v3478, %v2913
      %v3511 = vsel %vm1662, %v3479, %v2915
      %v3512 = vsel %vm1662, %v3480, %v2917
      %v3513 = vsel %vm1662, %v3481, %v2919
      %v3514 = vsel %vm1662, %v3482, %v2921
      %v3515 = vsel %vm1662, %v3483, %v2923
      %v3516 = vsel %vm1662, %v3484, %v2925
      %v3517 = vsel %vm1662, %v3485, %v2927
      %v3518 = vsel %vm1662, %v3486, %v2929
      %v3519 = vsel %vm1662, %v3487, %v2931
      %v3520 = vsel %vm1662, %v3488, %v2933
      %v3521 = vsel %vm1662, %v3489, %v2935
      %v3522 = vsel %vm1695, %v3490, %v2969
      %v3523 = vsel %vm1695, %v3491, %v2971
      %v3524 = vsel %vm1695, %v3492, %v2973
      %v3525 = vsel %vm1695, %v3493, %v2975
      %v3526 = vsel %vm1695, %v3494, %v2977
      %v3527 = vsel %vm1695, %v3495, %v2979
      %v3528 = vsel %vm1695, %v3496, %v2981
      %v3529 = vsel %vm1695, %v3497, %v2983
      %v3530 = vsel %vm1695, %v3498, %v2985
      %v3531 = vsel %vm1695, %v3499, %v2987
      %v3532 = vsel %vm1695, %v3500, %v2989
      %v3533 = vsel %vm1695, %v3501, %v2991
      %v3534 = vsel %vm1695, %v3502, %v2993
      %v3535 = vsel %vm1695, %v3503, %v2995
      %v3536 = vsel %vm1695, %v3504, %v2997
      %v3537 = vsel %vm1695, %v3505, %v2999
      %v3538 = vsel %vm1695, %v3506, %v3001
      %v3539 = vsel %vm1695, %v3507, %v3003
      %v3540 = vsel %vm1695, %v3508, %v3005
      %v3541 = vsel %vm1695, %v3509, %v3007
      %v3542 = vsel %vm1695, %v3510, %v3009
      %v3543 = vsel %vm1695, %v3511, %v3011
      %v3544 = vsel %vm1695, %v3512, %v3013
      %v3545 = vsel %vm1695, %v3513, %v3015
      %v3546 = vsel %vm1695, %v3514, %v3017
      %v3547 = vsel %vm1695, %v3515, %v3019
      %v3548 = vsel %vm1695, %v3516, %v3021
      %v3549 = vsel %vm1695, %v3517, %v3023
      %v3550 = vsel %vm1695, %v3518, %v3025
      %v3551 = vsel %vm1695, %v3519, %v3027
      %v3552 = vsel %vm1695, %v3520, %v3029
      %v3553 = vsel %vm1695, %v3521, %v3031
      %v3554 = vsel %vm1728, %v3522, %v3065
      %v3555 = vsel %vm1728, %v3523, %v3067
      %v3556 = vsel %vm1728, %v3524, %v3069
      %v3557 = vsel %vm1728, %v3525, %v3071
      %v3558 = vsel %vm1728, %v3526, %v3073
      %v3559 = vsel %vm1728, %v3527, %v3075
      %v3560 = vsel %vm1728, %v3528, %v3077
      %v3561 = vsel %vm1728, %v3529, %v3079
      %v3562 = vsel %vm1728, %v3530, %v3081
      %v3563 = vsel %vm1728, %v3531, %v3083
      %v3564 = vsel %vm1728, %v3532, %v3085
      %v3565 = vsel %vm1728, %v3533, %v3087
      %v3566 = vsel %vm1728, %v3534, %v3089
      %v3567 = vsel %vm1728, %v3535, %v3091
      %v3568 = vsel %vm1728, %v3536, %v3093
      %v3569 = vsel %vm1728, %v3537, %v3095
      %v3570 = vsel %vm1728, %v3538, %v3097
      %v3571 = vsel %vm1728, %v3539, %v3099
      %v3572 = vsel %vm1728, %v3540, %v3101
      %v3573 = vsel %vm1728, %v3541, %v3103
      %v3574 = vsel %vm1728, %v3542, %v3105
      %v3575 = vsel %vm1728, %v3543, %v3107
      %v3576 = vsel %vm1728, %v3544, %v3109
      %v3577 = vsel %vm1728, %v3545, %v3111
      %v3578 = vsel %vm1728, %v3546, %v3113
      %v3579 = vsel %vm1728, %v3547, %v3115
      %v3580 = vsel %vm1728, %v3548, %v3117
      %v3581 = vsel %vm1728, %v3549, %v3119
      %v3582 = vsel %vm1728, %v3550, %v3121
      %v3583 = vsel %vm1728, %v3551, %v3123
      %v3584 = vsel %vm1728, %v3552, %v3125
      %v3585 = vsel %vm1728, %v3553, %v3127
      %v3586 = vsel %vm1761, %v3554, %v3161
      %v3587 = vsel %vm1761, %v3555, %v3163
      %v3588 = vsel %vm1761, %v3556, %v3165
      %v3589 = vsel %vm1761, %v3557, %v3167
      %v3590 = vsel %vm1761, %v3558, %v3169
      %v3591 = vsel %vm1761, %v3559, %v3171
      %v3592 = vsel %vm1761, %v3560, %v3173
      %v3593 = vsel %vm1761, %v3561, %v3175
      %v3594 = vsel %vm1761, %v3562, %v3177
      %v3595 = vsel %vm1761, %v3563, %v3179
      %v3596 = vsel %vm1761, %v3564, %v3181
      %v3597 = vsel %vm1761, %v3565, %v3183
      %v3598 = vsel %vm1761, %v3566, %v3185
      %v3599 = vsel %vm1761, %v3567, %v3187
      %v3600 = vsel %vm1761, %v3568, %v3189
      %v3601 = vsel %vm1761, %v3569, %v3191
      %v3602 = vsel %vm1761, %v3570, %v3193
      %v3603 = vsel %vm1761, %v3571, %v3195
      %v3604 = vsel %vm1761, %v3572, %v3197
      %v3605 = vsel %vm1761, %v3573, %v3199
      %v3606 = vsel %vm1761, %v3574, %v3201
      %v3607 = vsel %vm1761, %v3575, %v3203
      %v3608 = vsel %vm1761, %v3576, %v3205
      %v3609 = vsel %vm1761, %v3577, %v3207
      %v3610 = vsel %vm1761, %v3578, %v3209
      %v3611 = vsel %vm1761, %v3579, %v3211
      %v3612 = vsel %vm1761, %v3580, %v3213
      %v3613 = vsel %vm1761, %v3581, %v3215
      %v3614 = vsel %vm1761, %v3582, %v3217
      %v3615 = vsel %vm1761, %v3583, %v3219
      %v3616 = vsel %vm1761, %v3584, %v1380
      %v3617 = vsel %vm1761, %v3585, %v1380
      %v3618 = vsel %vm1794, %v3586, %v3251
      %v3619 = vsel %vm1794, %v3587, %v3253
      %v3620 = vsel %vm1794, %v3588, %v3255
      %v3621 = vsel %vm1794, %v3589, %v3257
      %v3622 = vsel %vm1794, %v3590, %v3259
      %v3623 = vsel %vm1794, %v3591, %v3261
      %v3624 = vsel %vm1794, %v3592, %v3263
      %v3625 = vsel %vm1794, %v3593, %v3265
      %v3626 = vsel %vm1794, %v3594, %v3267
      %v3627 = vsel %vm1794, %v3595, %v3269
      %v3628 = vsel %vm1794, %v3596, %v3271
      %v3629 = vsel %vm1794, %v3597, %v3273
      %v3630 = vsel %vm1794, %v3598, %v3275
      %v3631 = vsel %vm1794, %v3599, %v3277
      %v3632 = vsel %vm1794, %v3600, %v3279
      %v3633 = vsel %vm1794, %v3601, %v3281
      %v3634 = vsel %vm1794, %v3602, %v3283
      %v3635 = vsel %vm1794, %v3603, %v3285
      %v3636 = vsel %vm1794, %v3604, %v3287
      %v3637 = vsel %vm1794, %v3605, %v3289
      %v3638 = vsel %vm1794, %v3606, %v3291
      %v3639 = vsel %vm1794, %v3607, %v3293
      %v3640 = vsel %vm1794, %v3608, %v3295
      %v3641 = vsel %vm1794, %v3609, %v3297
      %v3642 = vsel %vm1794, %v3610, %v3299
      %v3643 = vsel %vm1794, %v3611, %v3301
      %v3644 = vsel %vm1794, %v3612, %v3303
      %v3645 = vsel %vm1794, %v3613, %v3305
      %v3646 = vsel %vm1794, %v3614, %v3307
      %v3647 = vsel %vm1794, %v3615, %v3309
      %v3648 = vsel %vm1794, %v3616, %v1473
      %v3649 = vsel %vm1794, %v3617, %v1473
      %v3650 = vsel %vm1827, %v3618, %v3341
      %v3651 = vsel %vm1827, %v3619, %v3343
      %v3652 = vsel %vm1827, %v3620, %v3345
      %v3653 = vsel %vm1827, %v3621, %v3347
      %v3654 = vsel %vm1827, %v3622, %v3349
      %v3655 = vsel %vm1827, %v3623, %v3351
      %v3656 = vsel %vm1827, %v3624, %v3353
      %v3657 = vsel %vm1827, %v3625, %v3355
      %v3658 = vsel %vm1827, %v3626, %v3357
      %v3659 = vsel %vm1827, %v3627, %v3359
      %v3660 = vsel %vm1827, %v3628, %v3361
      %v3661 = vsel %vm1827, %v3629, %v3363
      %v3662 = vsel %vm1827, %v3630, %v3365
      %v3663 = vsel %vm1827, %v3631, %v3367
      %v3664 = vsel %vm1827, %v3632, %v3369
      %v3665 = vsel %vm1827, %v3633, %v3371
      %v3666 = vsel %vm1827, %v3634, %v3373
      %v3667 = vsel %vm1827, %v3635, %v3375
      %v3668 = vsel %vm1827, %v3636, %v3377
      %v3669 = vsel %vm1827, %v3637, %v3379
      %v3670 = vsel %vm1827, %v3638, %v3381
      %v3671 = vsel %vm1827, %v3639, %v3383
      %v3672 = vsel %vm1827, %v3640, %v3385
      %v3673 = vsel %vm1827, %v3641, %v3387
      %v3674 = vsel %vm1827, %v3642, %v3389
      %v3675 = vsel %vm1827, %v3643, %v3391
      %v3676 = vsel %vm1827, %v3644, %v3393
      %v3677 = vsel %vm1827, %v3645, %v3395
      %v3678 = vsel %vm1827, %v3646, %v3397
      %v3679 = vsel %vm1827, %v3647, %v3399
      %v3680 = vsel %vm1827, %v3648, %v1566
      %v3681 = vsel %vm1827, %v3649, %v1566
      %v3682 = vsel %vm1860, %v3650, 1.0
      %v3683 = vsel %vm1860, %v3651, 1.0
      %v3684 = vsel %vm1860, %v3652, 1.0
      %v3685 = vsel %vm1860, %v3653, 1.0
      %v3686 = vsel %vm1860, %v3654, 1.0
      %v3687 = vsel %vm1860, %v3655, 1.0
      %v3688 = vsel %vm1860, %v3656, 1.0
      %v3689 = vsel %vm1860, %v3657, 1.0
      %v3690 = vsel %vm1860, %v3658, 1.0
      %v3691 = vsel %vm1860, %v3659, 1.0
      %v3692 = vsel %vm1860, %v3660, 1.0
      %v3693 = vsel %vm1860, %v3661, 1.0
      %v3694 = vsel %vm1860, %v3662, 1.0
      %v3695 = vsel %vm1860, %v3663, 1.0
      %v3696 = vsel %vm1860, %v3664, 1.0
      %v3697 = vsel %vm1860, %v3665, 1.0
      %v3698 = vsel %vm1860, %v3666, 1.0
      %v3699 = vsel %vm1860, %v3667, 1.0
      %v3700 = vsel %vm1860, %v3668, 1.0
      %v3701 = vsel %vm1860, %v3669, 1.0
      %v3702 = vsel %vm1860, %v3670, 1.0
      %v3703 = vsel %vm1860, %v3671, 1.0
      %v3704 = vsel %vm1860, %v3672, 1.0
      %v3705 = vsel %vm1860, %v3673, 1.0
      %v3706 = vsel %vm1860, %v3674, 1.0
      %v3707 = vsel %vm1860, %v3675, 1.0
      %v3708 = vsel %vm1860, %v3676, 1.0
      %v3709 = vsel %vm1860, %v3677, 1.0
      %v3710 = vsel %vm1860, %v3678, 1.0
      %v3711 = vsel %vm1860, %v3679, 1.0
      %v3712 = vsel %vm1860, %v3680, 1.0
      %v3713 = vsel %vm1860, %v3681, 1.0
      %v3714 = vsel %vm1893, %v3682, 0.0
      %v3715 = vsel %vm1893, %v3683, 0.0
      %v3716 = vsel %vm1893, %v3684, 0.0
      %v3717 = vsel %vm1893, %v3685, 0.0
      %v3718 = vsel %vm1893, %v3686, 0.0
      %v3719 = vsel %vm1893, %v3687, 0.0
      %v3720 = vsel %vm1893, %v3688, 0.0
      %v3721 = vsel %vm1893, %v3689, 0.0
      %v3722 = vsel %vm1893, %v3690, 0.0
      %v3723 = vsel %vm1893, %v3691, 0.0
      %v3724 = vsel %vm1893, %v3692, 0.0
      %v3725 = vsel %vm1893, %v3693, 0.0
      %v3726 = vsel %vm1893, %v3694, 0.0
      %v3727 = vsel %vm1893, %v3695, 0.0
      %v3728 = vsel %vm1893, %v3696, 0.0
      %v3729 = vsel %vm1893, %v3697, 0.0
      %v3730 = vsel %vm1893, %v3698, 0.0
      %v3731 = vsel %vm1893, %v3699, 0.0
      %v3732 = vsel %vm1893, %v3700, 0.0
      %v3733 = vsel %vm1893, %v3701, 0.0
      %v3734 = vsel %vm1893, %v3702, 0.0
      %v3735 = vsel %vm1893, %v3703, 0.0
      %v3736 = vsel %vm1893, %v3704, 0.0
      %v3737 = vsel %vm1893, %v3705, 0.0
      %v3738 = vsel %vm1893, %v3706, 0.0
      %v3739 = vsel %vm1893, %v3707, 0.0
      %v3740 = vsel %vm1893, %v3708, 0.0
      %v3741 = vsel %vm1893, %v3709, 0.0
      %v3742 = vsel %vm1893, %v3710, 0.0
      %v3743 = vsel %vm1893, %v3711, 0.0
      %v3744 = vsel %vm1893, %v3712, 0.0
      %v3745 = vsel %vm1893, %v3713, 0.0
      %v3746 = vpack.c.bf16 %v3715, %v3714
      %v3747 = vpack.c.bf16 %v3717, %v3716
      %v3748 = vpack.c.bf16 %v3719, %v3718
      %v3749 = vpack.c.bf16 %v3721, %v3720
      %v3750 = vpack.c.bf16 %v3723, %v3722
      %v3751 = vpack.c.bf16 %v3725, %v3724
      %v3752 = vpack.c.bf16 %v3727, %v3726
      %v3753 = vpack.c.bf16 %v3729, %v3728
      %v3754 = vpack.c.bf16 %v3731, %v3730
      %v3755 = vpack.c.bf16 %v3733, %v3732
      %v3756 = vpack.c.bf16 %v3735, %v3734
      %v3757 = vpack.c.bf16 %v3737, %v3736
      %v3758 = vpack.c.bf16 %v3739, %v3738
      %v3759 = vpack.c.bf16 %v3741, %v3740
      %v3760 = vpack.c.bf16 %v3743, %v3742
      %v3761 = vpack.c.bf16 %v3745, %v3744
      %v3762 = vld [vmem:[%s6] sm:$0xf]
      %v3763 = vld [vmem:[%s6 + $0x4] sm:$0xf]
      %v3764 = vld [vmem:[%s6 + $0x8] sm:$0xf]
      %v3765 = vld [vmem:[%s6 + $0xc] sm:$0xf]
      %v3766 = vld [vmem:[%s6 + $0x10] sm:$0xf]
      %v3767 = vld [vmem:[%s6 + $0x14] sm:$0xf]
      %v3768 = vld [vmem:[%s6 + $0x18] sm:$0xf]
      %v3769 = vld [vmem:[%s6 + $0x1c] sm:$0xf]
      %v3770 = vld [vmem:[%s6 + $0x20] sm:$0xf]
      %v3771 = vld [vmem:[%s6 + $0x24] sm:$0xf]
      %v3772 = vld [vmem:[%s6 + $0x28] sm:$0xf]
      %v3773 = vld [vmem:[%s6 + $0x2c] sm:$0xf]
      %v3774 = vld [vmem:[%s6 + $0x30] sm:$0xf]
      %v3775 = vld [vmem:[%s6 + $0x34] sm:$0xf]
      %v3776 = vld [vmem:[%s6 + $0x38] sm:$0xf]
      %v3777 = vld [vmem:[%s6 + $0x3c] sm:$0xf]
      %v3794 = vunpack.c.l.b16 %v3762
      %v3795 = vunpack.c.l.b16 %v3763
      %v3796 = vunpack.c.l.b16 %v3764
      %v3797 = vunpack.c.l.b16 %v3765
      %v3798 = vunpack.c.l.b16 %v3766
      %v3799 = vunpack.c.l.b16 %v3767
      %v3800 = vunpack.c.l.b16 %v3768
      %v3801 = vunpack.c.l.b16 %v3769
      %v3802 = vunpack.c.l.b16 %v3770
      %v3803 = vunpack.c.l.b16 %v3771
      %v3804 = vunpack.c.l.b16 %v3772
      %v3805 = vunpack.c.l.b16 %v3773
      %v3806 = vunpack.c.l.b16 %v3774
      %v3807 = vunpack.c.l.b16 %v3775
      %v3808 = vunpack.c.l.b16 %v3776
      %v3809 = vunpack.c.l.b16 %v3777
      %v3810 = vpack.c.b16 %v3795, %v3794
      %v3811 = vpack.c.b16 %v3797, %v3796
      %v3812 = vpack.c.b16 %v3799, %v3798
      %v3813 = vpack.c.b16 %v3801, %v3800
      %v3814 = vpack.c.b16 %v3803, %v3802
      %v3815 = vpack.c.b16 %v3805, %v3804
      %v3816 = vpack.c.b16 %v3807, %v3806
      %v3817 = vpack.c.b16 %v3809, %v3808
      %3826 = vmatprep.subr.bf16.mxu0 0
      %3827 = vmatpush1.bf16.msra.mxu0 %v3817
      %3828 = vmatprep.subr.bf16.mxu0 0
      %3829 = vmatpush1.bf16.msra.mxu0 %v3816
      %3830 = vmatprep.subr.bf16.mxu0 0
      %3831 = vmatpush1.bf16.msra.mxu0 %v3815
      %3832 = vmatprep.subr.bf16.mxu0 0
      %3833 = vmatpush1.bf16.msra.mxu0 %v3814
      %3834 = vmatprep.subr.bf16.mxu0 0
      %3835 = vmatpush1.bf16.msra.mxu0 %v3813
      %3836 = vmatprep.subr.bf16.mxu0 0
      %3837 = vmatpush1.bf16.msra.mxu0 %v3812
      %3838 = vmatprep.subr.bf16.mxu0 0
      %3839 = vmatpush1.bf16.msra.mxu0 %v3811
      %3840 = vmatprep.subr.bf16.mxu0 0
      %3841 = vmatpush1.bf16.msra.mxu0 %v3810
      %3842 = vmatprep.subr.bf16.mxu0 0
      %3843 = vmatpush2.bf16.msra.mxu0 0
      %3844 = vmatprep.subr.bf16.mxu0 0
      %3845 = vmatpush2.bf16.msra.mxu0 0
      %3846 = vmatprep.subr.bf16.mxu0 0
      %3847 = vmatpush2.bf16.msra.mxu0 0
      %3848 = vmatprep.subr.bf16.mxu0 0
      %3849 = vmatpush2.bf16.msra.mxu0 0
      %3850 = vmatprep.subr.bf16.mxu0 0
      %3851 = vmatpush2.bf16.msra.mxu0 0
      %3852 = vmatprep.subr.bf16.mxu0 0
      %3853 = vmatpush2.bf16.msra.mxu0 0
      %3854 = vmatprep.subr.bf16.mxu0 0
      %3855 = vmatpush2.bf16.msra.mxu0 0
      %3856 = vmatprep.subr.bf16.mxu0 0
      %3857 = vmatpush2.bf16.msra.mxu0 0
      %3858 = vmatprep.mubr.bf16.mxu0 0
      %3859 = vmatmul.mubr.bf16.gmra.mxu0 %v3746
      %v3860 = vpop.f32.mrf.mxu0
      %v3861 = vadd.f32 0.0, %v3860
      %v3862 = vpop.f32.mrf.mxu0
      %v3863 = vpop.f32.mrf.mxu0
      %v3864 = vadd.f32 0.0, %v3863
      %v3865 = vpop.f32.mrf.mxu0
      %3866 = vmatprep.mubr.bf16.mxu0 0
      %3867 = vmatmul.mubr.bf16.gmra.mxu0 %v3747
      %v3868 = vpop.f32.mrf.mxu0
      %v3869 = vadd.f32 0.0, %v3868
      %v3870 = vpop.f32.mrf.mxu0
      %v3871 = vpop.f32.mrf.mxu0
      %v3872 = vadd.f32 0.0, %v3871
      %v3873 = vpop.f32.mrf.mxu0
      %3874 = vmatprep.mubr.bf16.mxu0 0
      %3875 = vmatmul.mubr.bf16.gmra.mxu0 %v3748
      %v3876 = vpop.f32.mrf.mxu0
      %v3877 = vadd.f32 0.0, %v3876
      %v3878 = vpop.f32.mrf.mxu0
      %v3879 = vpop.f32.mrf.mxu0
      %v3880 = vadd.f32 0.0, %v3879
      %v3881 = vpop.f32.mrf.mxu0
      %3882 = vmatprep.mubr.bf16.mxu0 0
      %3883 = vmatmul.mubr.bf16.gmra.mxu0 %v3749
      %v3884 = vpop.f32.mrf.mxu0
      %v3885 = vadd.f32 0.0, %v3884
      %v3886 = vpop.f32.mrf.mxu0
      %v3887 = vpop.f32.mrf.mxu0
      %v3888 = vadd.f32 0.0, %v3887
      %v3889 = vpop.f32.mrf.mxu0
      %3890 = vmatprep.mubr.bf16.mxu0 0
      %3891 = vmatmul.mubr.bf16.gmra.mxu0 %v3750
      %v3892 = vpop.f32.mrf.mxu0
      %v3893 = vadd.f32 0.0, %v3892
      %v3894 = vpop.f32.mrf.mxu0
      %v3895 = vpop.f32.mrf.mxu0
      %v3896 = vadd.f32 0.0, %v3895
      %v3897 = vpop.f32.mrf.mxu0
      %3898 = vmatprep.mubr.bf16.mxu0 0
      %3899 = vmatmul.mubr.bf16.gmra.mxu0 %v3751
      %v3900 = vpop.f32.mrf.mxu0
      %v3901 = vadd.f32 0.0, %v3900
      %v3902 = vpop.f32.mrf.mxu0
      %v3903 = vpop.f32.mrf.mxu0
      %v3904 = vadd.f32 0.0, %v3903
      %v3905 = vpop.f32.mrf.mxu0
      %3906 = vmatprep.mubr.bf16.mxu0 0
      %3907 = vmatmul.mubr.bf16.gmra.mxu0 %v3752
      %v3908 = vpop.f32.mrf.mxu0
      %v3909 = vadd.f32 0.0, %v3908
      %v3910 = vpop.f32.mrf.mxu0
      %v3911 = vpop.f32.mrf.mxu0
      %v3912 = vadd.f32 0.0, %v3911
      %v3913 = vpop.f32.mrf.mxu0
      %3914 = vmatprep.mubr.bf16.mxu0 0
      %3915 = vmatmul.mubr.bf16.gmra.mxu0 %v3753
      %v3916 = vpop.f32.mrf.mxu0
      %v3917 = vadd.f32 0.0, %v3916
      %v3918 = vpop.f32.mrf.mxu0
      %v3919 = vpop.f32.mrf.mxu0
      %v3920 = vadd.f32 0.0, %v3919
      %v3921 = vpop.f32.mrf.mxu0
      %3922 = vmatprep.mubr.bf16.mxu0 0
      %3923 = vmatmul.mubr.bf16.gmra.mxu0 %v3754
      %v3924 = vpop.f32.mrf.mxu0
      %v3925 = vadd.f32 0.0, %v3924
      %v3926 = vpop.f32.mrf.mxu0
      %v3927 = vpop.f32.mrf.mxu0
      %v3928 = vadd.f32 0.0, %v3927
      %v3929 = vpop.f32.mrf.mxu0
      %3930 = vmatprep.mubr.bf16.mxu0 0
      %3931 = vmatmul.mubr.bf16.gmra.mxu0 %v3755
      %v3932 = vpop.f32.mrf.mxu0
      %v3933 = vadd.f32 0.0, %v3932
      %v3934 = vpop.f32.mrf.mxu0
      %v3935 = vpop.f32.mrf.mxu0
      %v3936 = vadd.f32 0.0, %v3935
      %v3937 = vpop.f32.mrf.mxu0
      %3938 = vmatprep.mubr.bf16.mxu0 0
      %3939 = vmatmul.mubr.bf16.gmra.mxu0 %v3756
      %v3940 = vpop.f32.mrf.mxu0
      %v3941 = vadd.f32 0.0, %v3940
      %v3942 = vpop.f32.mrf.mxu0
      %v3943 = vpop.f32.mrf.mxu0
      %v3944 = vadd.f32 0.0, %v3943
      %v3945 = vpop.f32.mrf.mxu0
      %3946 = vmatprep.mubr.bf16.mxu0 0
      %3947 = vmatmul.mubr.bf16.gmra.mxu0 %v3757
      %v3948 = vpop.f32.mrf.mxu0
      %v3949 = vadd.f32 0.0, %v3948
      %v3950 = vpop.f32.mrf.mxu0
      %v3951 = vpop.f32.mrf.mxu0
      %v3952 = vadd.f32 0.0, %v3951
      %v3953 = vpop.f32.mrf.mxu0
      %3954 = vmatprep.mubr.bf16.mxu0 0
      %3955 = vmatmul.mubr.bf16.gmra.mxu0 %v3758
      %v3956 = vpop.f32.mrf.mxu0
      %v3957 = vadd.f32 0.0, %v3956
      %v3958 = vpop.f32.mrf.mxu0
      %v3959 = vpop.f32.mrf.mxu0
      %v3960 = vadd.f32 0.0, %v3959
      %v3961 = vpop.f32.mrf.mxu0
      %3962 = vmatprep.mubr.bf16.mxu0 0
      %3963 = vmatmul.mubr.bf16.gmra.mxu0 %v3759
      %v3964 = vpop.f32.mrf.mxu0
      %v3965 = vadd.f32 0.0, %v3964
      %v3966 = vpop.f32.mrf.mxu0
      %v3967 = vpop.f32.mrf.mxu0
      %v3968 = vadd.f32 0.0, %v3967
      %v3969 = vpop.f32.mrf.mxu0
      %3970 = vmatprep.mubr.bf16.mxu0 0
      %3971 = vmatmul.mubr.bf16.gmra.mxu0 %v3760
      %v3972 = vpop.f32.mrf.mxu0
      %v3973 = vadd.f32 0.0, %v3972
      %v3974 = vpop.f32.mrf.mxu0
      %v3975 = vpop.f32.mrf.mxu0
      %v3976 = vadd.f32 0.0, %v3975
      %v3977 = vpop.f32.mrf.mxu0
      %3978 = vmatprep.mubr.bf16.mxu0 0
      %3979 = vmatmul.mubr.bf16.gmra.mxu0 %v3761
      %v3980 = vpop.f32.mrf.mxu0
      %v3981 = vadd.f32 0.0, %v3980
      %v3982 = vpop.f32.mrf.mxu0
      %v3983 = vpop.f32.mrf.mxu0
      %v3984 = vadd.f32 0.0, %v3983
      %v3985 = vpop.f32.mrf.mxu0
      %3986 = vdwg.mxu0
      %3987 = vst.msk [vmem:[%s278] sm:$0xff] %vm1598, %v3861
      %3988 = vst.msk [vmem:[%s278 + $0x8] sm:$0xff] %vm1598, %v3864
      %3989 = vst.msk [vmem:[%s278 + $0x10] sm:$0xff] %vm1598, %v3869
      %3990 = vst.msk [vmem:[%s278 + $0x18] sm:$0xff] %vm1598, %v3872
      %3991 = vst.msk [vmem:[%s278 + $0x20] sm:$0xff] %vm1598, %v3877
      %3992 = vst.msk [vmem:[%s278 + $0x28] sm:$0xff] %vm1598, %v3880
      %3993 = vst.msk [vmem:[%s278 + $0x30] sm:$0xff] %vm1598, %v3885
      %3994 = vst.msk [vmem:[%s278 + $0x38] sm:$0xff] %vm1598, %v3888
      %3995 = vst.msk [vmem:[%s278 + $0x40] sm:$0xff] %vm1598, %v3893
      %3996 = vst.msk [vmem:[%s278 + $0x48] sm:$0xff] %vm1598, %v3896
      %3997 = vst.msk [vmem:[%s278 + $0x50] sm:$0xff] %vm1598, %v3901
      %3998 = vst.msk [vmem:[%s278 + $0x58] sm:$0xff] %vm1598, %v3904
      %3999 = vst.msk [vmem:[%s278 + $0x60] sm:$0xff] %vm1598, %v3909
      %4000 = vst.msk [vmem:[%s278 + $0x68] sm:$0xff] %vm1598, %v3912
      %4001 = vst.msk [vmem:[%s278 + $0x70] sm:$0xff] %vm1598, %v3917
      %4002 = vst.msk [vmem:[%s278 + $0x78] sm:$0xff] %vm1598, %v3920
      %4003 = vst.msk [vmem:[%s278 + $0x80] sm:$0xff] %vm1598, %v3925
      %4004 = vst.msk [vmem:[%s278 + $0x88] sm:$0xff] %vm1598, %v3928
      %4005 = vst.msk [vmem:[%s278 + $0x90] sm:$0xff] %vm1598, %v3933
      %4006 = vst.msk [vmem:[%s278 + $0x98] sm:$0xff] %vm1598, %v3936
      %4007 = vst.msk [vmem:[%s278 + $0xa0] sm:$0xff] %vm1598, %v3941
      %4008 = vst.msk [vmem:[%s278 + $0xa8] sm:$0xff] %vm1598, %v3944
      %4009 = vst.msk [vmem:[%s278 + $0xb0] sm:$0xff] %vm1598, %v3949
      %4010 = vst.msk [vmem:[%s278 + $0xb8] sm:$0xff] %vm1598, %v3952
      %4011 = vst.msk [vmem:[%s278 + $0xc0] sm:$0xff] %vm1598, %v3957
      %4012 = vst.msk [vmem:[%s278 + $0xc8] sm:$0xff] %vm1598, %v3960
      %4013 = vst.msk [vmem:[%s278 + $0xd0] sm:$0xff] %vm1598, %v3965
      %4014 = vst.msk [vmem:[%s278 + $0xd8] sm:$0xff] %vm1598, %v3968
      %4015 = vst.msk [vmem:[%s278 + $0xe0] sm:$0xff] %vm1598, %v3973
      %4016 = vst.msk [vmem:[%s278 + $0xe8] sm:$0xff] %vm1598, %v3976
      %4017 = vst.msk [vmem:[%s278 + $0xf0] sm:$0xff] %vm1598, %v3981
      %4018 = vst.msk [vmem:[%s278 + $0xf8] sm:$0xff] %vm1598, %v3984
      %p4019 = scmp.lt.s32.totalorder %s18, 1
      %s4020 = scalar_select %p4019, %s18, 1
      %s4021 = smul.addr %s4020, 32
      %s4022 = smul.addr %s4021, 8
      %s4023 = scalar_lea.vmem %s7, %s4022
      // Predicated region
      $region49: #{tpu_custom_call.1} parent=47 // pred_check
        %p4024 = pneg %p188
      $region50: #{tpu_custom_call.1} parent=47 // pred_check_branch
        %4026 = sbr.rel (%p4024) target = $region52
      $region51: #{tpu_custom_call.1} parent=47 // pred_region
        _
      $region52: #{tpu_custom_call.1} parent=47 // pred_fallthru
        _
    $region48: #{tpu_custom_call.1} parent=5 // pred_fallthru
      _
    %p4027 = scmp.le.s32.totalorder 2, %s13
    // Predicated region
    $region53: #{tpu_custom_call.1} parent=5 // pred_check
      %p4028 = pneg %p4027
    $region54: #{tpu_custom_call.1} parent=5 // pred_check_branch
      %4030 = sbr.rel (%p4028) target = $region56
    $region55: #{tpu_custom_call.1} parent=5 // pred_region
      %s4031 = ssub.s32 %s13, 2
      // Predicated region
      $region57: #{tpu_custom_call.1} parent=55 // pred_check
        %p4032 = pneg %p194
      $region58: #{tpu_custom_call.1} parent=55 // pred_check_branch
        %4034 = sbr.rel (%p4032) target = $region60
      $region59: #{tpu_custom_call.1} parent=55 // pred_region
        %p4035 = scmp.lt.s32.totalorder %s19, 1
        %s4036 = scalar_select %p4035, %s19, 1
        %s4037 = smul.addr %s4036, 32
        %s4038 = smul.addr %s4037, 8
        %s4039 = scalar_lea.vmem %s7, %s4038
      $region60: #{tpu_custom_call.1} parent=55 // pred_fallthru
        _
    $region56: #{tpu_custom_call.1} parent=5 // pred_fallthru
      _
  $region6: #{tpu_custom_call.1} parent=0 // loop_footer
    %s17 = sadd.s32 1, %s13
  $region7: #{tpu_custom_call.1} parent=0 // loop_footer_branch
    %12 = sbr.rel target = $region3
  $region8: #{tpu_custom_call.1} parent=0 // loop_exit
    _

</llo_original>
